<compile_context>
chip_gen: v7x
topology: tpu7x:2x2x1
jax: 0.10.0
libtpu: 0.0.40
codegen_flags: <defaults>
</compile_context>

<pallas_src>
import functools
import math

import jax
import jax.numpy as jnp
from jax.experimental import pallas as pl
from jax.experimental.pallas import tpu as pltpu

# ---------------- config (small ELECTRA-like encoder) ----------------
VOCAB = 100
HIDDEN = 32
N_HEADS = 4
HEAD_DIM = HIDDEN // N_HEADS
FFN = 64
N_LAYERS = 2
MAX_POS = 16
NUM_CLASSES = 3
N_PAD = 128                     # lane-dense classifier output width
LN_EPS = 1e-12
ATTN_SCALE = 1.0 / math.sqrt(HEAD_DIM)   # python float -> literal (not a captured array)
GELU_C = 0.7978845608028654              # sqrt(2/pi)


# ---------------- in-kernel helpers (pure jnp, traced once) ----------------
def _layernorm(x, g, b):
    mu = jnp.mean(x, axis=-1, keepdims=True)
    var = jnp.mean((x - mu) * (x - mu), axis=-1, keepdims=True)
    return (x - mu) * jax.lax.rsqrt(var + LN_EPS) * g + b


def _gelu(x):
    # tanh-approx GELU; ELECTRA default is erf-GELU — numerically close.
    return 0.5 * x * (1.0 + jnp.tanh(GELU_C * (x + 0.044715 * x * x * x)))


# ---------------- the fused encoder + classifier kernel ----------------
def _encoder_kernel(x_ref, bias_ref, eg_ref, eb_ref,
                    wqkv_ref, bqkv_ref, wo_ref, bo_ref, ln1g_ref, ln1b_ref,
                    w1_ref, b1_ref, w2_ref, b2_ref, ln2g_ref, ln2b_ref,
                    fcw_ref, fcb_ref, o_ref, *, batch, seq):
    """Whole forward (post-embedding) for [batch*seq, HIDDEN] rows, VMEM-resident."""
    H, nH, Dh = HIDDEN, N_HEADS, HEAD_DIM

    x = _layernorm(x_ref[...], eg_ref[...], eb_ref[...])          # embedding LN
    bias = bias_ref[...]                                          # [B, S] additive mask

    for l in range(N_LAYERS):                                     # static unrolled
        # ---- fused QKV projection: one MXU pass, 3H-wide lane output ----
        qkv = jnp.dot(x, wqkv_ref[l],
                      preferred_element_type=jnp.float32) + bqkv_ref[l]
        q = qkv[:, 0:H]
        k = qkv[:, H:2 * H]
        v = qkv[:, 2 * H:3 * H]

        # ---- self attention: head split via static slices, no transposes ----
        ctx_rows = []
        for b in range(batch):
            r0 = b * seq
            bias_b = bias[b:b + 1, :]                              # [1, S]
            heads = []
            for h in range(nH):
                c0 = h * Dh
                qh = q[r0:r0 + seq, c0:c0 + Dh]                    # [S, Dh]
                kh = k[r0:r0 + seq, c0:c0 + Dh]
                vh = v[r0:r0 + seq, c0:c0 + Dh]
                # scores = qh @ kh^T (2-D contraction over Dh)
                s = jax.lax.dot_general(qh, kh, (((1,), (1,)), ((), ())),
                                        preferred_element_type=jnp.float32)
                s = s * ATTN_SCALE + bias_b
                m = jnp.max(s, axis=-1, keepdims=True)
                p = jnp.exp(s - m)
                p = p / jnp.sum(p, axis=-1, keepdims=True)
                heads.append(jnp.dot(p, vh,
                                     preferred_element_type=jnp.float32))
            ctx_rows.append(jnp.concatenate(heads, axis=1))        # [S, H]
        ctx = jnp.concatenate(ctx_rows, axis=0)                    # [B*S, H]

        attn = jnp.dot(ctx, wo_ref[l],
                       preferred_element_type=jnp.float32) + bo_ref[l]
        x = _layernorm(attn + x, ln1g_ref[l], ln1b_ref[l])

        # ---- feed forward ----
        hmid = _gelu(jnp.dot(x, w1_ref[l],
                             preferred_element_type=jnp.float32) + b1_ref[l])
        ffn = jnp.dot(hmid, w2_ref[l],
                      preferred_element_type=jnp.float32) + b2_ref[l]
        x = _layernorm(ffn + x, ln2g_ref[l], ln2b_ref[l])

    # ---- classifier (fc weight zero-padded to 128 lanes -> lane-dense store) ----
    logits = jnp.dot(x, fcw_ref[...],
                     preferred_element_type=jnp.float32) + fcb_ref[...]
    o_ref[...] = logits.astype(o_ref.dtype)


# ---------------- parameters (deterministic synthetic init) ----------------
def init_params(key):
    ks = iter(jax.random.split(key, 64))
    nrm = lambda shape, s=0.02: s * jax.random.normal(next(ks), shape, jnp.float32)
    params = {
        "word_emb": nrm((VOCAB, HIDDEN)),
        "pos_emb": nrm((MAX_POS, HIDDEN)),
        "tok_emb": nrm((2, HIDDEN)),
        "emb_ln_g": jnp.ones((HIDDEN,), jnp.float32),
        "emb_ln_b": jnp.zeros((HIDDEN,), jnp.float32),
        "layers": [],
    }
    for _ in range(N_LAYERS):
        layer = {
            "wq": nrm((HIDDEN, HIDDEN)), "bq": jnp.zeros((HIDDEN,), jnp.float32),
            "wk": nrm((HIDDEN, HIDDEN)), "bk": jnp.zeros((HIDDEN,), jnp.float32),
            "wv": nrm((HIDDEN, HIDDEN)), "bv": jnp.zeros((HIDDEN,), jnp.float32),
            "wo": nrm((HIDDEN, HIDDEN)), "bo": jnp.zeros((HIDDEN,), jnp.float32),
            "ln1_g": jnp.ones((HIDDEN,), jnp.float32),
            "ln1_b": jnp.zeros((HIDDEN,), jnp.float32),
            "w1": nrm((HIDDEN, FFN)), "b1": jnp.zeros((FFN,), jnp.float32),
            "w2": nrm((FFN, HIDDEN)), "b2": jnp.zeros((HIDDEN,), jnp.float32),
            "ln2_g": jnp.ones((HIDDEN,), jnp.float32),
            "ln2_b": jnp.zeros((HIDDEN,), jnp.float32),
        }
        params["layers"].append(layer)
    # classifier head: nn.Linear(feature_dim, num_classes), xavier_uniform_
    bound = math.sqrt(6.0 / (HIDDEN + NUM_CLASSES))
    params["fc_w"] = jax.random.uniform(
        next(ks), (HIDDEN, NUM_CLASSES), jnp.float32, -bound, bound)
    params["fc_b"] = jnp.zeros((NUM_CLASSES,), jnp.float32)
    return params


# ---------------- forward ----------------
def model_forward(params, input_ids, attention_mask):
    B, S = input_ids.shape
    H = HIDDEN

    # embeddings (gather is glue in plain JAX), token_type ids are all zero
    emb = (jnp.take(params["word_emb"], input_ids, axis=0)
           + params["pos_emb"][None, :S, :]
           + params["tok_emb"][0][None, None, :])
    x = emb.reshape(B * S, H).astype(jnp.float32)
    mask_bias = (1.0 - attention_mask.astype(jnp.float32)) * -10000.0   # [B, S]
    # TODO(synk): embedding / hidden / classifier dropout omitted (inference => identity).

    L = params["layers"]
    wqkv = jnp.stack([jnp.concatenate([l["wq"], l["wk"], l["wv"]], axis=1) for l in L])
    bqkv = jnp.stack([jnp.concatenate([l["bq"], l["bk"], l["bv"]])[None, :] for l in L])
    wo = jnp.stack([l["wo"] for l in L])
    bo = jnp.stack([l["bo"][None, :] for l in L])
    ln1g = jnp.stack([l["ln1_g"][None, :] for l in L])
    ln1b = jnp.stack([l["ln1_b"][None, :] for l in L])
    w1 = jnp.stack([l["w1"] for l in L])
    b1 = jnp.stack([l["b1"][None, :] for l in L])
    w2 = jnp.stack([l["w2"] for l in L])
    b2 = jnp.stack([l["b2"][None, :] for l in L])
    ln2g = jnp.stack([l["ln2_g"][None, :] for l in L])
    ln2b = jnp.stack([l["ln2_b"][None, :] for l in L])
    # classifier weight padded to a lane-dense 128-wide output
    fcw = jnp.zeros((H, N_PAD), jnp.float32).at[:, :NUM_CLASSES].set(params["fc_w"])
    fcb = jnp.zeros((1, N_PAD), jnp.float32).at[0, :NUM_CLASSES].set(params["fc_b"])

    kernel = functools.partial(_encoder_kernel, batch=B, seq=S)
    out = pl.pallas_call(
        kernel,
        out_shape=jax.ShapeDtypeStruct((B * S, N_PAD), jnp.float32),
        compiler_params=pltpu.CompilerParams(vmem_limit_bytes=8 * 1024 * 1024),
        cost_estimate=pl.CostEstimate(flops=700_000, transcendentals=4_000,
                                      bytes_accessed=128_000),
    )(x, mask_bias,
      params["emb_ln_g"][None, :], params["emb_ln_b"][None, :],
      wqkv, bqkv, wo, bo, ln1g, ln1b, w1, b1, w2, b2, ln2g, ln2b, fcw, fcb)

    # logits computed lane-dense for all rows; pick the CLS row and real classes here
    logits = out.reshape(B, S, N_PAD)[:, 0, :NUM_CLASSES]
    return logits


if __name__ == "__main__":
    B, S = 2, 8
    root = jax.random.PRNGKey(0)
    k_params, k_ids = jax.random.split(root, 2)

    params = init_params(k_params)
    input_ids = jax.random.randint(k_ids, (B, S), 0, VOCAB)
    attention_mask = jnp.ones((B, S), jnp.float32).at[1, 6:].set(0.0)

    fwd = jax.jit(model_forward)
    logits = fwd(params, input_ids, attention_mask)
    jax.block_until_ready(logits)
    assert logits.shape == (B, NUM_CLASSES)
    assert bool(jnp.all(jnp.isfinite(logits)))
    print("KERNEL_OK")
</pallas_src>

<mosaic_0001>
module attributes {stable_mosaic.version = 11 : i64} {
  func.func @_encoder_kernel(%arg0: memref<16x32xf32, #tpu.memory_space<vmem>>, %arg1: memref<2x8xf32, #tpu.memory_space<vmem>>, %arg2: memref<1x32xf32, #tpu.memory_space<vmem>>, %arg3: memref<1x32xf32, #tpu.memory_space<vmem>>, %arg4: memref<2x32x96xf32, #tpu.memory_space<vmem>>, %arg5: memref<2x1x96xf32, #tpu.memory_space<vmem>>, %arg6: memref<2x32x32xf32, #tpu.memory_space<vmem>>, %arg7: memref<2x1x32xf32, #tpu.memory_space<vmem>>, %arg8: memref<2x1x32xf32, #tpu.memory_space<vmem>>, %arg9: memref<2x1x32xf32, #tpu.memory_space<vmem>>, %arg10: memref<2x32x64xf32, #tpu.memory_space<vmem>>, %arg11: memref<2x1x64xf32, #tpu.memory_space<vmem>>, %arg12: memref<2x64x32xf32, #tpu.memory_space<vmem>>, %arg13: memref<2x1x32xf32, #tpu.memory_space<vmem>>, %arg14: memref<2x1x32xf32, #tpu.memory_space<vmem>>, %arg15: memref<2x1x32xf32, #tpu.memory_space<vmem>>, %arg16: memref<32x128xf32, #tpu.memory_space<vmem>>, %arg17: memref<1x128xf32, #tpu.memory_space<vmem>>, %arg18: memref<16x128xf32, #tpu.memory_space<vmem>>) attributes {dimension_semantics = [], scalar_prefetch = 0 : i64, scratch_operands = 0 : i64, tpu.core_type = #tpu.core_type<tc>} {
    %c0 = arith.constant 0 : index
    %c0_0 = arith.constant 0 : index
    %0 = vector.load %arg0[%c0, %c0_0] : memref<16x32xf32, #tpu.memory_space<vmem>>, vector<16x32xf32>
    %c0_1 = arith.constant 0 : index
    %c0_2 = arith.constant 0 : index
    %1 = vector.load %arg2[%c0_1, %c0_2] : memref<1x32xf32, #tpu.memory_space<vmem>>, vector<1x32xf32>
    %c0_3 = arith.constant 0 : index
    %c0_4 = arith.constant 0 : index
    %2 = vector.load %arg3[%c0_3, %c0_4] : memref<1x32xf32, #tpu.memory_space<vmem>>, vector<1x32xf32>
    %cst = arith.constant dense<0.000000e+00> : vector<16xf32>
    %3 = vector.multi_reduction <add>, %0, %cst [1] : vector<16x32xf32> to vector<16xf32>
    %4 = vector.shape_cast %3 : vector<16xf32> to vector<16x1xf32>
    %cst_5 = arith.constant 3.200000e+01 : f32
    %5 = vector.broadcast %cst_5 : f32 to vector<16x1xf32>
    %6 = arith.divf %4, %5 : vector<16x1xf32>
    %7 = vector.broadcast %6 : vector<16x1xf32> to vector<16x32xf32>
    %8 = arith.subf %0, %7 : vector<16x32xf32>
    %9 = vector.broadcast %6 : vector<16x1xf32> to vector<16x32xf32>
    %10 = arith.subf %0, %9 : vector<16x32xf32>
    %11 = arith.mulf %8, %10 : vector<16x32xf32>
    %cst_6 = arith.constant dense<0.000000e+00> : vector<16xf32>
    %12 = vector.multi_reduction <add>, %11, %cst_6 [1] : vector<16x32xf32> to vector<16xf32>
    %13 = vector.shape_cast %12 : vector<16xf32> to vector<16x1xf32>
    %cst_7 = arith.constant 3.200000e+01 : f32
    %14 = vector.broadcast %cst_7 : f32 to vector<16x1xf32>
    %15 = arith.divf %13, %14 : vector<16x1xf32>
    %16 = vector.broadcast %6 : vector<16x1xf32> to vector<16x32xf32>
    %17 = arith.subf %0, %16 : vector<16x32xf32>
    %cst_8 = arith.constant 9.99999996E-13 : f32
    %18 = vector.broadcast %cst_8 : f32 to vector<16x1xf32>
    %19 = arith.addf %15, %18 : vector<16x1xf32>
    %20 = math.rsqrt %19 : vector<16x1xf32>
    %21 = vector.broadcast %20 : vector<16x1xf32> to vector<16x32xf32>
    %22 = arith.mulf %17, %21 : vector<16x32xf32>
    %23 = vector.broadcast %1 : vector<1x32xf32> to vector<16x32xf32>
    %24 = arith.mulf %22, %23 : vector<16x32xf32>
    %25 = vector.broadcast %2 : vector<1x32xf32> to vector<16x32xf32>
    %26 = arith.addf %24, %25 : vector<16x32xf32>
    %c0_9 = arith.constant 0 : index
    %c0_10 = arith.constant 0 : index
    %27 = vector.load %arg1[%c0_9, %c0_10] : memref<2x8xf32, #tpu.memory_space<vmem>>, vector<2x8xf32>
    %c0_11 = arith.constant 0 : index
    %c0_12 = arith.constant 0 : index
    %c0_13 = arith.constant 0 : index
    %28 = vector.load %arg4[%c0_11, %c0_12, %c0_13] : memref<2x32x96xf32, #tpu.memory_space<vmem>>, vector<1x32x96xf32>
    %29 = vector.shape_cast %28 : vector<1x32x96xf32> to vector<32x96xf32>
    %cst_14 = arith.constant dense<0.000000e+00> : vector<16x96xf32>
    %30 = tpu.matmul %26, %29, %cst_14 {dimension_numbers = #tpu.dot_dimension_numbers<[1], [0], [0], [1], [0, 0, 1, 1], [], []>} : vector<16x32xf32>, vector<32x96xf32>, vector<16x96xf32> -> vector<16x96xf32>
    %c0_15 = arith.constant 0 : index
    %c0_16 = arith.constant 0 : index
    %c0_17 = arith.constant 0 : index
    %31 = vector.load %arg5[%c0_15, %c0_16, %c0_17] : memref<2x1x96xf32, #tpu.memory_space<vmem>>, vector<1x1x96xf32>
    %32 = vector.shape_cast %31 : vector<1x1x96xf32> to vector<1x96xf32>
    %33 = vector.broadcast %32 : vector<1x96xf32> to vector<16x96xf32>
    %34 = arith.addf %30, %33 : vector<16x96xf32>
    %35 = vector.extract_strided_slice %34 {offsets = [0, 0], sizes = [16, 32], strides = [1, 1]} : vector<16x96xf32> to vector<16x32xf32>
    %36 = vector.extract_strided_slice %34 {offsets = [0, 32], sizes = [16, 32], strides = [1, 1]} : vector<16x96xf32> to vector<16x32xf32>
    %37 = vector.extract_strided_slice %34 {offsets = [0, 64], sizes = [16, 32], strides = [1, 1]} : vector<16x96xf32> to vector<16x32xf32>
    %38 = vector.extract_strided_slice %27 {offsets = [0, 0], sizes = [1, 8], strides = [1, 1]} : vector<2x8xf32> to vector<1x8xf32>
    %39 = vector.extract_strided_slice %35 {offsets = [0, 0], sizes = [8, 8], strides = [1, 1]} : vector<16x32xf32> to vector<8x8xf32>
    %40 = vector.extract_strided_slice %36 {offsets = [0, 0], sizes = [8, 8], strides = [1, 1]} : vector<16x32xf32> to vector<8x8xf32>
    %41 = vector.extract_strided_slice %37 {offsets = [0, 0], sizes = [8, 8], strides = [1, 1]} : vector<16x32xf32> to vector<8x8xf32>
    %cst_18 = arith.constant dense<0.000000e+00> : vector<8x8xf32>
    %42 = tpu.matmul %39, %40, %cst_18 {dimension_numbers = #tpu.dot_dimension_numbers<[1], [1], [0], [0], [0, 0, 1, 0], [], []>} : vector<8x8xf32>, vector<8x8xf32>, vector<8x8xf32> -> vector<8x8xf32>
    %cst_19 = arith.constant 0.353553385 : f32
    %43 = vector.broadcast %cst_19 : f32 to vector<8x8xf32>
    %44 = arith.mulf %42, %43 : vector<8x8xf32>
    %45 = vector.broadcast %38 : vector<1x8xf32> to vector<8x8xf32>
    %46 = arith.addf %44, %45 : vector<8x8xf32>
    %cst_20 = arith.constant dense<0xFF800000> : vector<8xf32>
    %47 = vector.multi_reduction <maximumf>, %46, %cst_20 [1] : vector<8x8xf32> to vector<8xf32>
    %48 = vector.shape_cast %47 : vector<8xf32> to vector<8x1xf32>
    %49 = vector.broadcast %48 : vector<8x1xf32> to vector<8x8xf32>
    %50 = arith.subf %46, %49 : vector<8x8xf32>
    %51 = math.exp %50 : vector<8x8xf32>
    %cst_21 = arith.constant dense<0.000000e+00> : vector<8xf32>
    %52 = vector.multi_reduction <add>, %51, %cst_21 [1] : vector<8x8xf32> to vector<8xf32>
    %53 = vector.shape_cast %52 : vector<8xf32> to vector<8x1xf32>
    %54 = vector.broadcast %53 : vector<8x1xf32> to vector<8x8xf32>
    %55 = arith.divf %51, %54 : vector<8x8xf32>
    %cst_22 = arith.constant dense<0.000000e+00> : vector<8x8xf32>
    %56 = tpu.matmul %55, %41, %cst_22 {dimension_numbers = #tpu.dot_dimension_numbers<[1], [0], [0], [1], [0, 0, 1, 1], [], []>} : vector<8x8xf32>, vector<8x8xf32>, vector<8x8xf32> -> vector<8x8xf32>
    %57 = vector.extract_strided_slice %35 {offsets = [0, 8], sizes = [8, 8], strides = [1, 1]} : vector<16x32xf32> to vector<8x8xf32>
    %58 = vector.extract_strided_slice %36 {offsets = [0, 8], sizes = [8, 8], strides = [1, 1]} : vector<16x32xf32> to vector<8x8xf32>
    %59 = vector.extract_strided_slice %37 {offsets = [0, 8], sizes = [8, 8], strides = [1, 1]} : vector<16x32xf32> to vector<8x8xf32>
    %cst_23 = arith.constant dense<0.000000e+00> : vector<8x8xf32>
    %60 = tpu.matmul %57, %58, %cst_23 {dimension_numbers = #tpu.dot_dimension_numbers<[1], [1], [0], [0], [0, 0, 1, 0], [], []>} : vector<8x8xf32>, vector<8x8xf32>, vector<8x8xf32> -> vector<8x8xf32>
    %cst_24 = arith.constant 0.353553385 : f32
    %61 = vector.broadcast %cst_24 : f32 to vector<8x8xf32>
    %62 = arith.mulf %60, %61 : vector<8x8xf32>
    %63 = vector.broadcast %38 : vector<1x8xf32> to vector<8x8xf32>
    %64 = arith.addf %62, %63 : vector<8x8xf32>
    %cst_25 = arith.constant dense<0xFF800000> : vector<8xf32>
    %65 = vector.multi_reduction <maximumf>, %64, %cst_25 [1] : vector<8x8xf32> to vector<8xf32>
    %66 = vector.shape_cast %65 : vector<8xf32> to vector<8x1xf32>
    %67 = vector.broadcast %66 : vector<8x1xf32> to vector<8x8xf32>
    %68 = arith.subf %64, %67 : vector<8x8xf32>
    %69 = math.exp %68 : vector<8x8xf32>
    %cst_26 = arith.constant dense<0.000000e+00> : vector<8xf32>
    %70 = vector.multi_reduction <add>, %69, %cst_26 [1] : vector<8x8xf32> to vector<8xf32>
    %71 = vector.shape_cast %70 : vector<8xf32> to vector<8x1xf32>
    %72 = vector.broadcast %71 : vector<8x1xf32> to vector<8x8xf32>
    %73 = arith.divf %69, %72 : vector<8x8xf32>
    %cst_27 = arith.constant dense<0.000000e+00> : vector<8x8xf32>
    %74 = tpu.matmul %73, %59, %cst_27 {dimension_numbers = #tpu.dot_dimension_numbers<[1], [0], [0], [1], [0, 0, 1, 1], [], []>} : vector<8x8xf32>, vector<8x8xf32>, vector<8x8xf32> -> vector<8x8xf32>
    %75 = vector.extract_strided_slice %35 {offsets = [0, 16], sizes = [8, 8], strides = [1, 1]} : vector<16x32xf32> to vector<8x8xf32>
    %76 = vector.extract_strided_slice %36 {offsets = [0, 16], sizes = [8, 8], strides = [1, 1]} : vector<16x32xf32> to vector<8x8xf32>
    %77 = vector.extract_strided_slice %37 {offsets = [0, 16], sizes = [8, 8], strides = [1, 1]} : vector<16x32xf32> to vector<8x8xf32>
    %cst_28 = arith.constant dense<0.000000e+00> : vector<8x8xf32>
    %78 = tpu.matmul %75, %76, %cst_28 {dimension_numbers = #tpu.dot_dimension_numbers<[1], [1], [0], [0], [0, 0, 1, 0], [], []>} : vector<8x8xf32>, vector<8x8xf32>, vector<8x8xf32> -> vector<8x8xf32>
    %cst_29 = arith.constant 0.353553385 : f32
    %79 = vector.broadcast %cst_29 : f32 to vector<8x8xf32>
    %80 = arith.mulf %78, %79 : vector<8x8xf32>
    %81 = vector.broadcast %38 : vector<1x8xf32> to vector<8x8xf32>
    %82 = arith.addf %80, %81 : vector<8x8xf32>
    %cst_30 = arith.constant dense<0xFF800000> : vector<8xf32>
    %83 = vector.multi_reduction <maximumf>, %82, %cst_30 [1] : vector<8x8xf32> to vector<8xf32>
    %84 = vector.shape_cast %83 : vector<8xf32> to vector<8x1xf32>
    %85 = vector.broadcast %84 : vector<8x1xf32> to vector<8x8xf32>
    %86 = arith.subf %82, %85 : vector<8x8xf32>
    %87 = math.exp %86 : vector<8x8xf32>
    %cst_31 = arith.constant dense<0.000000e+00> : vector<8xf32>
    %88 = vector.multi_reduction <add>, %87, %cst_31 [1] : vector<8x8xf32> to vector<8xf32>
    %89 = vector.shape_cast %88 : vector<8xf32> to vector<8x1xf32>
    %90 = vector.broadcast %89 : vector<8x1xf32> to vector<8x8xf32>
    %91 = arith.divf %87, %90 : vector<8x8xf32>
    %cst_32 = arith.constant dense<0.000000e+00> : vector<8x8xf32>
    %92 = tpu.matmul %91, %77, %cst_32 {dimension_numbers = #tpu.dot_dimension_numbers<[1], [0], [0], [1], [0, 0, 1, 1], [], []>} : vector<8x8xf32>, vector<8x8xf32>, vector<8x8xf32> -> vector<8x8xf32>
    %93 = vector.extract_strided_slice %35 {offsets = [0, 24], sizes = [8, 8], strides = [1, 1]} : vector<16x32xf32> to vector<8x8xf32>
    %94 = vector.extract_strided_slice %36 {offsets = [0, 24], sizes = [8, 8], strides = [1, 1]} : vector<16x32xf32> to vector<8x8xf32>
    %95 = vector.extract_strided_slice %37 {offsets = [0, 24], sizes = [8, 8], strides = [1, 1]} : vector<16x32xf32> to vector<8x8xf32>
    %cst_33 = arith.constant dense<0.000000e+00> : vector<8x8xf32>
    %96 = tpu.matmul %93, %94, %cst_33 {dimension_numbers = #tpu.dot_dimension_numbers<[1], [1], [0], [0], [0, 0, 1, 0], [], []>} : vector<8x8xf32>, vector<8x8xf32>, vector<8x8xf32> -> vector<8x8xf32>
    %cst_34 = arith.constant 0.353553385 : f32
    %97 = vector.broadcast %cst_34 : f32 to vector<8x8xf32>
    %98 = arith.mulf %96, %97 : vector<8x8xf32>
    %99 = vector.broadcast %38 : vector<1x8xf32> to vector<8x8xf32>
    %100 = arith.addf %98, %99 : vector<8x8xf32>
    %cst_35 = arith.constant dense<0xFF800000> : vector<8xf32>
    %101 = vector.multi_reduction <maximumf>, %100, %cst_35 [1] : vector<8x8xf32> to vector<8xf32>
    %102 = vector.shape_cast %101 : vector<8xf32> to vector<8x1xf32>
    %103 = vector.broadcast %102 : vector<8x1xf32> to vector<8x8xf32>
    %104 = arith.subf %100, %103 : vector<8x8xf32>
    %105 = math.exp %104 : vector<8x8xf32>
    %cst_36 = arith.constant dense<0.000000e+00> : vector<8xf32>
    %106 = vector.multi_reduction <add>, %105, %cst_36 [1] : vector<8x8xf32> to vector<8xf32>
    %107 = vector.shape_cast %106 : vector<8xf32> to vector<8x1xf32>
    %108 = vector.broadcast %107 : vector<8x1xf32> to vector<8x8xf32>
    %109 = arith.divf %105, %108 : vector<8x8xf32>
    %cst_37 = arith.constant dense<0.000000e+00> : vector<8x8xf32>
    %110 = tpu.matmul %109, %95, %cst_37 {dimension_numbers = #tpu.dot_dimension_numbers<[1], [0], [0], [1], [0, 0, 1, 1], [], []>} : vector<8x8xf32>, vector<8x8xf32>, vector<8x8xf32> -> vector<8x8xf32>
    %111 = tpu.concatenate %56, %74, %92, %110 in 1 : vector<8x8xf32>, vector<8x8xf32>, vector<8x8xf32>, vector<8x8xf32> -> vector<8x32xf32>
    %112 = vector.extract_strided_slice %27 {offsets = [1, 0], sizes = [1, 8], strides = [1, 1]} : vector<2x8xf32> to vector<1x8xf32>
    %113 = vector.extract_strided_slice %35 {offsets = [8, 0], sizes = [8, 8], strides = [1, 1]} : vector<16x32xf32> to vector<8x8xf32>
    %114 = vector.extract_strided_slice %36 {offsets = [8, 0], sizes = [8, 8], strides = [1, 1]} : vector<16x32xf32> to vector<8x8xf32>
    %115 = vector.extract_strided_slice %37 {offsets = [8, 0], sizes = [8, 8], strides = [1, 1]} : vector<16x32xf32> to vector<8x8xf32>
    %cst_38 = arith.constant dense<0.000000e+00> : vector<8x8xf32>
    %116 = tpu.matmul %113, %114, %cst_38 {dimension_numbers = #tpu.dot_dimension_numbers<[1], [1], [0], [0], [0, 0, 1, 0], [], []>} : vector<8x8xf32>, vector<8x8xf32>, vector<8x8xf32> -> vector<8x8xf32>
    %cst_39 = arith.constant 0.353553385 : f32
    %117 = vector.broadcast %cst_39 : f32 to vector<8x8xf32>
    %118 = arith.mulf %116, %117 : vector<8x8xf32>
    %119 = vector.broadcast %112 : vector<1x8xf32> to vector<8x8xf32>
    %120 = arith.addf %118, %119 : vector<8x8xf32>
    %cst_40 = arith.constant dense<0xFF800000> : vector<8xf32>
    %121 = vector.multi_reduction <maximumf>, %120, %cst_40 [1] : vector<8x8xf32> to vector<8xf32>
    %122 = vector.shape_cast %121 : vector<8xf32> to vector<8x1xf32>
    %123 = vector.broadcast %122 : vector<8x1xf32> to vector<8x8xf32>
    %124 = arith.subf %120, %123 : vector<8x8xf32>
    %125 = math.exp %124 : vector<8x8xf32>
    %cst_41 = arith.constant dense<0.000000e+00> : vector<8xf32>
    %126 = vector.multi_reduction <add>, %125, %cst_41 [1] : vector<8x8xf32> to vector<8xf32>
    %127 = vector.shape_cast %126 : vector<8xf32> to vector<8x1xf32>
    %128 = vector.broadcast %127 : vector<8x1xf32> to vector<8x8xf32>
    %129 = arith.divf %125, %128 : vector<8x8xf32>
    %cst_42 = arith.constant dense<0.000000e+00> : vector<8x8xf32>
    %130 = tpu.matmul %129, %115, %cst_42 {dimension_numbers = #tpu.dot_dimension_numbers<[1], [0], [0], [1], [0, 0, 1, 1], [], []>} : vector<8x8xf32>, vector<8x8xf32>, vector<8x8xf32> -> vector<8x8xf32>
    %131 = vector.extract_strided_slice %35 {offsets = [8, 8], sizes = [8, 8], strides = [1, 1]} : vector<16x32xf32> to vector<8x8xf32>
    %132 = vector.extract_strided_slice %36 {offsets = [8, 8], sizes = [8, 8], strides = [1, 1]} : vector<16x32xf32> to vector<8x8xf32>
    %133 = vector.extract_strided_slice %37 {offsets = [8, 8], sizes = [8, 8], strides = [1, 1]} : vector<16x32xf32> to vector<8x8xf32>
    %cst_43 = arith.constant dense<0.000000e+00> : vector<8x8xf32>
    %134 = tpu.matmul %131, %132, %cst_43 {dimension_numbers = #tpu.dot_dimension_numbers<[1], [1], [0], [0], [0, 0, 1, 0], [], []>} : vector<8x8xf32>, vector<8x8xf32>, vector<8x8xf32> -> vector<8x8xf32>
    %cst_44 = arith.constant 0.353553385 : f32
    %135 = vector.broadcast %cst_44 : f32 to vector<8x8xf32>
    %136 = arith.mulf %134, %135 : vector<8x8xf32>
    %137 = vector.broadcast %112 : vector<1x8xf32> to vector<8x8xf32>
    %138 = arith.addf %136, %137 : vector<8x8xf32>
    %cst_45 = arith.constant dense<0xFF800000> : vector<8xf32>
    %139 = vector.multi_reduction <maximumf>, %138, %cst_45 [1] : vector<8x8xf32> to vector<8xf32>
    %140 = vector.shape_cast %139 : vector<8xf32> to vector<8x1xf32>
    %141 = vector.broadcast %140 : vector<8x1xf32> to vector<8x8xf32>
    %142 = arith.subf %138, %141 : vector<8x8xf32>
    %143 = math.exp %142 : vector<8x8xf32>
    %cst_46 = arith.constant dense<0.000000e+00> : vector<8xf32>
    %144 = vector.multi_reduction <add>, %143, %cst_46 [1] : vector<8x8xf32> to vector<8xf32>
    %145 = vector.shape_cast %144 : vector<8xf32> to vector<8x1xf32>
    %146 = vector.broadcast %145 : vector<8x1xf32> to vector<8x8xf32>
    %147 = arith.divf %143, %146 : vector<8x8xf32>
    %cst_47 = arith.constant dense<0.000000e+00> : vector<8x8xf32>
    %148 = tpu.matmul %147, %133, %cst_47 {dimension_numbers = #tpu.dot_dimension_numbers<[1], [0], [0], [1], [0, 0, 1, 1], [], []>} : vector<8x8xf32>, vector<8x8xf32>, vector<8x8xf32> -> vector<8x8xf32>
    %149 = vector.extract_strided_slice %35 {offsets = [8, 16], sizes = [8, 8], strides = [1, 1]} : vector<16x32xf32> to vector<8x8xf32>
    %150 = vector.extract_strided_slice %36 {offsets = [8, 16], sizes = [8, 8], strides = [1, 1]} : vector<16x32xf32> to vector<8x8xf32>
    %151 = vector.extract_strided_slice %37 {offsets = [8, 16], sizes = [8, 8], strides = [1, 1]} : vector<16x32xf32> to vector<8x8xf32>
    %cst_48 = arith.constant dense<0.000000e+00> : vector<8x8xf32>
    %152 = tpu.matmul %149, %150, %cst_48 {dimension_numbers = #tpu.dot_dimension_numbers<[1], [1], [0], [0], [0, 0, 1, 0], [], []>} : vector<8x8xf32>, vector<8x8xf32>, vector<8x8xf32> -> vector<8x8xf32>
    %cst_49 = arith.constant 0.353553385 : f32
    %153 = vector.broadcast %cst_49 : f32 to vector<8x8xf32>
    %154 = arith.mulf %152, %153 : vector<8x8xf32>
    %155 = vector.broadcast %112 : vector<1x8xf32> to vector<8x8xf32>
    %156 = arith.addf %154, %155 : vector<8x8xf32>
    %cst_50 = arith.constant dense<0xFF800000> : vector<8xf32>
    %157 = vector.multi_reduction <maximumf>, %156, %cst_50 [1] : vector<8x8xf32> to vector<8xf32>
    %158 = vector.shape_cast %157 : vector<8xf32> to vector<8x1xf32>
    %159 = vector.broadcast %158 : vector<8x1xf32> to vector<8x8xf32>
    %160 = arith.subf %156, %159 : vector<8x8xf32>
    %161 = math.exp %160 : vector<8x8xf32>
    %cst_51 = arith.constant dense<0.000000e+00> : vector<8xf32>
    %162 = vector.multi_reduction <add>, %161, %cst_51 [1] : vector<8x8xf32> to vector<8xf32>
    %163 = vector.shape_cast %162 : vector<8xf32> to vector<8x1xf32>
    %164 = vector.broadcast %163 : vector<8x1xf32> to vector<8x8xf32>
    %165 = arith.divf %161, %164 : vector<8x8xf32>
    %cst_52 = arith.constant dense<0.000000e+00> : vector<8x8xf32>
    %166 = tpu.matmul %165, %151, %cst_52 {dimension_numbers = #tpu.dot_dimension_numbers<[1], [0], [0], [1], [0, 0, 1, 1], [], []>} : vector<8x8xf32>, vector<8x8xf32>, vector<8x8xf32> -> vector<8x8xf32>
    %167 = vector.extract_strided_slice %35 {offsets = [8, 24], sizes = [8, 8], strides = [1, 1]} : vector<16x32xf32> to vector<8x8xf32>
    %168 = vector.extract_strided_slice %36 {offsets = [8, 24], sizes = [8, 8], strides = [1, 1]} : vector<16x32xf32> to vector<8x8xf32>
    %169 = vector.extract_strided_slice %37 {offsets = [8, 24], sizes = [8, 8], strides = [1, 1]} : vector<16x32xf32> to vector<8x8xf32>
    %cst_53 = arith.constant dense<0.000000e+00> : vector<8x8xf32>
    %170 = tpu.matmul %167, %168, %cst_53 {dimension_numbers = #tpu.dot_dimension_numbers<[1], [1], [0], [0], [0, 0, 1, 0], [], []>} : vector<8x8xf32>, vector<8x8xf32>, vector<8x8xf32> -> vector<8x8xf32>
    %cst_54 = arith.constant 0.353553385 : f32
    %171 = vector.broadcast %cst_54 : f32 to vector<8x8xf32>
    %172 = arith.mulf %170, %171 : vector<8x8xf32>
    %173 = vector.broadcast %112 : vector<1x8xf32> to vector<8x8xf32>
    %174 = arith.addf %172, %173 : vector<8x8xf32>
    %cst_55 = arith.constant dense<0xFF800000> : vector<8xf32>
    %175 = vector.multi_reduction <maximumf>, %174, %cst_55 [1] : vector<8x8xf32> to vector<8xf32>
    %176 = vector.shape_cast %175 : vector<8xf32> to vector<8x1xf32>
    %177 = vector.broadcast %176 : vector<8x1xf32> to vector<8x8xf32>
    %178 = arith.subf %174, %177 : vector<8x8xf32>
    %179 = math.exp %178 : vector<8x8xf32>
    %cst_56 = arith.constant dense<0.000000e+00> : vector<8xf32>
    %180 = vector.multi_reduction <add>, %179, %cst_56 [1] : vector<8x8xf32> to vector<8xf32>
    %181 = vector.shape_cast %180 : vector<8xf32> to vector<8x1xf32>
    %182 = vector.broadcast %181 : vector<8x1xf32> to vector<8x8xf32>
    %183 = arith.divf %179, %182 : vector<8x8xf32>
    %cst_57 = arith.constant dense<0.000000e+00> : vector<8x8xf32>
    %184 = tpu.matmul %183, %169, %cst_57 {dimension_numbers = #tpu.dot_dimension_numbers<[1], [0], [0], [1], [0, 0, 1, 1], [], []>} : vector<8x8xf32>, vector<8x8xf32>, vector<8x8xf32> -> vector<8x8xf32>
    %185 = tpu.concatenate %130, %148, %166, %184 in 1 : vector<8x8xf32>, vector<8x8xf32>, vector<8x8xf32>, vector<8x8xf32> -> vector<8x32xf32>
    %186 = tpu.concatenate %111, %185 in 0 : vector<8x32xf32>, vector<8x32xf32> -> vector<16x32xf32>
    %c0_58 = arith.constant 0 : index
    %c0_59 = arith.constant 0 : index
    %c0_60 = arith.constant 0 : index
    %187 = vector.load %arg6[%c0_58, %c0_59, %c0_60] : memref<2x32x32xf32, #tpu.memory_space<vmem>>, vector<1x32x32xf32>
    %188 = vector.shape_cast %187 : vector<1x32x32xf32> to vector<32x32xf32>
    %cst_61 = arith.constant dense<0.000000e+00> : vector<16x32xf32>
    %189 = tpu.matmul %186, %188, %cst_61 {dimension_numbers = #tpu.dot_dimension_numbers<[1], [0], [0], [1], [0, 0, 1, 1], [], []>} : vector<16x32xf32>, vector<32x32xf32>, vector<16x32xf32> -> vector<16x32xf32>
    %c0_62 = arith.constant 0 : index
    %c0_63 = arith.constant 0 : index
    %c0_64 = arith.constant 0 : index
    %190 = vector.load %arg7[%c0_62, %c0_63, %c0_64] : memref<2x1x32xf32, #tpu.memory_space<vmem>>, vector<1x1x32xf32>
    %191 = vector.shape_cast %190 : vector<1x1x32xf32> to vector<1x32xf32>
    %192 = vector.broadcast %191 : vector<1x32xf32> to vector<16x32xf32>
    %193 = arith.addf %189, %192 : vector<16x32xf32>
    %194 = arith.addf %193, %26 : vector<16x32xf32>
    %c0_65 = arith.constant 0 : index
    %c0_66 = arith.constant 0 : index
    %c0_67 = arith.constant 0 : index
    %195 = vector.load %arg8[%c0_65, %c0_66, %c0_67] : memref<2x1x32xf32, #tpu.memory_space<vmem>>, vector<1x1x32xf32>
    %196 = vector.shape_cast %195 : vector<1x1x32xf32> to vector<1x32xf32>
    %c0_68 = arith.constant 0 : index
    %c0_69 = arith.constant 0 : index
    %c0_70 = arith.constant 0 : index
    %197 = vector.load %arg9[%c0_68, %c0_69, %c0_70] : memref<2x1x32xf32, #tpu.memory_space<vmem>>, vector<1x1x32xf32>
    %198 = vector.shape_cast %197 : vector<1x1x32xf32> to vector<1x32xf32>
    %cst_71 = arith.constant dense<0.000000e+00> : vector<16xf32>
    %199 = vector.multi_reduction <add>, %194, %cst_71 [1] : vector<16x32xf32> to vector<16xf32>
    %200 = vector.shape_cast %199 : vector<16xf32> to vector<16x1xf32>
    %cst_72 = arith.constant 3.200000e+01 : f32
    %201 = vector.broadcast %cst_72 : f32 to vector<16x1xf32>
    %202 = arith.divf %200, %201 : vector<16x1xf32>
    %203 = vector.broadcast %202 : vector<16x1xf32> to vector<16x32xf32>
    %204 = arith.subf %194, %203 : vector<16x32xf32>
    %205 = vector.broadcast %202 : vector<16x1xf32> to vector<16x32xf32>
    %206 = arith.subf %194, %205 : vector<16x32xf32>
    %207 = arith.mulf %204, %206 : vector<16x32xf32>
    %cst_73 = arith.constant dense<0.000000e+00> : vector<16xf32>
    %208 = vector.multi_reduction <add>, %207, %cst_73 [1] : vector<16x32xf32> to vector<16xf32>
    %209 = vector.shape_cast %208 : vector<16xf32> to vector<16x1xf32>
    %cst_74 = arith.constant 3.200000e+01 : f32
    %210 = vector.broadcast %cst_74 : f32 to vector<16x1xf32>
    %211 = arith.divf %209, %210 : vector<16x1xf32>
    %212 = vector.broadcast %202 : vector<16x1xf32> to vector<16x32xf32>
    %213 = arith.subf %194, %212 : vector<16x32xf32>
    %cst_75 = arith.constant 9.99999996E-13 : f32
    %214 = vector.broadcast %cst_75 : f32 to vector<16x1xf32>
    %215 = arith.addf %211, %214 : vector<16x1xf32>
    %216 = math.rsqrt %215 : vector<16x1xf32>
    %217 = vector.broadcast %216 : vector<16x1xf32> to vector<16x32xf32>
    %218 = arith.mulf %213, %217 : vector<16x32xf32>
    %219 = vector.broadcast %196 : vector<1x32xf32> to vector<16x32xf32>
    %220 = arith.mulf %218, %219 : vector<16x32xf32>
    %221 = vector.broadcast %198 : vector<1x32xf32> to vector<16x32xf32>
    %222 = arith.addf %220, %221 : vector<16x32xf32>
    %c0_76 = arith.constant 0 : index
    %c0_77 = arith.constant 0 : index
    %c0_78 = arith.constant 0 : index
    %223 = vector.load %arg10[%c0_76, %c0_77, %c0_78] : memref<2x32x64xf32, #tpu.memory_space<vmem>>, vector<1x32x64xf32>
    %224 = vector.shape_cast %223 : vector<1x32x64xf32> to vector<32x64xf32>
    %cst_79 = arith.constant dense<0.000000e+00> : vector<16x64xf32>
    %225 = tpu.matmul %222, %224, %cst_79 {dimension_numbers = #tpu.dot_dimension_numbers<[1], [0], [0], [1], [0, 0, 1, 1], [], []>} : vector<16x32xf32>, vector<32x64xf32>, vector<16x64xf32> -> vector<16x64xf32>
    %c0_80 = arith.constant 0 : index
    %c0_81 = arith.constant 0 : index
    %c0_82 = arith.constant 0 : index
    %226 = vector.load %arg11[%c0_80, %c0_81, %c0_82] : memref<2x1x64xf32, #tpu.memory_space<vmem>>, vector<1x1x64xf32>
    %227 = vector.shape_cast %226 : vector<1x1x64xf32> to vector<1x64xf32>
    %228 = vector.broadcast %227 : vector<1x64xf32> to vector<16x64xf32>
    %229 = arith.addf %225, %228 : vector<16x64xf32>
    %cst_83 = arith.constant 5.000000e-01 : f32
    %230 = vector.broadcast %cst_83 : f32 to vector<16x64xf32>
    %231 = arith.mulf %230, %229 : vector<16x64xf32>
    %cst_84 = arith.constant 4.471500e-02 : f32
    %232 = vector.broadcast %cst_84 : f32 to vector<16x64xf32>
    %233 = arith.mulf %232, %229 : vector<16x64xf32>
    %234 = arith.mulf %233, %229 : vector<16x64xf32>
    %235 = arith.mulf %234, %229 : vector<16x64xf32>
    %236 = arith.addf %229, %235 : vector<16x64xf32>
    %cst_85 = arith.constant 0.797884583 : f32
    %237 = vector.broadcast %cst_85 : f32 to vector<16x64xf32>
    %238 = arith.mulf %237, %236 : vector<16x64xf32>
    %239 = math.tanh %238 : vector<16x64xf32>
    %cst_86 = arith.constant 1.000000e+00 : f32
    %240 = vector.broadcast %cst_86 : f32 to vector<16x64xf32>
    %241 = arith.addf %240, %239 : vector<16x64xf32>
    %242 = arith.mulf %231, %241 : vector<16x64xf32>
    %c0_87 = arith.constant 0 : index
    %c0_88 = arith.constant 0 : index
    %c0_89 = arith.constant 0 : index
    %243 = vector.load %arg12[%c0_87, %c0_88, %c0_89] : memref<2x64x32xf32, #tpu.memory_space<vmem>>, vector<1x64x32xf32>
    %244 = vector.shape_cast %243 : vector<1x64x32xf32> to vector<64x32xf32>
    %cst_90 = arith.constant dense<0.000000e+00> : vector<16x32xf32>
    %245 = tpu.matmul %242, %244, %cst_90 {dimension_numbers = #tpu.dot_dimension_numbers<[1], [0], [0], [1], [0, 0, 1, 1], [], []>} : vector<16x64xf32>, vector<64x32xf32>, vector<16x32xf32> -> vector<16x32xf32>
    %c0_91 = arith.constant 0 : index
    %c0_92 = arith.constant 0 : index
    %c0_93 = arith.constant 0 : index
    %246 = vector.load %arg13[%c0_91, %c0_92, %c0_93] : memref<2x1x32xf32, #tpu.memory_space<vmem>>, vector<1x1x32xf32>
    %247 = vector.shape_cast %246 : vector<1x1x32xf32> to vector<1x32xf32>
    %248 = vector.broadcast %247 : vector<1x32xf32> to vector<16x32xf32>
    %249 = arith.addf %245, %248 : vector<16x32xf32>
    %250 = arith.addf %249, %222 : vector<16x32xf32>
    %c0_94 = arith.constant 0 : index
    %c0_95 = arith.constant 0 : index
    %c0_96 = arith.constant 0 : index
    %251 = vector.load %arg14[%c0_94, %c0_95, %c0_96] : memref<2x1x32xf32, #tpu.memory_space<vmem>>, vector<1x1x32xf32>
    %252 = vector.shape_cast %251 : vector<1x1x32xf32> to vector<1x32xf32>
    %c0_97 = arith.constant 0 : index
    %c0_98 = arith.constant 0 : index
    %c0_99 = arith.constant 0 : index
    %253 = vector.load %arg15[%c0_97, %c0_98, %c0_99] : memref<2x1x32xf32, #tpu.memory_space<vmem>>, vector<1x1x32xf32>
    %254 = vector.shape_cast %253 : vector<1x1x32xf32> to vector<1x32xf32>
    %cst_100 = arith.constant dense<0.000000e+00> : vector<16xf32>
    %255 = vector.multi_reduction <add>, %250, %cst_100 [1] : vector<16x32xf32> to vector<16xf32>
    %256 = vector.shape_cast %255 : vector<16xf32> to vector<16x1xf32>
    %cst_101 = arith.constant 3.200000e+01 : f32
    %257 = vector.broadcast %cst_101 : f32 to vector<16x1xf32>
    %258 = arith.divf %256, %257 : vector<16x1xf32>
    %259 = vector.broadcast %258 : vector<16x1xf32> to vector<16x32xf32>
    %260 = arith.subf %250, %259 : vector<16x32xf32>
    %261 = vector.broadcast %258 : vector<16x1xf32> to vector<16x32xf32>
    %262 = arith.subf %250, %261 : vector<16x32xf32>
    %263 = arith.mulf %260, %262 : vector<16x32xf32>
    %cst_102 = arith.constant dense<0.000000e+00> : vector<16xf32>
    %264 = vector.multi_reduction <add>, %263, %cst_102 [1] : vector<16x32xf32> to vector<16xf32>
    %265 = vector.shape_cast %264 : vector<16xf32> to vector<16x1xf32>
    %cst_103 = arith.constant 3.200000e+01 : f32
    %266 = vector.broadcast %cst_103 : f32 to vector<16x1xf32>
    %267 = arith.divf %265, %266 : vector<16x1xf32>
    %268 = vector.broadcast %258 : vector<16x1xf32> to vector<16x32xf32>
    %269 = arith.subf %250, %268 : vector<16x32xf32>
    %cst_104 = arith.constant 9.99999996E-13 : f32
    %270 = vector.broadcast %cst_104 : f32 to vector<16x1xf32>
    %271 = arith.addf %267, %270 : vector<16x1xf32>
    %272 = math.rsqrt %271 : vector<16x1xf32>
    %273 = vector.broadcast %272 : vector<16x1xf32> to vector<16x32xf32>
    %274 = arith.mulf %269, %273 : vector<16x32xf32>
    %275 = vector.broadcast %252 : vector<1x32xf32> to vector<16x32xf32>
    %276 = arith.mulf %274, %275 : vector<16x32xf32>
    %277 = vector.broadcast %254 : vector<1x32xf32> to vector<16x32xf32>
    %278 = arith.addf %276, %277 : vector<16x32xf32>
    %c1 = arith.constant 1 : index
    %c0_105 = arith.constant 0 : index
    %c0_106 = arith.constant 0 : index
    %279 = vector.load %arg4[%c1, %c0_105, %c0_106] : memref<2x32x96xf32, #tpu.memory_space<vmem>>, vector<1x32x96xf32>
    %280 = vector.shape_cast %279 : vector<1x32x96xf32> to vector<32x96xf32>
    %cst_107 = arith.constant dense<0.000000e+00> : vector<16x96xf32>
    %281 = tpu.matmul %278, %280, %cst_107 {dimension_numbers = #tpu.dot_dimension_numbers<[1], [0], [0], [1], [0, 0, 1, 1], [], []>} : vector<16x32xf32>, vector<32x96xf32>, vector<16x96xf32> -> vector<16x96xf32>
    %c1_108 = arith.constant 1 : index
    %c0_109 = arith.constant 0 : index
    %c0_110 = arith.constant 0 : index
    %282 = vector.load %arg5[%c1_108, %c0_109, %c0_110] : memref<2x1x96xf32, #tpu.memory_space<vmem>>, vector<1x1x96xf32>
    %283 = vector.shape_cast %282 : vector<1x1x96xf32> to vector<1x96xf32>
    %284 = vector.broadcast %283 : vector<1x96xf32> to vector<16x96xf32>
    %285 = arith.addf %281, %284 : vector<16x96xf32>
    %286 = vector.extract_strided_slice %285 {offsets = [0, 0], sizes = [16, 32], strides = [1, 1]} : vector<16x96xf32> to vector<16x32xf32>
    %287 = vector.extract_strided_slice %285 {offsets = [0, 32], sizes = [16, 32], strides = [1, 1]} : vector<16x96xf32> to vector<16x32xf32>
    %288 = vector.extract_strided_slice %285 {offsets = [0, 64], sizes = [16, 32], strides = [1, 1]} : vector<16x96xf32> to vector<16x32xf32>
    %289 = vector.extract_strided_slice %27 {offsets = [0, 0], sizes = [1, 8], strides = [1, 1]} : vector<2x8xf32> to vector<1x8xf32>
    %290 = vector.extract_strided_slice %286 {offsets = [0, 0], sizes = [8, 8], strides = [1, 1]} : vector<16x32xf32> to vector<8x8xf32>
    %291 = vector.extract_strided_slice %287 {offsets = [0, 0], sizes = [8, 8], strides = [1, 1]} : vector<16x32xf32> to vector<8x8xf32>
    %292 = vector.extract_strided_slice %288 {offsets = [0, 0], sizes = [8, 8], strides = [1, 1]} : vector<16x32xf32> to vector<8x8xf32>
    %cst_111 = arith.constant dense<0.000000e+00> : vector<8x8xf32>
    %293 = tpu.matmul %290, %291, %cst_111 {dimension_numbers = #tpu.dot_dimension_numbers<[1], [1], [0], [0], [0, 0, 1, 0], [], []>} : vector<8x8xf32>, vector<8x8xf32>, vector<8x8xf32> -> vector<8x8xf32>
    %cst_112 = arith.constant 0.353553385 : f32
    %294 = vector.broadcast %cst_112 : f32 to vector<8x8xf32>
    %295 = arith.mulf %293, %294 : vector<8x8xf32>
    %296 = vector.broadcast %289 : vector<1x8xf32> to vector<8x8xf32>
    %297 = arith.addf %295, %296 : vector<8x8xf32>
    %cst_113 = arith.constant dense<0xFF800000> : vector<8xf32>
    %298 = vector.multi_reduction <maximumf>, %297, %cst_113 [1] : vector<8x8xf32> to vector<8xf32>
    %299 = vector.shape_cast %298 : vector<8xf32> to vector<8x1xf32>
    %300 = vector.broadcast %299 : vector<8x1xf32> to vector<8x8xf32>
    %301 = arith.subf %297, %300 : vector<8x8xf32>
    %302 = math.exp %301 : vector<8x8xf32>
    %cst_114 = arith.constant dense<0.000000e+00> : vector<8xf32>
    %303 = vector.multi_reduction <add>, %302, %cst_114 [1] : vector<8x8xf32> to vector<8xf32>
    %304 = vector.shape_cast %303 : vector<8xf32> to vector<8x1xf32>
    %305 = vector.broadcast %304 : vector<8x1xf32> to vector<8x8xf32>
    %306 = arith.divf %302, %305 : vector<8x8xf32>
    %cst_115 = arith.constant dense<0.000000e+00> : vector<8x8xf32>
    %307 = tpu.matmul %306, %292, %cst_115 {dimension_numbers = #tpu.dot_dimension_numbers<[1], [0], [0], [1], [0, 0, 1, 1], [], []>} : vector<8x8xf32>, vector<8x8xf32>, vector<8x8xf32> -> vector<8x8xf32>
    %308 = vector.extract_strided_slice %286 {offsets = [0, 8], sizes = [8, 8], strides = [1, 1]} : vector<16x32xf32> to vector<8x8xf32>
    %309 = vector.extract_strided_slice %287 {offsets = [0, 8], sizes = [8, 8], strides = [1, 1]} : vector<16x32xf32> to vector<8x8xf32>
    %310 = vector.extract_strided_slice %288 {offsets = [0, 8], sizes = [8, 8], strides = [1, 1]} : vector<16x32xf32> to vector<8x8xf32>
    %cst_116 = arith.constant dense<0.000000e+00> : vector<8x8xf32>
    %311 = tpu.matmul %308, %309, %cst_116 {dimension_numbers = #tpu.dot_dimension_numbers<[1], [1], [0], [0], [0, 0, 1, 0], [], []>} : vector<8x8xf32>, vector<8x8xf32>, vector<8x8xf32> -> vector<8x8xf32>
    %cst_117 = arith.constant 0.353553385 : f32
    %312 = vector.broadcast %cst_117 : f32 to vector<8x8xf32>
    %313 = arith.mulf %311, %312 : vector<8x8xf32>
    %314 = vector.broadcast %289 : vector<1x8xf32> to vector<8x8xf32>
    %315 = arith.addf %313, %314 : vector<8x8xf32>
    %cst_118 = arith.constant dense<0xFF800000> : vector<8xf32>
    %316 = vector.multi_reduction <maximumf>, %315, %cst_118 [1] : vector<8x8xf32> to vector<8xf32>
    %317 = vector.shape_cast %316 : vector<8xf32> to vector<8x1xf32>
    %318 = vector.broadcast %317 : vector<8x1xf32> to vector<8x8xf32>
    %319 = arith.subf %315, %318 : vector<8x8xf32>
    %320 = math.exp %319 : vector<8x8xf32>
    %cst_119 = arith.constant dense<0.000000e+00> : vector<8xf32>
    %321 = vector.multi_reduction <add>, %320, %cst_119 [1] : vector<8x8xf32> to vector<8xf32>
    %322 = vector.shape_cast %321 : vector<8xf32> to vector<8x1xf32>
    %323 = vector.broadcast %322 : vector<8x1xf32> to vector<8x8xf32>
    %324 = arith.divf %320, %323 : vector<8x8xf32>
    %cst_120 = arith.constant dense<0.000000e+00> : vector<8x8xf32>
    %325 = tpu.matmul %324, %310, %cst_120 {dimension_numbers = #tpu.dot_dimension_numbers<[1], [0], [0], [1], [0, 0, 1, 1], [], []>} : vector<8x8xf32>, vector<8x8xf32>, vector<8x8xf32> -> vector<8x8xf32>
    %326 = vector.extract_strided_slice %286 {offsets = [0, 16], sizes = [8, 8], strides = [1, 1]} : vector<16x32xf32> to vector<8x8xf32>
    %327 = vector.extract_strided_slice %287 {offsets = [0, 16], sizes = [8, 8], strides = [1, 1]} : vector<16x32xf32> to vector<8x8xf32>
    %328 = vector.extract_strided_slice %288 {offsets = [0, 16], sizes = [8, 8], strides = [1, 1]} : vector<16x32xf32> to vector<8x8xf32>
    %cst_121 = arith.constant dense<0.000000e+00> : vector<8x8xf32>
    %329 = tpu.matmul %326, %327, %cst_121 {dimension_numbers = #tpu.dot_dimension_numbers<[1], [1], [0], [0], [0, 0, 1, 0], [], []>} : vector<8x8xf32>, vector<8x8xf32>, vector<8x8xf32> -> vector<8x8xf32>
    %cst_122 = arith.constant 0.353553385 : f32
    %330 = vector.broadcast %cst_122 : f32 to vector<8x8xf32>
    %331 = arith.mulf %329, %330 : vector<8x8xf32>
    %332 = vector.broadcast %289 : vector<1x8xf32> to vector<8x8xf32>
    %333 = arith.addf %331, %332 : vector<8x8xf32>
    %cst_123 = arith.constant dense<0xFF800000> : vector<8xf32>
    %334 = vector.multi_reduction <maximumf>, %333, %cst_123 [1] : vector<8x8xf32> to vector<8xf32>
    %335 = vector.shape_cast %334 : vector<8xf32> to vector<8x1xf32>
    %336 = vector.broadcast %335 : vector<8x1xf32> to vector<8x8xf32>
    %337 = arith.subf %333, %336 : vector<8x8xf32>
    %338 = math.exp %337 : vector<8x8xf32>
    %cst_124 = arith.constant dense<0.000000e+00> : vector<8xf32>
    %339 = vector.multi_reduction <add>, %338, %cst_124 [1] : vector<8x8xf32> to vector<8xf32>
    %340 = vector.shape_cast %339 : vector<8xf32> to vector<8x1xf32>
    %341 = vector.broadcast %340 : vector<8x1xf32> to vector<8x8xf32>
    %342 = arith.divf %338, %341 : vector<8x8xf32>
    %cst_125 = arith.constant dense<0.000000e+00> : vector<8x8xf32>
    %343 = tpu.matmul %342, %328, %cst_125 {dimension_numbers = #tpu.dot_dimension_numbers<[1], [0], [0], [1], [0, 0, 1, 1], [], []>} : vector<8x8xf32>, vector<8x8xf32>, vector<8x8xf32> -> vector<8x8xf32>
    %344 = vector.extract_strided_slice %286 {offsets = [0, 24], sizes = [8, 8], strides = [1, 1]} : vector<16x32xf32> to vector<8x8xf32>
    %345 = vector.extract_strided_slice %287 {offsets = [0, 24], sizes = [8, 8], strides = [1, 1]} : vector<16x32xf32> to vector<8x8xf32>
    %346 = vector.extract_strided_slice %288 {offsets = [0, 24], sizes = [8, 8], strides = [1, 1]} : vector<16x32xf32> to vector<8x8xf32>
    %cst_126 = arith.constant dense<0.000000e+00> : vector<8x8xf32>
    %347 = tpu.matmul %344, %345, %cst_126 {dimension_numbers = #tpu.dot_dimension_numbers<[1], [1], [0], [0], [0, 0, 1, 0], [], []>} : vector<8x8xf32>, vector<8x8xf32>, vector<8x8xf32> -> vector<8x8xf32>
    %cst_127 = arith.constant 0.353553385 : f32
    %348 = vector.broadcast %cst_127 : f32 to vector<8x8xf32>
    %349 = arith.mulf %347, %348 : vector<8x8xf32>
    %350 = vector.broadcast %289 : vector<1x8xf32> to vector<8x8xf32>
    %351 = arith.addf %349, %350 : vector<8x8xf32>
    %cst_128 = arith.constant dense<0xFF800000> : vector<8xf32>
    %352 = vector.multi_reduction <maximumf>, %351, %cst_128 [1] : vector<8x8xf32> to vector<8xf32>
    %353 = vector.shape_cast %352 : vector<8xf32> to vector<8x1xf32>
    %354 = vector.broadcast %353 : vector<8x1xf32> to vector<8x8xf32>
    %355 = arith.subf %351, %354 : vector<8x8xf32>
    %356 = math.exp %355 : vector<8x8xf32>
    %cst_129 = arith.constant dense<0.000000e+00> : vector<8xf32>
    %357 = vector.multi_reduction <add>, %356, %cst_129 [1] : vector<8x8xf32> to vector<8xf32>
    %358 = vector.shape_cast %357 : vector<8xf32> to vector<8x1xf32>
    %359 = vector.broadcast %358 : vector<8x1xf32> to vector<8x8xf32>
    %360 = arith.divf %356, %359 : vector<8x8xf32>
    %cst_130 = arith.constant dense<0.000000e+00> : vector<8x8xf32>
    %361 = tpu.matmul %360, %346, %cst_130 {dimension_numbers = #tpu.dot_dimension_numbers<[1], [0], [0], [1], [0, 0, 1, 1], [], []>} : vector<8x8xf32>, vector<8x8xf32>, vector<8x8xf32> -> vector<8x8xf32>
    %362 = tpu.concatenate %307, %325, %343, %361 in 1 : vector<8x8xf32>, vector<8x8xf32>, vector<8x8xf32>, vector<8x8xf32> -> vector<8x32xf32>
    %363 = vector.extract_strided_slice %27 {offsets = [1, 0], sizes = [1, 8], strides = [1, 1]} : vector<2x8xf32> to vector<1x8xf32>
    %364 = vector.extract_strided_slice %286 {offsets = [8, 0], sizes = [8, 8], strides = [1, 1]} : vector<16x32xf32> to vector<8x8xf32>
    %365 = vector.extract_strided_slice %287 {offsets = [8, 0], sizes = [8, 8], strides = [1, 1]} : vector<16x32xf32> to vector<8x8xf32>
    %366 = vector.extract_strided_slice %288 {offsets = [8, 0], sizes = [8, 8], strides = [1, 1]} : vector<16x32xf32> to vector<8x8xf32>
    %cst_131 = arith.constant dense<0.000000e+00> : vector<8x8xf32>
    %367 = tpu.matmul %364, %365, %cst_131 {dimension_numbers = #tpu.dot_dimension_numbers<[1], [1], [0], [0], [0, 0, 1, 0], [], []>} : vector<8x8xf32>, vector<8x8xf32>, vector<8x8xf32> -> vector<8x8xf32>
    %cst_132 = arith.constant 0.353553385 : f32
    %368 = vector.broadcast %cst_132 : f32 to vector<8x8xf32>
    %369 = arith.mulf %367, %368 : vector<8x8xf32>
    %370 = vector.broadcast %363 : vector<1x8xf32> to vector<8x8xf32>
    %371 = arith.addf %369, %370 : vector<8x8xf32>
    %cst_133 = arith.constant dense<0xFF800000> : vector<8xf32>
    %372 = vector.multi_reduction <maximumf>, %371, %cst_133 [1] : vector<8x8xf32> to vector<8xf32>
    %373 = vector.shape_cast %372 : vector<8xf32> to vector<8x1xf32>
    %374 = vector.broadcast %373 : vector<8x1xf32> to vector<8x8xf32>
    %375 = arith.subf %371, %374 : vector<8x8xf32>
    %376 = math.exp %375 : vector<8x8xf32>
    %cst_134 = arith.constant dense<0.000000e+00> : vector<8xf32>
    %377 = vector.multi_reduction <add>, %376, %cst_134 [1] : vector<8x8xf32> to vector<8xf32>
    %378 = vector.shape_cast %377 : vector<8xf32> to vector<8x1xf32>
    %379 = vector.broadcast %378 : vector<8x1xf32> to vector<8x8xf32>
    %380 = arith.divf %376, %379 : vector<8x8xf32>
    %cst_135 = arith.constant dense<0.000000e+00> : vector<8x8xf32>
    %381 = tpu.matmul %380, %366, %cst_135 {dimension_numbers = #tpu.dot_dimension_numbers<[1], [0], [0], [1], [0, 0, 1, 1], [], []>} : vector<8x8xf32>, vector<8x8xf32>, vector<8x8xf32> -> vector<8x8xf32>
    %382 = vector.extract_strided_slice %286 {offsets = [8, 8], sizes = [8, 8], strides = [1, 1]} : vector<16x32xf32> to vector<8x8xf32>
    %383 = vector.extract_strided_slice %287 {offsets = [8, 8], sizes = [8, 8], strides = [1, 1]} : vector<16x32xf32> to vector<8x8xf32>
    %384 = vector.extract_strided_slice %288 {offsets = [8, 8], sizes = [8, 8], strides = [1, 1]} : vector<16x32xf32> to vector<8x8xf32>
    %cst_136 = arith.constant dense<0.000000e+00> : vector<8x8xf32>
    %385 = tpu.matmul %382, %383, %cst_136 {dimension_numbers = #tpu.dot_dimension_numbers<[1], [1], [0], [0], [0, 0, 1, 0], [], []>} : vector<8x8xf32>, vector<8x8xf32>, vector<8x8xf32> -> vector<8x8xf32>
    %cst_137 = arith.constant 0.353553385 : f32
    %386 = vector.broadcast %cst_137 : f32 to vector<8x8xf32>
    %387 = arith.mulf %385, %386 : vector<8x8xf32>
    %388 = vector.broadcast %363 : vector<1x8xf32> to vector<8x8xf32>
    %389 = arith.addf %387, %388 : vector<8x8xf32>
    %cst_138 = arith.constant dense<0xFF800000> : vector<8xf32>
    %390 = vector.multi_reduction <maximumf>, %389, %cst_138 [1] : vector<8x8xf32> to vector<8xf32>
    %391 = vector.shape_cast %390 : vector<8xf32> to vector<8x1xf32>
    %392 = vector.broadcast %391 : vector<8x1xf32> to vector<8x8xf32>
    %393 = arith.subf %389, %392 : vector<8x8xf32>
    %394 = math.exp %393 : vector<8x8xf32>
    %cst_139 = arith.constant dense<0.000000e+00> : vector<8xf32>
    %395 = vector.multi_reduction <add>, %394, %cst_139 [1] : vector<8x8xf32> to vector<8xf32>
    %396 = vector.shape_cast %395 : vector<8xf32> to vector<8x1xf32>
    %397 = vector.broadcast %396 : vector<8x1xf32> to vector<8x8xf32>
    %398 = arith.divf %394, %397 : vector<8x8xf32>
    %cst_140 = arith.constant dense<0.000000e+00> : vector<8x8xf32>
    %399 = tpu.matmul %398, %384, %cst_140 {dimension_numbers = #tpu.dot_dimension_numbers<[1], [0], [0], [1], [0, 0, 1, 1], [], []>} : vector<8x8xf32>, vector<8x8xf32>, vector<8x8xf32> -> vector<8x8xf32>
    %400 = vector.extract_strided_slice %286 {offsets = [8, 16], sizes = [8, 8], strides = [1, 1]} : vector<16x32xf32> to vector<8x8xf32>
    %401 = vector.extract_strided_slice %287 {offsets = [8, 16], sizes = [8, 8], strides = [1, 1]} : vector<16x32xf32> to vector<8x8xf32>
    %402 = vector.extract_strided_slice %288 {offsets = [8, 16], sizes = [8, 8], strides = [1, 1]} : vector<16x32xf32> to vector<8x8xf32>
    %cst_141 = arith.constant dense<0.000000e+00> : vector<8x8xf32>
    %403 = tpu.matmul %400, %401, %cst_141 {dimension_numbers = #tpu.dot_dimension_numbers<[1], [1], [0], [0], [0, 0, 1, 0], [], []>} : vector<8x8xf32>, vector<8x8xf32>, vector<8x8xf32> -> vector<8x8xf32>
    %cst_142 = arith.constant 0.353553385 : f32
    %404 = vector.broadcast %cst_142 : f32 to vector<8x8xf32>
    %405 = arith.mulf %403, %404 : vector<8x8xf32>
    %406 = vector.broadcast %363 : vector<1x8xf32> to vector<8x8xf32>
    %407 = arith.addf %405, %406 : vector<8x8xf32>
    %cst_143 = arith.constant dense<0xFF800000> : vector<8xf32>
    %408 = vector.multi_reduction <maximumf>, %407, %cst_143 [1] : vector<8x8xf32> to vector<8xf32>
    %409 = vector.shape_cast %408 : vector<8xf32> to vector<8x1xf32>
    %410 = vector.broadcast %409 : vector<8x1xf32> to vector<8x8xf32>
    %411 = arith.subf %407, %410 : vector<8x8xf32>
    %412 = math.exp %411 : vector<8x8xf32>
    %cst_144 = arith.constant dense<0.000000e+00> : vector<8xf32>
    %413 = vector.multi_reduction <add>, %412, %cst_144 [1] : vector<8x8xf32> to vector<8xf32>
    %414 = vector.shape_cast %413 : vector<8xf32> to vector<8x1xf32>
    %415 = vector.broadcast %414 : vector<8x1xf32> to vector<8x8xf32>
    %416 = arith.divf %412, %415 : vector<8x8xf32>
    %cst_145 = arith.constant dense<0.000000e+00> : vector<8x8xf32>
    %417 = tpu.matmul %416, %402, %cst_145 {dimension_numbers = #tpu.dot_dimension_numbers<[1], [0], [0], [1], [0, 0, 1, 1], [], []>} : vector<8x8xf32>, vector<8x8xf32>, vector<8x8xf32> -> vector<8x8xf32>
    %418 = vector.extract_strided_slice %286 {offsets = [8, 24], sizes = [8, 8], strides = [1, 1]} : vector<16x32xf32> to vector<8x8xf32>
    %419 = vector.extract_strided_slice %287 {offsets = [8, 24], sizes = [8, 8], strides = [1, 1]} : vector<16x32xf32> to vector<8x8xf32>
    %420 = vector.extract_strided_slice %288 {offsets = [8, 24], sizes = [8, 8], strides = [1, 1]} : vector<16x32xf32> to vector<8x8xf32>
    %cst_146 = arith.constant dense<0.000000e+00> : vector<8x8xf32>
    %421 = tpu.matmul %418, %419, %cst_146 {dimension_numbers = #tpu.dot_dimension_numbers<[1], [1], [0], [0], [0, 0, 1, 0], [], []>} : vector<8x8xf32>, vector<8x8xf32>, vector<8x8xf32> -> vector<8x8xf32>
    %cst_147 = arith.constant 0.353553385 : f32
    %422 = vector.broadcast %cst_147 : f32 to vector<8x8xf32>
    %423 = arith.mulf %421, %422 : vector<8x8xf32>
    %424 = vector.broadcast %363 : vector<1x8xf32> to vector<8x8xf32>
    %425 = arith.addf %423, %424 : vector<8x8xf32>
    %cst_148 = arith.constant dense<0xFF800000> : vector<8xf32>
    %426 = vector.multi_reduction <maximumf>, %425, %cst_148 [1] : vector<8x8xf32> to vector<8xf32>
    %427 = vector.shape_cast %426 : vector<8xf32> to vector<8x1xf32>
    %428 = vector.broadcast %427 : vector<8x1xf32> to vector<8x8xf32>
    %429 = arith.subf %425, %428 : vector<8x8xf32>
    %430 = math.exp %429 : vector<8x8xf32>
    %cst_149 = arith.constant dense<0.000000e+00> : vector<8xf32>
    %431 = vector.multi_reduction <add>, %430, %cst_149 [1] : vector<8x8xf32> to vector<8xf32>
    %432 = vector.shape_cast %431 : vector<8xf32> to vector<8x1xf32>
    %433 = vector.broadcast %432 : vector<8x1xf32> to vector<8x8xf32>
    %434 = arith.divf %430, %433 : vector<8x8xf32>
    %cst_150 = arith.constant dense<0.000000e+00> : vector<8x8xf32>
    %435 = tpu.matmul %434, %420, %cst_150 {dimension_numbers = #tpu.dot_dimension_numbers<[1], [0], [0], [1], [0, 0, 1, 1], [], []>} : vector<8x8xf32>, vector<8x8xf32>, vector<8x8xf32> -> vector<8x8xf32>
    %436 = tpu.concatenate %381, %399, %417, %435 in 1 : vector<8x8xf32>, vector<8x8xf32>, vector<8x8xf32>, vector<8x8xf32> -> vector<8x32xf32>
    %437 = tpu.concatenate %362, %436 in 0 : vector<8x32xf32>, vector<8x32xf32> -> vector<16x32xf32>
    %c1_151 = arith.constant 1 : index
    %c0_152 = arith.constant 0 : index
    %c0_153 = arith.constant 0 : index
    %438 = vector.load %arg6[%c1_151, %c0_152, %c0_153] : memref<2x32x32xf32, #tpu.memory_space<vmem>>, vector<1x32x32xf32>
    %439 = vector.shape_cast %438 : vector<1x32x32xf32> to vector<32x32xf32>
    %cst_154 = arith.constant dense<0.000000e+00> : vector<16x32xf32>
    %440 = tpu.matmul %437, %439, %cst_154 {dimension_numbers = #tpu.dot_dimension_numbers<[1], [0], [0], [1], [0, 0, 1, 1], [], []>} : vector<16x32xf32>, vector<32x32xf32>, vector<16x32xf32> -> vector<16x32xf32>
    %c1_155 = arith.constant 1 : index
    %c0_156 = arith.constant 0 : index
    %c0_157 = arith.constant 0 : index
    %441 = vector.load %arg7[%c1_155, %c0_156, %c0_157] : memref<2x1x32xf32, #tpu.memory_space<vmem>>, vector<1x1x32xf32>
    %442 = vector.shape_cast %441 : vector<1x1x32xf32> to vector<1x32xf32>
    %443 = vector.broadcast %442 : vector<1x32xf32> to vector<16x32xf32>
    %444 = arith.addf %440, %443 : vector<16x32xf32>
    %445 = arith.addf %444, %278 : vector<16x32xf32>
    %c1_158 = arith.constant 1 : index
    %c0_159 = arith.constant 0 : index
    %c0_160 = arith.constant 0 : index
    %446 = vector.load %arg8[%c1_158, %c0_159, %c0_160] : memref<2x1x32xf32, #tpu.memory_space<vmem>>, vector<1x1x32xf32>
    %447 = vector.shape_cast %446 : vector<1x1x32xf32> to vector<1x32xf32>
    %c1_161 = arith.constant 1 : index
    %c0_162 = arith.constant 0 : index
    %c0_163 = arith.constant 0 : index
    %448 = vector.load %arg9[%c1_161, %c0_162, %c0_163] : memref<2x1x32xf32, #tpu.memory_space<vmem>>, vector<1x1x32xf32>
    %449 = vector.shape_cast %448 : vector<1x1x32xf32> to vector<1x32xf32>
    %cst_164 = arith.constant dense<0.000000e+00> : vector<16xf32>
    %450 = vector.multi_reduction <add>, %445, %cst_164 [1] : vector<16x32xf32> to vector<16xf32>
    %451 = vector.shape_cast %450 : vector<16xf32> to vector<16x1xf32>
    %cst_165 = arith.constant 3.200000e+01 : f32
    %452 = vector.broadcast %cst_165 : f32 to vector<16x1xf32>
    %453 = arith.divf %451, %452 : vector<16x1xf32>
    %454 = vector.broadcast %453 : vector<16x1xf32> to vector<16x32xf32>
    %455 = arith.subf %445, %454 : vector<16x32xf32>
    %456 = vector.broadcast %453 : vector<16x1xf32> to vector<16x32xf32>
    %457 = arith.subf %445, %456 : vector<16x32xf32>
    %458 = arith.mulf %455, %457 : vector<16x32xf32>
    %cst_166 = arith.constant dense<0.000000e+00> : vector<16xf32>
    %459 = vector.multi_reduction <add>, %458, %cst_166 [1] : vector<16x32xf32> to vector<16xf32>
    %460 = vector.shape_cast %459 : vector<16xf32> to vector<16x1xf32>
    %cst_167 = arith.constant 3.200000e+01 : f32
    %461 = vector.broadcast %cst_167 : f32 to vector<16x1xf32>
    %462 = arith.divf %460, %461 : vector<16x1xf32>
    %463 = vector.broadcast %453 : vector<16x1xf32> to vector<16x32xf32>
    %464 = arith.subf %445, %463 : vector<16x32xf32>
    %cst_168 = arith.constant 9.99999996E-13 : f32
    %465 = vector.broadcast %cst_168 : f32 to vector<16x1xf32>
    %466 = arith.addf %462, %465 : vector<16x1xf32>
    %467 = math.rsqrt %466 : vector<16x1xf32>
    %468 = vector.broadcast %467 : vector<16x1xf32> to vector<16x32xf32>
    %469 = arith.mulf %464, %468 : vector<16x32xf32>
    %470 = vector.broadcast %447 : vector<1x32xf32> to vector<16x32xf32>
    %471 = arith.mulf %469, %470 : vector<16x32xf32>
    %472 = vector.broadcast %449 : vector<1x32xf32> to vector<16x32xf32>
    %473 = arith.addf %471, %472 : vector<16x32xf32>
    %c1_169 = arith.constant 1 : index
    %c0_170 = arith.constant 0 : index
    %c0_171 = arith.constant 0 : index
    %474 = vector.load %arg10[%c1_169, %c0_170, %c0_171] : memref<2x32x64xf32, #tpu.memory_space<vmem>>, vector<1x32x64xf32>
    %475 = vector.shape_cast %474 : vector<1x32x64xf32> to vector<32x64xf32>
    %cst_172 = arith.constant dense<0.000000e+00> : vector<16x64xf32>
    %476 = tpu.matmul %473, %475, %cst_172 {dimension_numbers = #tpu.dot_dimension_numbers<[1], [0], [0], [1], [0, 0, 1, 1], [], []>} : vector<16x32xf32>, vector<32x64xf32>, vector<16x64xf32> -> vector<16x64xf32>
    %c1_173 = arith.constant 1 : index
    %c0_174 = arith.constant 0 : index
    %c0_175 = arith.constant 0 : index
    %477 = vector.load %arg11[%c1_173, %c0_174, %c0_175] : memref<2x1x64xf32, #tpu.memory_space<vmem>>, vector<1x1x64xf32>
    %478 = vector.shape_cast %477 : vector<1x1x64xf32> to vector<1x64xf32>
    %479 = vector.broadcast %478 : vector<1x64xf32> to vector<16x64xf32>
    %480 = arith.addf %476, %479 : vector<16x64xf32>
    %cst_176 = arith.constant 5.000000e-01 : f32
    %481 = vector.broadcast %cst_176 : f32 to vector<16x64xf32>
    %482 = arith.mulf %481, %480 : vector<16x64xf32>
    %cst_177 = arith.constant 4.471500e-02 : f32
    %483 = vector.broadcast %cst_177 : f32 to vector<16x64xf32>
    %484 = arith.mulf %483, %480 : vector<16x64xf32>
    %485 = arith.mulf %484, %480 : vector<16x64xf32>
    %486 = arith.mulf %485, %480 : vector<16x64xf32>
    %487 = arith.addf %480, %486 : vector<16x64xf32>
    %cst_178 = arith.constant 0.797884583 : f32
    %488 = vector.broadcast %cst_178 : f32 to vector<16x64xf32>
    %489 = arith.mulf %488, %487 : vector<16x64xf32>
    %490 = math.tanh %489 : vector<16x64xf32>
    %cst_179 = arith.constant 1.000000e+00 : f32
    %491 = vector.broadcast %cst_179 : f32 to vector<16x64xf32>
    %492 = arith.addf %491, %490 : vector<16x64xf32>
    %493 = arith.mulf %482, %492 : vector<16x64xf32>
    %c1_180 = arith.constant 1 : index
    %c0_181 = arith.constant 0 : index
    %c0_182 = arith.constant 0 : index
    %494 = vector.load %arg12[%c1_180, %c0_181, %c0_182] : memref<2x64x32xf32, #tpu.memory_space<vmem>>, vector<1x64x32xf32>
    %495 = vector.shape_cast %494 : vector<1x64x32xf32> to vector<64x32xf32>
    %cst_183 = arith.constant dense<0.000000e+00> : vector<16x32xf32>
    %496 = tpu.matmul %493, %495, %cst_183 {dimension_numbers = #tpu.dot_dimension_numbers<[1], [0], [0], [1], [0, 0, 1, 1], [], []>} : vector<16x64xf32>, vector<64x32xf32>, vector<16x32xf32> -> vector<16x32xf32>
    %c1_184 = arith.constant 1 : index
    %c0_185 = arith.constant 0 : index
    %c0_186 = arith.constant 0 : index
    %497 = vector.load %arg13[%c1_184, %c0_185, %c0_186] : memref<2x1x32xf32, #tpu.memory_space<vmem>>, vector<1x1x32xf32>
    %498 = vector.shape_cast %497 : vector<1x1x32xf32> to vector<1x32xf32>
    %499 = vector.broadcast %498 : vector<1x32xf32> to vector<16x32xf32>
    %500 = arith.addf %496, %499 : vector<16x32xf32>
    %501 = arith.addf %500, %473 : vector<16x32xf32>
    %c1_187 = arith.constant 1 : index
    %c0_188 = arith.constant 0 : index
    %c0_189 = arith.constant 0 : index
    %502 = vector.load %arg14[%c1_187, %c0_188, %c0_189] : memref<2x1x32xf32, #tpu.memory_space<vmem>>, vector<1x1x32xf32>
    %503 = vector.shape_cast %502 : vector<1x1x32xf32> to vector<1x32xf32>
    %c1_190 = arith.constant 1 : index
    %c0_191 = arith.constant 0 : index
    %c0_192 = arith.constant 0 : index
    %504 = vector.load %arg15[%c1_190, %c0_191, %c0_192] : memref<2x1x32xf32, #tpu.memory_space<vmem>>, vector<1x1x32xf32>
    %505 = vector.shape_cast %504 : vector<1x1x32xf32> to vector<1x32xf32>
    %cst_193 = arith.constant dense<0.000000e+00> : vector<16xf32>
    %506 = vector.multi_reduction <add>, %501, %cst_193 [1] : vector<16x32xf32> to vector<16xf32>
    %507 = vector.shape_cast %506 : vector<16xf32> to vector<16x1xf32>
    %cst_194 = arith.constant 3.200000e+01 : f32
    %508 = vector.broadcast %cst_194 : f32 to vector<16x1xf32>
    %509 = arith.divf %507, %508 : vector<16x1xf32>
    %510 = vector.broadcast %509 : vector<16x1xf32> to vector<16x32xf32>
    %511 = arith.subf %501, %510 : vector<16x32xf32>
    %512 = vector.broadcast %509 : vector<16x1xf32> to vector<16x32xf32>
    %513 = arith.subf %501, %512 : vector<16x32xf32>
    %514 = arith.mulf %511, %513 : vector<16x32xf32>
    %cst_195 = arith.constant dense<0.000000e+00> : vector<16xf32>
    %515 = vector.multi_reduction <add>, %514, %cst_195 [1] : vector<16x32xf32> to vector<16xf32>
    %516 = vector.shape_cast %515 : vector<16xf32> to vector<16x1xf32>
    %cst_196 = arith.constant 3.200000e+01 : f32
    %517 = vector.broadcast %cst_196 : f32 to vector<16x1xf32>
    %518 = arith.divf %516, %517 : vector<16x1xf32>
    %519 = vector.broadcast %509 : vector<16x1xf32> to vector<16x32xf32>
    %520 = arith.subf %501, %519 : vector<16x32xf32>
    %cst_197 = arith.constant 9.99999996E-13 : f32
    %521 = vector.broadcast %cst_197 : f32 to vector<16x1xf32>
    %522 = arith.addf %518, %521 : vector<16x1xf32>
    %523 = math.rsqrt %522 : vector<16x1xf32>
    %524 = vector.broadcast %523 : vector<16x1xf32> to vector<16x32xf32>
    %525 = arith.mulf %520, %524 : vector<16x32xf32>
    %526 = vector.broadcast %503 : vector<1x32xf32> to vector<16x32xf32>
    %527 = arith.mulf %525, %526 : vector<16x32xf32>
    %528 = vector.broadcast %505 : vector<1x32xf32> to vector<16x32xf32>
    %529 = arith.addf %527, %528 : vector<16x32xf32>
    %c0_198 = arith.constant 0 : index
    %c0_199 = arith.constant 0 : index
    %530 = vector.load %arg16[%c0_198, %c0_199] : memref<32x128xf32, #tpu.memory_space<vmem>>, vector<32x128xf32>
    %cst_200 = arith.constant dense<0.000000e+00> : vector<16x128xf32>
    %531 = tpu.matmul %529, %530, %cst_200 {dimension_numbers = #tpu.dot_dimension_numbers<[1], [0], [0], [1], [0, 0, 1, 1], [], []>} : vector<16x32xf32>, vector<32x128xf32>, vector<16x128xf32> -> vector<16x128xf32>
    %c0_201 = arith.constant 0 : index
    %c0_202 = arith.constant 0 : index
    %532 = vector.load %arg17[%c0_201, %c0_202] : memref<1x128xf32, #tpu.memory_space<vmem>>, vector<1x128xf32>
    %533 = vector.broadcast %532 : vector<1x128xf32> to vector<16x128xf32>
    %534 = arith.addf %531, %533 : vector<16x128xf32>
    %c0_203 = arith.constant 0 : index
    %c0_204 = arith.constant 0 : index
    %535 = vector.load %arg18[%c0_203, %c0_204] : memref<16x128xf32, #tpu.memory_space<vmem>>, vector<16x128xf32>
    tpu.vector_store %arg18[%c0_203, %c0_204], %534 {strides = array<i32>} : memref<16x128xf32, #tpu.memory_space<vmem>>, vector<16x128xf32>,
    return
  }
}

</mosaic_0001>

<llo_original>
// kernel: model_forward.1
$region0: #{model_forward.1}
  #allocation0 [shape = 'u32[]', space=smem, size = 0x4, offset = 0x4, fixed_abs, tag = 'smem constant byte address 0x4 - core index']
  #allocation1 [shape = 'u32[144,128]{1,0:T(1,128)}', space=vmem, size = 0x12000, scoped, tag = 'internal scratch']
  %s0 = inlined_call_operand.vmem [shape: f32[16,32], index: 0, kind: input, shape index: {}]
  %s1 = inlined_call_operand.vmem [shape: f32[2,8], index: 1, kind: input, shape index: {}]
  %s2 = inlined_call_operand.vmem [shape: f32[1,32], index: 2, kind: input, shape index: {}]
  %s3 = inlined_call_operand.vmem [shape: f32[1,32], index: 3, kind: input, shape index: {}]
  %s4 = inlined_call_operand.vmem [shape: f32[2,32,96], index: 4, kind: input, shape index: {}]
  %s5 = inlined_call_operand.vmem [shape: f32[2,1,96], index: 5, kind: input, shape index: {}]
  %s6 = inlined_call_operand.vmem [shape: f32[2,32,32], index: 6, kind: input, shape index: {}]
  %s7 = inlined_call_operand.vmem [shape: f32[2,1,32], index: 7, kind: input, shape index: {}]
  %s8 = inlined_call_operand.vmem [shape: f32[2,1,32], index: 8, kind: input, shape index: {}]
  %s9 = inlined_call_operand.vmem [shape: f32[2,1,32], index: 9, kind: input, shape index: {}]
  %s10 = inlined_call_operand.vmem [shape: f32[2,32,64], index: 10, kind: input, shape index: {}]
  %s11 = inlined_call_operand.vmem [shape: f32[2,1,64], index: 11, kind: input, shape index: {}]
  %s12 = inlined_call_operand.vmem [shape: f32[2,64,32], index: 12, kind: input, shape index: {}]
  %s13 = inlined_call_operand.vmem [shape: f32[2,1,32], index: 13, kind: input, shape index: {}]
  %s14 = inlined_call_operand.vmem [shape: f32[2,1,32], index: 14, kind: input, shape index: {}]
  %s15 = inlined_call_operand.vmem [shape: f32[2,1,32], index: 15, kind: input, shape index: {}]
  %s16 = inlined_call_operand.vmem [shape: f32[32,128], index: 16, kind: input, shape index: {}]
  %s17 = inlined_call_operand.vmem [shape: f32[1,128], index: 17, kind: input, shape index: {}]
  %s18 = inlined_call_operand.vmem [shape: f32[16,128], index: 18, kind: output, shape index: {}]
  %s19 = sld [smem:[#allocation0]]
  $region82: #{model_forward.1} parent=0
    _
  %s21 = ssub.s32 1, %s19
  %s22 = scalar_select 0, %s21, %s19
  // Predicated region
  $region2: #{model_forward.1} parent=0 // pred_check
    _
  $region3: #{model_forward.1} parent=0 // pred_check_branch
    %24 = sbr.rel (0) target = $region5
  $region4: #{model_forward.1} parent=0 // pred_region
    _
  $region5: #{model_forward.1} parent=0 // pred_fallthru
    _
  // Predicated region
  $region6: #{model_forward.1} parent=0 // pred_check
    _
  $region7: #{model_forward.1} parent=0 // pred_check_branch
    %26 = sbr.rel (0) target = $region9
  $region8: #{model_forward.1} parent=0 // pred_region
    _
  $region9: #{model_forward.1} parent=0 // pred_fallthru
    _
  // Predicated region
  $region10: #{model_forward.1} parent=0 // pred_check
    _
  $region11: #{model_forward.1} parent=0 // pred_check_branch
    %28 = sbr.rel (0) target = $region13
  $region12: #{model_forward.1} parent=0 // pred_region
    _
  $region13: #{model_forward.1} parent=0 // pred_fallthru
    _
  // Predicated region
  $region14: #{model_forward.1} parent=0 // pred_check
    _
  $region15: #{model_forward.1} parent=0 // pred_check_branch
    %30 = sbr.rel (0) target = $region17
  $region16: #{model_forward.1} parent=0 // pred_region
    _
  $region17: #{model_forward.1} parent=0 // pred_fallthru
    _
  // Predicated region
  $region18: #{model_forward.1} parent=0 // pred_check
    _
  $region19: #{model_forward.1} parent=0 // pred_check_branch
    %32 = sbr.rel (0) target = $region21
  $region20: #{model_forward.1} parent=0 // pred_region
    _
  $region21: #{model_forward.1} parent=0 // pred_fallthru
    _
  // Predicated region
  $region22: #{model_forward.1} parent=0 // pred_check
    _
  $region23: #{model_forward.1} parent=0 // pred_check_branch
    %34 = sbr.rel (0) target = $region25
  $region24: #{model_forward.1} parent=0 // pred_region
    _
  $region25: #{model_forward.1} parent=0 // pred_fallthru
    _
  // Predicated region
  $region26: #{model_forward.1} parent=0 // pred_check
    _
  $region27: #{model_forward.1} parent=0 // pred_check_branch
    %36 = sbr.rel (0) target = $region29
  $region28: #{model_forward.1} parent=0 // pred_region
    _
  $region29: #{model_forward.1} parent=0 // pred_fallthru
    _
  // Predicated region
  $region30: #{model_forward.1} parent=0 // pred_check
    _
  $region31: #{model_forward.1} parent=0 // pred_check_branch
    %38 = sbr.rel (0) target = $region33
  $region32: #{model_forward.1} parent=0 // pred_region
    _
  $region33: #{model_forward.1} parent=0 // pred_fallthru
    _
  // Predicated region
  $region34: #{model_forward.1} parent=0 // pred_check
    _
  $region35: #{model_forward.1} parent=0 // pred_check_branch
    %40 = sbr.rel (0) target = $region37
  $region36: #{model_forward.1} parent=0 // pred_region
    _
  $region37: #{model_forward.1} parent=0 // pred_fallthru
    _
  // Predicated region
  $region38: #{model_forward.1} parent=0 // pred_check
    _
  $region39: #{model_forward.1} parent=0 // pred_check_branch
    %42 = sbr.rel (0) target = $region41
  $region40: #{model_forward.1} parent=0 // pred_region
    _
  $region41: #{model_forward.1} parent=0 // pred_fallthru
    _
  // Predicated region
  $region42: #{model_forward.1} parent=0 // pred_check
    _
  $region43: #{model_forward.1} parent=0 // pred_check_branch
    %44 = sbr.rel (0) target = $region45
  $region44: #{model_forward.1} parent=0 // pred_region
    _
  $region45: #{model_forward.1} parent=0 // pred_fallthru
    _
  // Predicated region
  $region46: #{model_forward.1} parent=0 // pred_check
    _
  $region47: #{model_forward.1} parent=0 // pred_check_branch
    %46 = sbr.rel (0) target = $region49
  $region48: #{model_forward.1} parent=0 // pred_region
    _
  $region49: #{model_forward.1} parent=0 // pred_fallthru
    _
  // Predicated region
  $region50: #{model_forward.1} parent=0 // pred_check
    _
  $region51: #{model_forward.1} parent=0 // pred_check_branch
    %48 = sbr.rel (0) target = $region53
  $region52: #{model_forward.1} parent=0 // pred_region
    _
  $region53: #{model_forward.1} parent=0 // pred_fallthru
    _
  // Predicated region
  $region54: #{model_forward.1} parent=0 // pred_check
    _
  $region55: #{model_forward.1} parent=0 // pred_check_branch
    %50 = sbr.rel (0) target = $region57
  $region56: #{model_forward.1} parent=0 // pred_region
    _
  $region57: #{model_forward.1} parent=0 // pred_fallthru
    _
  // Predicated region
  $region58: #{model_forward.1} parent=0 // pred_check
    _
  $region59: #{model_forward.1} parent=0 // pred_check_branch
    %52 = sbr.rel (0) target = $region61
  $region60: #{model_forward.1} parent=0 // pred_region
    _
  $region61: #{model_forward.1} parent=0 // pred_fallthru
    _
  // Predicated region
  $region62: #{model_forward.1} parent=0 // pred_check
    _
  $region63: #{model_forward.1} parent=0 // pred_check_branch
    %54 = sbr.rel (0) target = $region65
  $region64: #{model_forward.1} parent=0 // pred_region
    _
  $region65: #{model_forward.1} parent=0 // pred_fallthru
    _
  // Predicated region
  $region66: #{model_forward.1} parent=0 // pred_check
    _
  $region67: #{model_forward.1} parent=0 // pred_check_branch
    %56 = sbr.rel (0) target = $region69
  $region68: #{model_forward.1} parent=0 // pred_region
    _
  $region69: #{model_forward.1} parent=0 // pred_fallthru
    _
  // Predicated region
  $region70: #{model_forward.1} parent=0 // pred_check
    _
  $region71: #{model_forward.1} parent=0 // pred_check_branch
    %58 = sbr.rel (0) target = $region73
  $region72: #{model_forward.1} parent=0 // pred_region
    _
  $region73: #{model_forward.1} parent=0 // pred_fallthru
    _
  %v59 = vld [vmem:[%s0] sm:$0xff]
  %v60 = vld [vmem:[%s0 + $0x8] sm:$0xff]
  %v61 = vld [vmem:[%s2] sm:$0x1]
  %v62 = vld [vmem:[%s3] sm:$0x1]
  %vm63 = vcmask 261120
  %v64 = vsel %vm63, %v59, 0.0
  %65 = vadd.xlane.f32.xlu0 %v64
  %v66 = vpop.xlane.xlu0 %65
  %v67 = vsel %vm63, %v60, 0.0
  %68 = vadd.xlane.f32.xlu0 %v67
  %v69 = vpop.xlane.xlu0 %68
  %v70 = vrcp.pop 32.0
  %v71 = vmul.f32 %v66, %v70
  %v72 = vmul.f32 %v69, %v70
  %v73 = vsub.f32 %v59, %v71
  %v74 = vsub.f32 %v60, %v72
  %v75 = vmul.f32 %v73, %v73
  %v76 = vmul.f32 %v74, %v74
  %v77 = vsel %vm63, %v75, 0.0
  %78 = vadd.xlane.f32.xlu0 %v77
  %v79 = vpop.xlane.xlu0 %78
  %v80 = vsel %vm63, %v76, 0.0
  %81 = vadd.xlane.f32.xlu0 %v80
  %v82 = vpop.xlane.xlu0 %81
  %v83 = vmul.f32 %v79, %v70
  %v84 = vmul.f32 %v82, %v70
  %v85 = vadd.f32 %v83, 1e-12
  %v86 = vadd.f32 %v84, 1e-12
  %v87 = vrsqrt.pop %v85
  %v88 = vrsqrt.pop %v86
  %v89 = vmul.f32 %v73, %v87
  %v90 = vmul.f32 %v74, %v88
  %v92 = vlaneseq
  %v93 = vshrl.u32 %v92, 7
  %v94 = vsub.s32 0, %v93
  %v95 = vrot.slane %v61, %v94
  %v97 = vmul.f32 %v89, %v95
  %v98 = vmul.f32 %v90, %v95
  %v100 = vlaneseq
  %v101 = vshrl.u32 %v100, 7
  %v102 = vsub.s32 0, %v101
  %v103 = vrot.slane %v62, %v102
  %v105 = vadd.f32 %v97, %v103
  %v106 = vadd.f32 %v98, %v103
  %v107 = vld [vmem:[%s1] sm:$0x3]
  %v108 = vld [vmem:[%s4] sm:$0xff]
  %v109 = vld [vmem:[%s4 + $0x8] sm:$0xff]
  %v110 = vld [vmem:[%s4 + $0x10] sm:$0xff]
  %v111 = vld [vmem:[%s4 + $0x18] sm:$0xff]
  %v112 = vld [vmem:[%s5] sm:$0x1]
  %v114 = vlaneseq
  %v115 = vshrl.u32 %v114, 7
  %v116 = vsub.s32 0, %v115
  %v117 = vrot.slane %v112, %v116
  %v120 = vsel %vm63, %v105, 0
  %v123 = vsel %vm63, %v106, 0
  %125 = vmatprep.subr.mxu0 0.0
  %126 = vmatpush1.msra.mxu0 %v108
  %127 = vmatprep.subr.mxu0 0.0
  %128 = vmatpush1.msra.mxu0 %v109
  %129 = vmatprep.subr.mxu0 0.0
  %130 = vmatpush1.msra.mxu0 %v110
  %131 = vmatprep.subr.mxu0 0.0
  %132 = vmatpush1.msra.mxu0 %v111
  %133 = vmatprep.subr.mxu0 0.0
  %134 = vmatpush1.msra.mxu0 0.0
  %135 = vmatprep.subr.mxu0 0.0
  %136 = vmatpush1.msra.mxu0 0.0
  %137 = vmatprep.subr.mxu0 0.0
  %138 = vmatpush1.msra.mxu0 0.0
  %139 = vmatprep.subr.mxu0 0.0
  %140 = vmatpush1.msra.mxu0 0.0
  %141 = vmatprep.subr.mxu0 0.0
  %142 = vmatpush1.msra.mxu0 0.0
  %143 = vmatprep.subr.mxu0 0.0
  %144 = vmatpush1.msra.mxu0 0.0
  %145 = vmatprep.subr.mxu0 0.0
  %146 = vmatpush1.msra.mxu0 0.0
  %147 = vmatprep.subr.mxu0 0.0
  %148 = vmatpush1.msra.mxu0 0.0
  %149 = vmatprep.subr.mxu0 0.0
  %150 = vmatpush1.msra.mxu0 0.0
  %151 = vmatprep.subr.mxu0 0.0
  %152 = vmatpush1.msra.mxu0 0.0
  %153 = vmatprep.subr.mxu0 0.0
  %154 = vmatpush1.msra.mxu0 0.0
  %155 = vmatprep.subr.mxu0 0.0
  %156 = vmatpush1.msra.mxu0 0.0
  %157 = vmatprep.subr.mxu0 0.0
  %158 = vmatpush1.msra.mxu0 0.0
  %159 = vmatprep.subr.mxu0 0.0
  %160 = vmatpush1.msra.mxu0 0.0
  %161 = vmatprep.subr.mxu0 0.0
  %162 = vmatpush1.msra.mxu0 0.0
  %163 = vmatprep.subr.mxu0 0.0
  %164 = vmatpush1.msra.mxu0 0.0
  %165 = vmatprep.subr.mxu0 0.0
  %166 = vmatpush1.msra.mxu0 0.0
  %167 = vmatprep.subr.mxu0 0.0
  %168 = vmatpush1.msra.mxu0 0.0
  %169 = vmatprep.subr.mxu0 0.0
  %170 = vmatpush1.msra.mxu0 0.0
  %171 = vmatprep.subr.mxu0 0.0
  %172 = vmatpush1.msra.mxu0 0.0
  %173 = vmatprep.subr.mxu0 0.0
  %174 = vmatpush1.msra.mxu0 0.0
  %175 = vmatprep.subr.mxu0 0.0
  %176 = vmatpush1.msra.mxu0 0.0
  %177 = vmatprep.subr.mxu0 0.0
  %178 = vmatpush1.msra.mxu0 0.0
  %179 = vmatprep.subr.mxu0 0.0
  %180 = vmatpush1.msra.mxu0 0.0
  %181 = vmatprep.subr.mxu0 0.0
  %182 = vmatpush1.msra.mxu0 0.0
  %183 = vmatprep.subr.mxu0 0.0
  %184 = vmatpush1.msra.mxu0 0.0
  %185 = vmatprep.subr.mxu0 0.0
  %186 = vmatpush1.msra.mxu0 0.0
  %187 = vmatprep.subr.mxu0 0.0
  %188 = vmatpush1.msra.mxu0 0.0
  %189 = vmatprep.mubr.f32.mxu0 0.0
  %190 = vmatmul.mubr.f32.gmra.mrb[0].mxu0 %v120
  %v191 = vpop.f32.mrb[0].mxu0
  %v192 = vadd.f32 %v117, %v191
  %v193 = vpop.f32.mrb[0].mxu0
  %194 = vmatprep.mubr.f32.mxu0 0.0
  %195 = vmatmul.mubr.f32.gmra.mrb[0].mxu0 %v123
  %v196 = vpop.f32.mrb[0].mxu0
  %v197 = vadd.f32 %v117, %v196
  %v198 = vpop.f32.mrb[0].mxu0
  %199 = vdwg.mxu0
  %201 = vrot.lane.b32.xlu0 %v192, 96
  %v202 = vpop.permute.xlu0 %201
  %vm203 = vcmask 64512
  %v204 = vsel %vm203, %v192, 0
  %v206 = vsel %vm203, %v202, 0
  %208 = vmatprep.subr.mxu0 0.0
  %209 = vmatpush1.xpose.msra.mxu0 %v206
  %210 = vmatprep.subr.mxu0 0.0
  %211 = vmatpush1.xpose.msra.mxu0 0.0
  %212 = vmatprep.subr.mxu0 0.0
  %213 = vmatpush1.xpose.msra.mxu0 0.0
  %214 = vmatprep.subr.mxu0 0.0
  %215 = vmatpush1.xpose.msra.mxu0 0.0
  %216 = vmatprep.subr.mxu0 0.0
  %217 = vmatpush1.xpose.msra.mxu0 0.0
  %218 = vmatprep.subr.mxu0 0.0
  %219 = vmatpush1.xpose.msra.mxu0 0.0
  %220 = vmatprep.subr.mxu0 0.0
  %221 = vmatpush1.xpose.msra.mxu0 0.0
  %222 = vmatprep.subr.mxu0 0.0
  %223 = vmatpush1.xpose.msra.mxu0 0.0
  %224 = vmatprep.subr.mxu0 0.0
  %225 = vmatpush1.xpose.msra.mxu0 0.0
  %226 = vmatprep.subr.mxu0 0.0
  %227 = vmatpush1.xpose.msra.mxu0 0.0
  %228 = vmatprep.subr.mxu0 0.0
  %229 = vmatpush1.xpose.msra.mxu0 0.0
  %230 = vmatprep.subr.mxu0 0.0
  %231 = vmatpush1.xpose.msra.mxu0 0.0
  %232 = vmatprep.subr.mxu0 0.0
  %233 = vmatpush1.xpose.msra.mxu0 0.0
  %234 = vmatprep.subr.mxu0 0.0
  %235 = vmatpush1.xpose.msra.mxu0 0.0
  %236 = vmatprep.subr.mxu0 0.0
  %237 = vmatpush1.xpose.msra.mxu0 0.0
  %238 = vmatprep.subr.mxu0 0.0
  %239 = vmatpush1.xpose.msra.mxu0 0.0
  %240 = vmatprep.subr.mxu0 0.0
  %241 = vmatpush1.xpose.msra.mxu0 0.0
  %242 = vmatprep.subr.mxu0 0.0
  %243 = vmatpush1.xpose.msra.mxu0 0.0
  %244 = vmatprep.subr.mxu0 0.0
  %245 = vmatpush1.xpose.msra.mxu0 0.0
  %246 = vmatprep.subr.mxu0 0.0
  %247 = vmatpush1.xpose.msra.mxu0 0.0
  %248 = vmatprep.subr.mxu0 0.0
  %249 = vmatpush1.xpose.msra.mxu0 0.0
  %250 = vmatprep.subr.mxu0 0.0
  %251 = vmatpush1.xpose.msra.mxu0 0.0
  %252 = vmatprep.subr.mxu0 0.0
  %253 = vmatpush1.xpose.msra.mxu0 0.0
  %254 = vmatprep.subr.mxu0 0.0
  %255 = vmatpush1.xpose.msra.mxu0 0.0
  %256 = vmatprep.subr.mxu0 0.0
  %257 = vmatpush1.xpose.msra.mxu0 0.0
  %258 = vmatprep.subr.mxu0 0.0
  %259 = vmatpush1.xpose.msra.mxu0 0.0
  %260 = vmatprep.subr.mxu0 0.0
  %261 = vmatpush1.xpose.msra.mxu0 0.0
  %262 = vmatprep.subr.mxu0 0.0
  %263 = vmatpush1.xpose.msra.mxu0 0.0
  %264 = vmatprep.subr.mxu0 0.0
  %265 = vmatpush1.xpose.msra.mxu0 0.0
  %266 = vmatprep.subr.mxu0 0.0
  %267 = vmatpush1.xpose.msra.mxu0 0.0
  %268 = vmatprep.subr.mxu0 0.0
  %269 = vmatpush1.xpose.msra.mxu0 0.0
  %270 = vmatprep.subr.mxu0 0.0
  %271 = vmatpush1.xpose.msra.mxu0 0.0
  %272 = vmatprep.mubr.f32.mxu0 0.0
  %273 = vmatmul.mubr.f32.gmra.mrb[0].mxu0 %v204
  %v274 = vpop.f32.mrb[0].mxu0
  %v275 = vadd.f32 0.0, %v274
  %v276 = vpop.f32.mrb[0].mxu0
  %277 = vdwg.mxu0
  %v278 = vmul.f32 %v275, 0.35355338
  %v279 = vlaneseq
  %v280 = vshrl.u32 %v279, 7
  %v281 = vsub.s32 0, %v280
  %v282 = vrot.slane %v107, %v281
  %v283 = vadd.f32 %v278, %v282
  %v284 = vsel %vm203, %v283, -inf
  %285 = vmax.xlane.f32.xlu0 %v284
  %v286 = vpop.xlane.xlu0 %285
  %v287 = vsub.f32 %v283, %v286
  %v288 = vmul.f32 %v287, 1.442695
  %v289 = vpow.pop %v288
  %v290 = vsel %vm203, %v289, 0.0
  %291 = vadd.xlane.f32.xlu0 %v290
  %v292 = vpop.xlane.xlu0 %291
  %v293 = vrcp.pop %v292
  %v294 = vmul.f32 %v289, %v293
  %295 = vrot.lane.b32.xlu0 %v192, 64
  %v296 = vpop.permute.xlu0 %295
  %v299 = vsel %vm203, %v294, 0
  %301 = vmatprep.subr.mxu0 0.0
  %302 = vmatpush1.msra.mxu0 %v296
  %303 = vmatprep.subr.mxu0 0.0
  %304 = vmatpush1.msra.mxu0 0.0
  %305 = vmatprep.subr.mxu0 0.0
  %306 = vmatpush1.msra.mxu0 0.0
  %307 = vmatprep.subr.mxu0 0.0
  %308 = vmatpush1.msra.mxu0 0.0
  %309 = vmatprep.subr.mxu0 0.0
  %310 = vmatpush1.msra.mxu0 0.0
  %311 = vmatprep.subr.mxu0 0.0
  %312 = vmatpush1.msra.mxu0 0.0
  %313 = vmatprep.subr.mxu0 0.0
  %314 = vmatpush1.msra.mxu0 0.0
  %315 = vmatprep.subr.mxu0 0.0
  %316 = vmatpush1.msra.mxu0 0.0
  %317 = vmatprep.subr.mxu0 0.0
  %318 = vmatpush1.msra.mxu0 0.0
  %319 = vmatprep.subr.mxu0 0.0
  %320 = vmatpush1.msra.mxu0 0.0
  %321 = vmatprep.subr.mxu0 0.0
  %322 = vmatpush1.msra.mxu0 0.0
  %323 = vmatprep.subr.mxu0 0.0
  %324 = vmatpush1.msra.mxu0 0.0
  %325 = vmatprep.subr.mxu0 0.0
  %326 = vmatpush1.msra.mxu0 0.0
  %327 = vmatprep.subr.mxu0 0.0
  %328 = vmatpush1.msra.mxu0 0.0
  %329 = vmatprep.subr.mxu0 0.0
  %330 = vmatpush1.msra.mxu0 0.0
  %331 = vmatprep.subr.mxu0 0.0
  %332 = vmatpush1.msra.mxu0 0.0
  %333 = vmatprep.subr.mxu0 0.0
  %334 = vmatpush1.msra.mxu0 0.0
  %335 = vmatprep.subr.mxu0 0.0
  %336 = vmatpush1.msra.mxu0 0.0
  %337 = vmatprep.subr.mxu0 0.0
  %338 = vmatpush1.msra.mxu0 0.0
  %339 = vmatprep.subr.mxu0 0.0
  %340 = vmatpush1.msra.mxu0 0.0
  %341 = vmatprep.subr.mxu0 0.0
  %342 = vmatpush1.msra.mxu0 0.0
  %343 = vmatprep.subr.mxu0 0.0
  %344 = vmatpush1.msra.mxu0 0.0
  %345 = vmatprep.subr.mxu0 0.0
  %346 = vmatpush1.msra.mxu0 0.0
  %347 = vmatprep.subr.mxu0 0.0
  %348 = vmatpush1.msra.mxu0 0.0
  %349 = vmatprep.subr.mxu0 0.0
  %350 = vmatpush1.msra.mxu0 0.0
  %351 = vmatprep.subr.mxu0 0.0
  %352 = vmatpush1.msra.mxu0 0.0
  %353 = vmatprep.subr.mxu0 0.0
  %354 = vmatpush1.msra.mxu0 0.0
  %355 = vmatprep.subr.mxu0 0.0
  %356 = vmatpush1.msra.mxu0 0.0
  %357 = vmatprep.subr.mxu0 0.0
  %358 = vmatpush1.msra.mxu0 0.0
  %359 = vmatprep.subr.mxu0 0.0
  %360 = vmatpush1.msra.mxu0 0.0
  %361 = vmatprep.subr.mxu0 0.0
  %362 = vmatpush1.msra.mxu0 0.0
  %363 = vmatprep.subr.mxu0 0.0
  %364 = vmatpush1.msra.mxu0 0.0
  %365 = vmatprep.mubr.f32.mxu0 0.0
  %366 = vmatmul.mubr.f32.gmra.mrb[0].mxu0 %v299
  %v367 = vpop.f32.mrb[0].mxu0
  %v368 = vadd.f32 0.0, %v367
  %v369 = vpop.f32.mrb[0].mxu0
  %370 = vdwg.mxu0
  %371 = vrot.lane.b32.xlu0 %v192, 120
  %v372 = vpop.permute.xlu0 %371
  %373 = vrot.lane.b32.xlu0 %v192, 88
  %v374 = vpop.permute.xlu0 %373
  %v375 = vsel %vm203, %v372, 0
  %v377 = vsel %vm203, %v374, 0
  %379 = vmatprep.subr.mxu0 0.0
  %380 = vmatpush1.xpose.msra.mxu0 %v377
  %381 = vmatprep.subr.mxu0 0.0
  %382 = vmatpush1.xpose.msra.mxu0 0.0
  %383 = vmatprep.subr.mxu0 0.0
  %384 = vmatpush1.xpose.msra.mxu0 0.0
  %385 = vmatprep.subr.mxu0 0.0
  %386 = vmatpush1.xpose.msra.mxu0 0.0
  %387 = vmatprep.subr.mxu0 0.0
  %388 = vmatpush1.xpose.msra.mxu0 0.0
  %389 = vmatprep.subr.mxu0 0.0
  %390 = vmatpush1.xpose.msra.mxu0 0.0
  %391 = vmatprep.subr.mxu0 0.0
  %392 = vmatpush1.xpose.msra.mxu0 0.0
  %393 = vmatprep.subr.mxu0 0.0
  %394 = vmatpush1.xpose.msra.mxu0 0.0
  %395 = vmatprep.subr.mxu0 0.0
  %396 = vmatpush1.xpose.msra.mxu0 0.0
  %397 = vmatprep.subr.mxu0 0.0
  %398 = vmatpush1.xpose.msra.mxu0 0.0
  %399 = vmatprep.subr.mxu0 0.0
  %400 = vmatpush1.xpose.msra.mxu0 0.0
  %401 = vmatprep.subr.mxu0 0.0
  %402 = vmatpush1.xpose.msra.mxu0 0.0
  %403 = vmatprep.subr.mxu0 0.0
  %404 = vmatpush1.xpose.msra.mxu0 0.0
  %405 = vmatprep.subr.mxu0 0.0
  %406 = vmatpush1.xpose.msra.mxu0 0.0
  %407 = vmatprep.subr.mxu0 0.0
  %408 = vmatpush1.xpose.msra.mxu0 0.0
  %409 = vmatprep.subr.mxu0 0.0
  %410 = vmatpush1.xpose.msra.mxu0 0.0
  %411 = vmatprep.subr.mxu0 0.0
  %412 = vmatpush1.xpose.msra.mxu0 0.0
  %413 = vmatprep.subr.mxu0 0.0
  %414 = vmatpush1.xpose.msra.mxu0 0.0
  %415 = vmatprep.subr.mxu0 0.0
  %416 = vmatpush1.xpose.msra.mxu0 0.0
  %417 = vmatprep.subr.mxu0 0.0
  %418 = vmatpush1.xpose.msra.mxu0 0.0
  %419 = vmatprep.subr.mxu0 0.0
  %420 = vmatpush1.xpose.msra.mxu0 0.0
  %421 = vmatprep.subr.mxu0 0.0
  %422 = vmatpush1.xpose.msra.mxu0 0.0
  %423 = vmatprep.subr.mxu0 0.0
  %424 = vmatpush1.xpose.msra.mxu0 0.0
  %425 = vmatprep.subr.mxu0 0.0
  %426 = vmatpush1.xpose.msra.mxu0 0.0
  %427 = vmatprep.subr.mxu0 0.0
  %428 = vmatpush1.xpose.msra.mxu0 0.0
  %429 = vmatprep.subr.mxu0 0.0
  %430 = vmatpush1.xpose.msra.mxu0 0.0
  %431 = vmatprep.subr.mxu0 0.0
  %432 = vmatpush1.xpose.msra.mxu0 0.0
  %433 = vmatprep.subr.mxu0 0.0
  %434 = vmatpush1.xpose.msra.mxu0 0.0
  %435 = vmatprep.subr.mxu0 0.0
  %436 = vmatpush1.xpose.msra.mxu0 0.0
  %437 = vmatprep.subr.mxu0 0.0
  %438 = vmatpush1.xpose.msra.mxu0 0.0
  %439 = vmatprep.subr.mxu0 0.0
  %440 = vmatpush1.xpose.msra.mxu0 0.0
  %441 = vmatprep.subr.mxu0 0.0
  %442 = vmatpush1.xpose.msra.mxu0 0.0
  %443 = vmatprep.mubr.f32.mxu0 0.0
  %444 = vmatmul.mubr.f32.gmra.mrb[0].mxu0 %v375
  %v445 = vpop.f32.mrb[0].mxu0
  %v446 = vadd.f32 0.0, %v445
  %v447 = vpop.f32.mrb[0].mxu0
  %448 = vdwg.mxu0
  %v449 = vmul.f32 %v446, 0.35355338
  %v450 = vadd.f32 %v449, %v282
  %v451 = vsel %vm203, %v450, -inf
  %452 = vmax.xlane.f32.xlu0 %v451
  %v453 = vpop.xlane.xlu0 %452
  %v454 = vsub.f32 %v450, %v453
  %v455 = vmul.f32 %v454, 1.442695
  %v456 = vpow.pop %v455
  %v457 = vsel %vm203, %v456, 0.0
  %458 = vadd.xlane.f32.xlu0 %v457
  %v459 = vpop.xlane.xlu0 %458
  %v460 = vrcp.pop %v459
  %v461 = vmul.f32 %v456, %v460
  %462 = vrot.lane.b32.xlu0 %v192, 56
  %v463 = vpop.permute.xlu0 %462
  %v466 = vsel %vm203, %v461, 0
  %468 = vmatprep.subr.mxu0 0.0
  %469 = vmatpush1.msra.mxu0 %v463
  %470 = vmatprep.subr.mxu0 0.0
  %471 = vmatpush1.msra.mxu0 0.0
  %472 = vmatprep.subr.mxu0 0.0
  %473 = vmatpush1.msra.mxu0 0.0
  %474 = vmatprep.subr.mxu0 0.0
  %475 = vmatpush1.msra.mxu0 0.0
  %476 = vmatprep.subr.mxu0 0.0
  %477 = vmatpush1.msra.mxu0 0.0
  %478 = vmatprep.subr.mxu0 0.0
  %479 = vmatpush1.msra.mxu0 0.0
  %480 = vmatprep.subr.mxu0 0.0
  %481 = vmatpush1.msra.mxu0 0.0
  %482 = vmatprep.subr.mxu0 0.0
  %483 = vmatpush1.msra.mxu0 0.0
  %484 = vmatprep.subr.mxu0 0.0
  %485 = vmatpush1.msra.mxu0 0.0
  %486 = vmatprep.subr.mxu0 0.0
  %487 = vmatpush1.msra.mxu0 0.0
  %488 = vmatprep.subr.mxu0 0.0
  %489 = vmatpush1.msra.mxu0 0.0
  %490 = vmatprep.subr.mxu0 0.0
  %491 = vmatpush1.msra.mxu0 0.0
  %492 = vmatprep.subr.mxu0 0.0
  %493 = vmatpush1.msra.mxu0 0.0
  %494 = vmatprep.subr.mxu0 0.0
  %495 = vmatpush1.msra.mxu0 0.0
  %496 = vmatprep.subr.mxu0 0.0
  %497 = vmatpush1.msra.mxu0 0.0
  %498 = vmatprep.subr.mxu0 0.0
  %499 = vmatpush1.msra.mxu0 0.0
  %500 = vmatprep.subr.mxu0 0.0
  %501 = vmatpush1.msra.mxu0 0.0
  %502 = vmatprep.subr.mxu0 0.0
  %503 = vmatpush1.msra.mxu0 0.0
  %504 = vmatprep.subr.mxu0 0.0
  %505 = vmatpush1.msra.mxu0 0.0
  %506 = vmatprep.subr.mxu0 0.0
  %507 = vmatpush1.msra.mxu0 0.0
  %508 = vmatprep.subr.mxu0 0.0
  %509 = vmatpush1.msra.mxu0 0.0
  %510 = vmatprep.subr.mxu0 0.0
  %511 = vmatpush1.msra.mxu0 0.0
  %512 = vmatprep.subr.mxu0 0.0
  %513 = vmatpush1.msra.mxu0 0.0
  %514 = vmatprep.subr.mxu0 0.0
  %515 = vmatpush1.msra.mxu0 0.0
  %516 = vmatprep.subr.mxu0 0.0
  %517 = vmatpush1.msra.mxu0 0.0
  %518 = vmatprep.subr.mxu0 0.0
  %519 = vmatpush1.msra.mxu0 0.0
  %520 = vmatprep.subr.mxu0 0.0
  %521 = vmatpush1.msra.mxu0 0.0
  %522 = vmatprep.subr.mxu0 0.0
  %523 = vmatpush1.msra.mxu0 0.0
  %524 = vmatprep.subr.mxu0 0.0
  %525 = vmatpush1.msra.mxu0 0.0
  %526 = vmatprep.subr.mxu0 0.0
  %527 = vmatpush1.msra.mxu0 0.0
  %528 = vmatprep.subr.mxu0 0.0
  %529 = vmatpush1.msra.mxu0 0.0
  %530 = vmatprep.subr.mxu0 0.0
  %531 = vmatpush1.msra.mxu0 0.0
  %532 = vmatprep.mubr.f32.mxu0 0.0
  %533 = vmatmul.mubr.f32.gmra.mrb[0].mxu0 %v466
  %v534 = vpop.f32.mrb[0].mxu0
  %v535 = vadd.f32 0.0, %v534
  %v536 = vpop.f32.mrb[0].mxu0
  %537 = vdwg.mxu0
  %538 = vrot.lane.b32.xlu0 %v192, 112
  %v539 = vpop.permute.xlu0 %538
  %540 = vrot.lane.b32.xlu0 %v192, 80
  %v541 = vpop.permute.xlu0 %540
  %v542 = vsel %vm203, %v539, 0
  %v544 = vsel %vm203, %v541, 0
  %546 = vmatprep.subr.mxu0 0.0
  %547 = vmatpush1.xpose.msra.mxu0 %v544
  %548 = vmatprep.subr.mxu0 0.0
  %549 = vmatpush1.xpose.msra.mxu0 0.0
  %550 = vmatprep.subr.mxu0 0.0
  %551 = vmatpush1.xpose.msra.mxu0 0.0
  %552 = vmatprep.subr.mxu0 0.0
  %553 = vmatpush1.xpose.msra.mxu0 0.0
  %554 = vmatprep.subr.mxu0 0.0
  %555 = vmatpush1.xpose.msra.mxu0 0.0
  %556 = vmatprep.subr.mxu0 0.0
  %557 = vmatpush1.xpose.msra.mxu0 0.0
  %558 = vmatprep.subr.mxu0 0.0
  %559 = vmatpush1.xpose.msra.mxu0 0.0
  %560 = vmatprep.subr.mxu0 0.0
  %561 = vmatpush1.xpose.msra.mxu0 0.0
  %562 = vmatprep.subr.mxu0 0.0
  %563 = vmatpush1.xpose.msra.mxu0 0.0
  %564 = vmatprep.subr.mxu0 0.0
  %565 = vmatpush1.xpose.msra.mxu0 0.0
  %566 = vmatprep.subr.mxu0 0.0
  %567 = vmatpush1.xpose.msra.mxu0 0.0
  %568 = vmatprep.subr.mxu0 0.0
  %569 = vmatpush1.xpose.msra.mxu0 0.0
  %570 = vmatprep.subr.mxu0 0.0
  %571 = vmatpush1.xpose.msra.mxu0 0.0
  %572 = vmatprep.subr.mxu0 0.0
  %573 = vmatpush1.xpose.msra.mxu0 0.0
  %574 = vmatprep.subr.mxu0 0.0
  %575 = vmatpush1.xpose.msra.mxu0 0.0
  %576 = vmatprep.subr.mxu0 0.0
  %577 = vmatpush1.xpose.msra.mxu0 0.0
  %578 = vmatprep.subr.mxu0 0.0
  %579 = vmatpush1.xpose.msra.mxu0 0.0
  %580 = vmatprep.subr.mxu0 0.0
  %581 = vmatpush1.xpose.msra.mxu0 0.0
  %582 = vmatprep.subr.mxu0 0.0
  %583 = vmatpush1.xpose.msra.mxu0 0.0
  %584 = vmatprep.subr.mxu0 0.0
  %585 = vmatpush1.xpose.msra.mxu0 0.0
  %586 = vmatprep.subr.mxu0 0.0
  %587 = vmatpush1.xpose.msra.mxu0 0.0
  %588 = vmatprep.subr.mxu0 0.0
  %589 = vmatpush1.xpose.msra.mxu0 0.0
  %590 = vmatprep.subr.mxu0 0.0
  %591 = vmatpush1.xpose.msra.mxu0 0.0
  %592 = vmatprep.subr.mxu0 0.0
  %593 = vmatpush1.xpose.msra.mxu0 0.0
  %594 = vmatprep.subr.mxu0 0.0
  %595 = vmatpush1.xpose.msra.mxu0 0.0
  %596 = vmatprep.subr.mxu0 0.0
  %597 = vmatpush1.xpose.msra.mxu0 0.0
  %598 = vmatprep.subr.mxu0 0.0
  %599 = vmatpush1.xpose.msra.mxu0 0.0
  %600 = vmatprep.subr.mxu0 0.0
  %601 = vmatpush1.xpose.msra.mxu0 0.0
  %602 = vmatprep.subr.mxu0 0.0
  %603 = vmatpush1.xpose.msra.mxu0 0.0
  %604 = vmatprep.subr.mxu0 0.0
  %605 = vmatpush1.xpose.msra.mxu0 0.0
  %606 = vmatprep.subr.mxu0 0.0
  %607 = vmatpush1.xpose.msra.mxu0 0.0
  %608 = vmatprep.subr.mxu0 0.0
  %609 = vmatpush1.xpose.msra.mxu0 0.0
  %610 = vmatprep.mubr.f32.mxu0 0.0
  %611 = vmatmul.mubr.f32.gmra.mrb[0].mxu0 %v542
  %v612 = vpop.f32.mrb[0].mxu0
  %v613 = vadd.f32 0.0, %v612
  %v614 = vpop.f32.mrb[0].mxu0
  %615 = vdwg.mxu0
  %v616 = vmul.f32 %v613, 0.35355338
  %v617 = vadd.f32 %v616, %v282
  %v618 = vsel %vm203, %v617, -inf
  %619 = vmax.xlane.f32.xlu0 %v618
  %v620 = vpop.xlane.xlu0 %619
  %v621 = vsub.f32 %v617, %v620
  %v622 = vmul.f32 %v621, 1.442695
  %v623 = vpow.pop %v622
  %v624 = vsel %vm203, %v623, 0.0
  %625 = vadd.xlane.f32.xlu0 %v624
  %v626 = vpop.xlane.xlu0 %625
  %v627 = vrcp.pop %v626
  %v628 = vmul.f32 %v623, %v627
  %629 = vrot.lane.b32.xlu0 %v192, 48
  %v630 = vpop.permute.xlu0 %629
  %v633 = vsel %vm203, %v628, 0
  %635 = vmatprep.subr.mxu0 0.0
  %636 = vmatpush1.msra.mxu0 %v630
  %637 = vmatprep.subr.mxu0 0.0
  %638 = vmatpush1.msra.mxu0 0.0
  %639 = vmatprep.subr.mxu0 0.0
  %640 = vmatpush1.msra.mxu0 0.0
  %641 = vmatprep.subr.mxu0 0.0
  %642 = vmatpush1.msra.mxu0 0.0
  %643 = vmatprep.subr.mxu0 0.0
  %644 = vmatpush1.msra.mxu0 0.0
  %645 = vmatprep.subr.mxu0 0.0
  %646 = vmatpush1.msra.mxu0 0.0
  %647 = vmatprep.subr.mxu0 0.0
  %648 = vmatpush1.msra.mxu0 0.0
  %649 = vmatprep.subr.mxu0 0.0
  %650 = vmatpush1.msra.mxu0 0.0
  %651 = vmatprep.subr.mxu0 0.0
  %652 = vmatpush1.msra.mxu0 0.0
  %653 = vmatprep.subr.mxu0 0.0
  %654 = vmatpush1.msra.mxu0 0.0
  %655 = vmatprep.subr.mxu0 0.0
  %656 = vmatpush1.msra.mxu0 0.0
  %657 = vmatprep.subr.mxu0 0.0
  %658 = vmatpush1.msra.mxu0 0.0
  %659 = vmatprep.subr.mxu0 0.0
  %660 = vmatpush1.msra.mxu0 0.0
  %661 = vmatprep.subr.mxu0 0.0
  %662 = vmatpush1.msra.mxu0 0.0
  %663 = vmatprep.subr.mxu0 0.0
  %664 = vmatpush1.msra.mxu0 0.0
  %665 = vmatprep.subr.mxu0 0.0
  %666 = vmatpush1.msra.mxu0 0.0
  %667 = vmatprep.subr.mxu0 0.0
  %668 = vmatpush1.msra.mxu0 0.0
  %669 = vmatprep.subr.mxu0 0.0
  %670 = vmatpush1.msra.mxu0 0.0
  %671 = vmatprep.subr.mxu0 0.0
  %672 = vmatpush1.msra.mxu0 0.0
  %673 = vmatprep.subr.mxu0 0.0
  %674 = vmatpush1.msra.mxu0 0.0
  %675 = vmatprep.subr.mxu0 0.0
  %676 = vmatpush1.msra.mxu0 0.0
  %677 = vmatprep.subr.mxu0 0.0
  %678 = vmatpush1.msra.mxu0 0.0
  %679 = vmatprep.subr.mxu0 0.0
  %680 = vmatpush1.msra.mxu0 0.0
  %681 = vmatprep.subr.mxu0 0.0
  %682 = vmatpush1.msra.mxu0 0.0
  %683 = vmatprep.subr.mxu0 0.0
  %684 = vmatpush1.msra.mxu0 0.0
  %685 = vmatprep.subr.mxu0 0.0
  %686 = vmatpush1.msra.mxu0 0.0
  %687 = vmatprep.subr.mxu0 0.0
  %688 = vmatpush1.msra.mxu0 0.0
  %689 = vmatprep.subr.mxu0 0.0
  %690 = vmatpush1.msra.mxu0 0.0
  %691 = vmatprep.subr.mxu0 0.0
  %692 = vmatpush1.msra.mxu0 0.0
  %693 = vmatprep.subr.mxu0 0.0
  %694 = vmatpush1.msra.mxu0 0.0
  %695 = vmatprep.subr.mxu0 0.0
  %696 = vmatpush1.msra.mxu0 0.0
  %697 = vmatprep.subr.mxu0 0.0
  %698 = vmatpush1.msra.mxu0 0.0
  %699 = vmatprep.mubr.f32.mxu0 0.0
  %700 = vmatmul.mubr.f32.gmra.mrb[0].mxu0 %v633
  %v701 = vpop.f32.mrb[0].mxu0
  %v702 = vadd.f32 0.0, %v701
  %v703 = vpop.f32.mrb[0].mxu0
  %704 = vdwg.mxu0
  %705 = vrot.lane.b32.xlu0 %v192, 104
  %v706 = vpop.permute.xlu0 %705
  %707 = vrot.lane.b32.xlu0 %v192, 72
  %v708 = vpop.permute.xlu0 %707
  %v709 = vsel %vm203, %v706, 0
  %v711 = vsel %vm203, %v708, 0
  %713 = vmatprep.subr.mxu0 0.0
  %714 = vmatpush1.xpose.msra.mxu0 %v711
  %715 = vmatprep.subr.mxu0 0.0
  %716 = vmatpush1.xpose.msra.mxu0 0.0
  %717 = vmatprep.subr.mxu0 0.0
  %718 = vmatpush1.xpose.msra.mxu0 0.0
  %719 = vmatprep.subr.mxu0 0.0
  %720 = vmatpush1.xpose.msra.mxu0 0.0
  %721 = vmatprep.subr.mxu0 0.0
  %722 = vmatpush1.xpose.msra.mxu0 0.0
  %723 = vmatprep.subr.mxu0 0.0
  %724 = vmatpush1.xpose.msra.mxu0 0.0
  %725 = vmatprep.subr.mxu0 0.0
  %726 = vmatpush1.xpose.msra.mxu0 0.0
  %727 = vmatprep.subr.mxu0 0.0
  %728 = vmatpush1.xpose.msra.mxu0 0.0
  %729 = vmatprep.subr.mxu0 0.0
  %730 = vmatpush1.xpose.msra.mxu0 0.0
  %731 = vmatprep.subr.mxu0 0.0
  %732 = vmatpush1.xpose.msra.mxu0 0.0
  %733 = vmatprep.subr.mxu0 0.0
  %734 = vmatpush1.xpose.msra.mxu0 0.0
  %735 = vmatprep.subr.mxu0 0.0
  %736 = vmatpush1.xpose.msra.mxu0 0.0
  %737 = vmatprep.subr.mxu0 0.0
  %738 = vmatpush1.xpose.msra.mxu0 0.0
  %739 = vmatprep.subr.mxu0 0.0
  %740 = vmatpush1.xpose.msra.mxu0 0.0
  %741 = vmatprep.subr.mxu0 0.0
  %742 = vmatpush1.xpose.msra.mxu0 0.0
  %743 = vmatprep.subr.mxu0 0.0
  %744 = vmatpush1.xpose.msra.mxu0 0.0
  %745 = vmatprep.subr.mxu0 0.0
  %746 = vmatpush1.xpose.msra.mxu0 0.0
  %747 = vmatprep.subr.mxu0 0.0
  %748 = vmatpush1.xpose.msra.mxu0 0.0
  %749 = vmatprep.subr.mxu0 0.0
  %750 = vmatpush1.xpose.msra.mxu0 0.0
  %751 = vmatprep.subr.mxu0 0.0
  %752 = vmatpush1.xpose.msra.mxu0 0.0
  %753 = vmatprep.subr.mxu0 0.0
  %754 = vmatpush1.xpose.msra.mxu0 0.0
  %755 = vmatprep.subr.mxu0 0.0
  %756 = vmatpush1.xpose.msra.mxu0 0.0
  %757 = vmatprep.subr.mxu0 0.0
  %758 = vmatpush1.xpose.msra.mxu0 0.0
  %759 = vmatprep.subr.mxu0 0.0
  %760 = vmatpush1.xpose.msra.mxu0 0.0
  %761 = vmatprep.subr.mxu0 0.0
  %762 = vmatpush1.xpose.msra.mxu0 0.0
  %763 = vmatprep.subr.mxu0 0.0
  %764 = vmatpush1.xpose.msra.mxu0 0.0
  %765 = vmatprep.subr.mxu0 0.0
  %766 = vmatpush1.xpose.msra.mxu0 0.0
  %767 = vmatprep.subr.mxu0 0.0
  %768 = vmatpush1.xpose.msra.mxu0 0.0
  %769 = vmatprep.subr.mxu0 0.0
  %770 = vmatpush1.xpose.msra.mxu0 0.0
  %771 = vmatprep.subr.mxu0 0.0
  %772 = vmatpush1.xpose.msra.mxu0 0.0
  %773 = vmatprep.subr.mxu0 0.0
  %774 = vmatpush1.xpose.msra.mxu0 0.0
  %775 = vmatprep.subr.mxu0 0.0
  %776 = vmatpush1.xpose.msra.mxu0 0.0
  %777 = vmatprep.mubr.f32.mxu0 0.0
  %778 = vmatmul.mubr.f32.gmra.mrb[0].mxu0 %v709
  %v779 = vpop.f32.mrb[0].mxu0
  %v780 = vadd.f32 0.0, %v779
  %v781 = vpop.f32.mrb[0].mxu0
  %782 = vdwg.mxu0
  %v783 = vmul.f32 %v780, 0.35355338
  %v784 = vadd.f32 %v783, %v282
  %v785 = vsel %vm203, %v784, -inf
  %786 = vmax.xlane.f32.xlu0 %v785
  %v787 = vpop.xlane.xlu0 %786
  %v788 = vsub.f32 %v784, %v787
  %v789 = vmul.f32 %v788, 1.442695
  %v790 = vpow.pop %v789
  %v791 = vsel %vm203, %v790, 0.0
  %792 = vadd.xlane.f32.xlu0 %v791
  %v793 = vpop.xlane.xlu0 %792
  %v794 = vrcp.pop %v793
  %v795 = vmul.f32 %v790, %v794
  %796 = vrot.lane.b32.xlu0 %v192, 40
  %v797 = vpop.permute.xlu0 %796
  %v800 = vsel %vm203, %v795, 0
  %802 = vmatprep.subr.mxu0 0.0
  %803 = vmatpush1.msra.mxu0 %v797
  %804 = vmatprep.subr.mxu0 0.0
  %805 = vmatpush1.msra.mxu0 0.0
  %806 = vmatprep.subr.mxu0 0.0
  %807 = vmatpush1.msra.mxu0 0.0
  %808 = vmatprep.subr.mxu0 0.0
  %809 = vmatpush1.msra.mxu0 0.0
  %810 = vmatprep.subr.mxu0 0.0
  %811 = vmatpush1.msra.mxu0 0.0
  %812 = vmatprep.subr.mxu0 0.0
  %813 = vmatpush1.msra.mxu0 0.0
  %814 = vmatprep.subr.mxu0 0.0
  %815 = vmatpush1.msra.mxu0 0.0
  %816 = vmatprep.subr.mxu0 0.0
  %817 = vmatpush1.msra.mxu0 0.0
  %818 = vmatprep.subr.mxu0 0.0
  %819 = vmatpush1.msra.mxu0 0.0
  %820 = vmatprep.subr.mxu0 0.0
  %821 = vmatpush1.msra.mxu0 0.0
  %822 = vmatprep.subr.mxu0 0.0
  %823 = vmatpush1.msra.mxu0 0.0
  %824 = vmatprep.subr.mxu0 0.0
  %825 = vmatpush1.msra.mxu0 0.0
  %826 = vmatprep.subr.mxu0 0.0
  %827 = vmatpush1.msra.mxu0 0.0
  %828 = vmatprep.subr.mxu0 0.0
  %829 = vmatpush1.msra.mxu0 0.0
  %830 = vmatprep.subr.mxu0 0.0
  %831 = vmatpush1.msra.mxu0 0.0
  %832 = vmatprep.subr.mxu0 0.0
  %833 = vmatpush1.msra.mxu0 0.0
  %834 = vmatprep.subr.mxu0 0.0
  %835 = vmatpush1.msra.mxu0 0.0
  %836 = vmatprep.subr.mxu0 0.0
  %837 = vmatpush1.msra.mxu0 0.0
  %838 = vmatprep.subr.mxu0 0.0
  %839 = vmatpush1.msra.mxu0 0.0
  %840 = vmatprep.subr.mxu0 0.0
  %841 = vmatpush1.msra.mxu0 0.0
  %842 = vmatprep.subr.mxu0 0.0
  %843 = vmatpush1.msra.mxu0 0.0
  %844 = vmatprep.subr.mxu0 0.0
  %845 = vmatpush1.msra.mxu0 0.0
  %846 = vmatprep.subr.mxu0 0.0
  %847 = vmatpush1.msra.mxu0 0.0
  %848 = vmatprep.subr.mxu0 0.0
  %849 = vmatpush1.msra.mxu0 0.0
  %850 = vmatprep.subr.mxu0 0.0
  %851 = vmatpush1.msra.mxu0 0.0
  %852 = vmatprep.subr.mxu0 0.0
  %853 = vmatpush1.msra.mxu0 0.0
  %854 = vmatprep.subr.mxu0 0.0
  %855 = vmatpush1.msra.mxu0 0.0
  %856 = vmatprep.subr.mxu0 0.0
  %857 = vmatpush1.msra.mxu0 0.0
  %858 = vmatprep.subr.mxu0 0.0
  %859 = vmatpush1.msra.mxu0 0.0
  %860 = vmatprep.subr.mxu0 0.0
  %861 = vmatpush1.msra.mxu0 0.0
  %862 = vmatprep.subr.mxu0 0.0
  %863 = vmatpush1.msra.mxu0 0.0
  %864 = vmatprep.subr.mxu0 0.0
  %865 = vmatpush1.msra.mxu0 0.0
  %866 = vmatprep.mubr.f32.mxu0 0.0
  %867 = vmatmul.mubr.f32.gmra.mrb[0].mxu0 %v800
  %v868 = vpop.f32.mrb[0].mxu0
  %v869 = vadd.f32 0.0, %v868
  %v870 = vpop.f32.mrb[0].mxu0
  %871 = vdwg.mxu0
  %873 = vrot.lane.b32.xlu0 %v535, 8
  %v874 = vpop.permute.xlu0 %873
  %877 = vrot.lane.b32.xlu0 %v702, 16
  %v878 = vpop.permute.xlu0 %877
  %881 = vrot.lane.b32.xlu0 %v869, 24
  %v882 = vpop.permute.xlu0 %881
  %v884 = vsel %vm203, %v368, %v874
  %vm885 = vcmask 130048
  %v886 = vsel %vm885, %v884, %v878
  %vm887 = vcmask 195584
  %v888 = vsel %vm887, %v886, %v882
  %890 = vrot.lane.b32.xlu0 %v197, 96
  %v891 = vpop.permute.xlu0 %890
  %v892 = vsel %vm203, %v197, 0
  %v894 = vsel %vm203, %v891, 0
  %896 = vmatprep.subr.mxu0 0.0
  %897 = vmatpush1.xpose.msra.mxu0 %v894
  %898 = vmatprep.subr.mxu0 0.0
  %899 = vmatpush1.xpose.msra.mxu0 0.0
  %900 = vmatprep.subr.mxu0 0.0
  %901 = vmatpush1.xpose.msra.mxu0 0.0
  %902 = vmatprep.subr.mxu0 0.0
  %903 = vmatpush1.xpose.msra.mxu0 0.0
  %904 = vmatprep.subr.mxu0 0.0
  %905 = vmatpush1.xpose.msra.mxu0 0.0
  %906 = vmatprep.subr.mxu0 0.0
  %907 = vmatpush1.xpose.msra.mxu0 0.0
  %908 = vmatprep.subr.mxu0 0.0
  %909 = vmatpush1.xpose.msra.mxu0 0.0
  %910 = vmatprep.subr.mxu0 0.0
  %911 = vmatpush1.xpose.msra.mxu0 0.0
  %912 = vmatprep.subr.mxu0 0.0
  %913 = vmatpush1.xpose.msra.mxu0 0.0
  %914 = vmatprep.subr.mxu0 0.0
  %915 = vmatpush1.xpose.msra.mxu0 0.0
  %916 = vmatprep.subr.mxu0 0.0
  %917 = vmatpush1.xpose.msra.mxu0 0.0
  %918 = vmatprep.subr.mxu0 0.0
  %919 = vmatpush1.xpose.msra.mxu0 0.0
  %920 = vmatprep.subr.mxu0 0.0
  %921 = vmatpush1.xpose.msra.mxu0 0.0
  %922 = vmatprep.subr.mxu0 0.0
  %923 = vmatpush1.xpose.msra.mxu0 0.0
  %924 = vmatprep.subr.mxu0 0.0
  %925 = vmatpush1.xpose.msra.mxu0 0.0
  %926 = vmatprep.subr.mxu0 0.0
  %927 = vmatpush1.xpose.msra.mxu0 0.0
  %928 = vmatprep.subr.mxu0 0.0
  %929 = vmatpush1.xpose.msra.mxu0 0.0
  %930 = vmatprep.subr.mxu0 0.0
  %931 = vmatpush1.xpose.msra.mxu0 0.0
  %932 = vmatprep.subr.mxu0 0.0
  %933 = vmatpush1.xpose.msra.mxu0 0.0
  %934 = vmatprep.subr.mxu0 0.0
  %935 = vmatpush1.xpose.msra.mxu0 0.0
  %936 = vmatprep.subr.mxu0 0.0
  %937 = vmatpush1.xpose.msra.mxu0 0.0
  %938 = vmatprep.subr.mxu0 0.0
  %939 = vmatpush1.xpose.msra.mxu0 0.0
  %940 = vmatprep.subr.mxu0 0.0
  %941 = vmatpush1.xpose.msra.mxu0 0.0
  %942 = vmatprep.subr.mxu0 0.0
  %943 = vmatpush1.xpose.msra.mxu0 0.0
  %944 = vmatprep.subr.mxu0 0.0
  %945 = vmatpush1.xpose.msra.mxu0 0.0
  %946 = vmatprep.subr.mxu0 0.0
  %947 = vmatpush1.xpose.msra.mxu0 0.0
  %948 = vmatprep.subr.mxu0 0.0
  %949 = vmatpush1.xpose.msra.mxu0 0.0
  %950 = vmatprep.subr.mxu0 0.0
  %951 = vmatpush1.xpose.msra.mxu0 0.0
  %952 = vmatprep.subr.mxu0 0.0
  %953 = vmatpush1.xpose.msra.mxu0 0.0
  %954 = vmatprep.subr.mxu0 0.0
  %955 = vmatpush1.xpose.msra.mxu0 0.0
  %956 = vmatprep.subr.mxu0 0.0
  %957 = vmatpush1.xpose.msra.mxu0 0.0
  %958 = vmatprep.subr.mxu0 0.0
  %959 = vmatpush1.xpose.msra.mxu0 0.0
  %960 = vmatprep.mubr.f32.mxu0 0.0
  %961 = vmatmul.mubr.f32.gmra.mrb[0].mxu0 %v892
  %v962 = vpop.f32.mrb[0].mxu0
  %v963 = vadd.f32 0.0, %v962
  %v964 = vpop.f32.mrb[0].mxu0
  %965 = vdwg.mxu0
  %v966 = vmul.f32 %v963, 0.35355338
  %v967 = vlaneseq
  %v968 = vshrl.u32 %v967, 7
  %v969 = vsub.s32 1, %v968
  %v970 = vrot.slane %v107, %v969
  %v971 = vadd.f32 %v966, %v970
  %v972 = vsel %vm203, %v971, -inf
  %973 = vmax.xlane.f32.xlu0 %v972
  %v974 = vpop.xlane.xlu0 %973
  %v975 = vsub.f32 %v971, %v974
  %v976 = vmul.f32 %v975, 1.442695
  %v977 = vpow.pop %v976
  %v978 = vsel %vm203, %v977, 0.0
  %979 = vadd.xlane.f32.xlu0 %v978
  %v980 = vpop.xlane.xlu0 %979
  %v981 = vrcp.pop %v980
  %v982 = vmul.f32 %v977, %v981
  %983 = vrot.lane.b32.xlu0 %v197, 64
  %v984 = vpop.permute.xlu0 %983
  %v987 = vsel %vm203, %v982, 0
  %989 = vmatprep.subr.mxu0 0.0
  %990 = vmatpush1.msra.mxu0 %v984
  %991 = vmatprep.subr.mxu0 0.0
  %992 = vmatpush1.msra.mxu0 0.0
  %993 = vmatprep.subr.mxu0 0.0
  %994 = vmatpush1.msra.mxu0 0.0
  %995 = vmatprep.subr.mxu0 0.0
  %996 = vmatpush1.msra.mxu0 0.0
  %997 = vmatprep.subr.mxu0 0.0
  %998 = vmatpush1.msra.mxu0 0.0
  %999 = vmatprep.subr.mxu0 0.0
  %1000 = vmatpush1.msra.mxu0 0.0
  %1001 = vmatprep.subr.mxu0 0.0
  %1002 = vmatpush1.msra.mxu0 0.0
  %1003 = vmatprep.subr.mxu0 0.0
  %1004 = vmatpush1.msra.mxu0 0.0
  %1005 = vmatprep.subr.mxu0 0.0
  %1006 = vmatpush1.msra.mxu0 0.0
  %1007 = vmatprep.subr.mxu0 0.0
  %1008 = vmatpush1.msra.mxu0 0.0
  %1009 = vmatprep.subr.mxu0 0.0
  %1010 = vmatpush1.msra.mxu0 0.0
  %1011 = vmatprep.subr.mxu0 0.0
  %1012 = vmatpush1.msra.mxu0 0.0
  %1013 = vmatprep.subr.mxu0 0.0
  %1014 = vmatpush1.msra.mxu0 0.0
  %1015 = vmatprep.subr.mxu0 0.0
  %1016 = vmatpush1.msra.mxu0 0.0
  %1017 = vmatprep.subr.mxu0 0.0
  %1018 = vmatpush1.msra.mxu0 0.0
  %1019 = vmatprep.subr.mxu0 0.0
  %1020 = vmatpush1.msra.mxu0 0.0
  %1021 = vmatprep.subr.mxu0 0.0
  %1022 = vmatpush1.msra.mxu0 0.0
  %1023 = vmatprep.subr.mxu0 0.0
  %1024 = vmatpush1.msra.mxu0 0.0
  %1025 = vmatprep.subr.mxu0 0.0
  %1026 = vmatpush1.msra.mxu0 0.0
  %1027 = vmatprep.subr.mxu0 0.0
  %1028 = vmatpush1.msra.mxu0 0.0
  %1029 = vmatprep.subr.mxu0 0.0
  %1030 = vmatpush1.msra.mxu0 0.0
  %1031 = vmatprep.subr.mxu0 0.0
  %1032 = vmatpush1.msra.mxu0 0.0
  %1033 = vmatprep.subr.mxu0 0.0
  %1034 = vmatpush1.msra.mxu0 0.0
  %1035 = vmatprep.subr.mxu0 0.0
  %1036 = vmatpush1.msra.mxu0 0.0
  %1037 = vmatprep.subr.mxu0 0.0
  %1038 = vmatpush1.msra.mxu0 0.0
  %1039 = vmatprep.subr.mxu0 0.0
  %1040 = vmatpush1.msra.mxu0 0.0
  %1041 = vmatprep.subr.mxu0 0.0
  %1042 = vmatpush1.msra.mxu0 0.0
  %1043 = vmatprep.subr.mxu0 0.0
  %1044 = vmatpush1.msra.mxu0 0.0
  %1045 = vmatprep.subr.mxu0 0.0
  %1046 = vmatpush1.msra.mxu0 0.0
  %1047 = vmatprep.subr.mxu0 0.0
  %1048 = vmatpush1.msra.mxu0 0.0
  %1049 = vmatprep.subr.mxu0 0.0
  %1050 = vmatpush1.msra.mxu0 0.0
  %1051 = vmatprep.subr.mxu0 0.0
  %1052 = vmatpush1.msra.mxu0 0.0
  %1053 = vmatprep.mubr.f32.mxu0 0.0
  %1054 = vmatmul.mubr.f32.gmra.mrb[0].mxu0 %v987
  %v1055 = vpop.f32.mrb[0].mxu0
  %v1056 = vadd.f32 0.0, %v1055
  %v1057 = vpop.f32.mrb[0].mxu0
  %1058 = vdwg.mxu0
  %1059 = vrot.lane.b32.xlu0 %v197, 120
  %v1060 = vpop.permute.xlu0 %1059
  %1061 = vrot.lane.b32.xlu0 %v197, 88
  %v1062 = vpop.permute.xlu0 %1061
  %v1063 = vsel %vm203, %v1060, 0
  %v1065 = vsel %vm203, %v1062, 0
  %1067 = vmatprep.subr.mxu0 0.0
  %1068 = vmatpush1.xpose.msra.mxu0 %v1065
  %1069 = vmatprep.subr.mxu0 0.0
  %1070 = vmatpush1.xpose.msra.mxu0 0.0
  %1071 = vmatprep.subr.mxu0 0.0
  %1072 = vmatpush1.xpose.msra.mxu0 0.0
  %1073 = vmatprep.subr.mxu0 0.0
  %1074 = vmatpush1.xpose.msra.mxu0 0.0
  %1075 = vmatprep.subr.mxu0 0.0
  %1076 = vmatpush1.xpose.msra.mxu0 0.0
  %1077 = vmatprep.subr.mxu0 0.0
  %1078 = vmatpush1.xpose.msra.mxu0 0.0
  %1079 = vmatprep.subr.mxu0 0.0
  %1080 = vmatpush1.xpose.msra.mxu0 0.0
  %1081 = vmatprep.subr.mxu0 0.0
  %1082 = vmatpush1.xpose.msra.mxu0 0.0
  %1083 = vmatprep.subr.mxu0 0.0
  %1084 = vmatpush1.xpose.msra.mxu0 0.0
  %1085 = vmatprep.subr.mxu0 0.0
  %1086 = vmatpush1.xpose.msra.mxu0 0.0
  %1087 = vmatprep.subr.mxu0 0.0
  %1088 = vmatpush1.xpose.msra.mxu0 0.0
  %1089 = vmatprep.subr.mxu0 0.0
  %1090 = vmatpush1.xpose.msra.mxu0 0.0
  %1091 = vmatprep.subr.mxu0 0.0
  %1092 = vmatpush1.xpose.msra.mxu0 0.0
  %1093 = vmatprep.subr.mxu0 0.0
  %1094 = vmatpush1.xpose.msra.mxu0 0.0
  %1095 = vmatprep.subr.mxu0 0.0
  %1096 = vmatpush1.xpose.msra.mxu0 0.0
  %1097 = vmatprep.subr.mxu0 0.0
  %1098 = vmatpush1.xpose.msra.mxu0 0.0
  %1099 = vmatprep.subr.mxu0 0.0
  %1100 = vmatpush1.xpose.msra.mxu0 0.0
  %1101 = vmatprep.subr.mxu0 0.0
  %1102 = vmatpush1.xpose.msra.mxu0 0.0
  %1103 = vmatprep.subr.mxu0 0.0
  %1104 = vmatpush1.xpose.msra.mxu0 0.0
  %1105 = vmatprep.subr.mxu0 0.0
  %1106 = vmatpush1.xpose.msra.mxu0 0.0
  %1107 = vmatprep.subr.mxu0 0.0
  %1108 = vmatpush1.xpose.msra.mxu0 0.0
  %1109 = vmatprep.subr.mxu0 0.0
  %1110 = vmatpush1.xpose.msra.mxu0 0.0
  %1111 = vmatprep.subr.mxu0 0.0
  %1112 = vmatpush1.xpose.msra.mxu0 0.0
  %1113 = vmatprep.subr.mxu0 0.0
  %1114 = vmatpush1.xpose.msra.mxu0 0.0
  %1115 = vmatprep.subr.mxu0 0.0
  %1116 = vmatpush1.xpose.msra.mxu0 0.0
  %1117 = vmatprep.subr.mxu0 0.0
  %1118 = vmatpush1.xpose.msra.mxu0 0.0
  %1119 = vmatprep.subr.mxu0 0.0
  %1120 = vmatpush1.xpose.msra.mxu0 0.0
  %1121 = vmatprep.subr.mxu0 0.0
  %1122 = vmatpush1.xpose.msra.mxu0 0.0
  %1123 = vmatprep.subr.mxu0 0.0
  %1124 = vmatpush1.xpose.msra.mxu0 0.0
  %1125 = vmatprep.subr.mxu0 0.0
  %1126 = vmatpush1.xpose.msra.mxu0 0.0
  %1127 = vmatprep.subr.mxu0 0.0
  %1128 = vmatpush1.xpose.msra.mxu0 0.0
  %1129 = vmatprep.subr.mxu0 0.0
  %1130 = vmatpush1.xpose.msra.mxu0 0.0
  %1131 = vmatprep.mubr.f32.mxu0 0.0
  %1132 = vmatmul.mubr.f32.gmra.mrb[0].mxu0 %v1063
  %v1133 = vpop.f32.mrb[0].mxu0
  %v1134 = vadd.f32 0.0, %v1133
  %v1135 = vpop.f32.mrb[0].mxu0
  %1136 = vdwg.mxu0
  %v1137 = vmul.f32 %v1134, 0.35355338
  %v1138 = vadd.f32 %v1137, %v970
  %v1139 = vsel %vm203, %v1138, -inf
  %1140 = vmax.xlane.f32.xlu0 %v1139
  %v1141 = vpop.xlane.xlu0 %1140
  %v1142 = vsub.f32 %v1138, %v1141
  %v1143 = vmul.f32 %v1142, 1.442695
  %v1144 = vpow.pop %v1143
  %v1145 = vsel %vm203, %v1144, 0.0
  %1146 = vadd.xlane.f32.xlu0 %v1145
  %v1147 = vpop.xlane.xlu0 %1146
  %v1148 = vrcp.pop %v1147
  %v1149 = vmul.f32 %v1144, %v1148
  %1150 = vrot.lane.b32.xlu0 %v197, 56
  %v1151 = vpop.permute.xlu0 %1150
  %v1154 = vsel %vm203, %v1149, 0
  %1156 = vmatprep.subr.mxu0 0.0
  %1157 = vmatpush1.msra.mxu0 %v1151
  %1158 = vmatprep.subr.mxu0 0.0
  %1159 = vmatpush1.msra.mxu0 0.0
  %1160 = vmatprep.subr.mxu0 0.0
  %1161 = vmatpush1.msra.mxu0 0.0
  %1162 = vmatprep.subr.mxu0 0.0
  %1163 = vmatpush1.msra.mxu0 0.0
  %1164 = vmatprep.subr.mxu0 0.0
  %1165 = vmatpush1.msra.mxu0 0.0
  %1166 = vmatprep.subr.mxu0 0.0
  %1167 = vmatpush1.msra.mxu0 0.0
  %1168 = vmatprep.subr.mxu0 0.0
  %1169 = vmatpush1.msra.mxu0 0.0
  %1170 = vmatprep.subr.mxu0 0.0
  %1171 = vmatpush1.msra.mxu0 0.0
  %1172 = vmatprep.subr.mxu0 0.0
  %1173 = vmatpush1.msra.mxu0 0.0
  %1174 = vmatprep.subr.mxu0 0.0
  %1175 = vmatpush1.msra.mxu0 0.0
  %1176 = vmatprep.subr.mxu0 0.0
  %1177 = vmatpush1.msra.mxu0 0.0
  %1178 = vmatprep.subr.mxu0 0.0
  %1179 = vmatpush1.msra.mxu0 0.0
  %1180 = vmatprep.subr.mxu0 0.0
  %1181 = vmatpush1.msra.mxu0 0.0
  %1182 = vmatprep.subr.mxu0 0.0
  %1183 = vmatpush1.msra.mxu0 0.0
  %1184 = vmatprep.subr.mxu0 0.0
  %1185 = vmatpush1.msra.mxu0 0.0
  %1186 = vmatprep.subr.mxu0 0.0
  %1187 = vmatpush1.msra.mxu0 0.0
  %1188 = vmatprep.subr.mxu0 0.0
  %1189 = vmatpush1.msra.mxu0 0.0
  %1190 = vmatprep.subr.mxu0 0.0
  %1191 = vmatpush1.msra.mxu0 0.0
  %1192 = vmatprep.subr.mxu0 0.0
  %1193 = vmatpush1.msra.mxu0 0.0
  %1194 = vmatprep.subr.mxu0 0.0
  %1195 = vmatpush1.msra.mxu0 0.0
  %1196 = vmatprep.subr.mxu0 0.0
  %1197 = vmatpush1.msra.mxu0 0.0
  %1198 = vmatprep.subr.mxu0 0.0
  %1199 = vmatpush1.msra.mxu0 0.0
  %1200 = vmatprep.subr.mxu0 0.0
  %1201 = vmatpush1.msra.mxu0 0.0
  %1202 = vmatprep.subr.mxu0 0.0
  %1203 = vmatpush1.msra.mxu0 0.0
  %1204 = vmatprep.subr.mxu0 0.0
  %1205 = vmatpush1.msra.mxu0 0.0
  %1206 = vmatprep.subr.mxu0 0.0
  %1207 = vmatpush1.msra.mxu0 0.0
  %1208 = vmatprep.subr.mxu0 0.0
  %1209 = vmatpush1.msra.mxu0 0.0
  %1210 = vmatprep.subr.mxu0 0.0
  %1211 = vmatpush1.msra.mxu0 0.0
  %1212 = vmatprep.subr.mxu0 0.0
  %1213 = vmatpush1.msra.mxu0 0.0
  %1214 = vmatprep.subr.mxu0 0.0
  %1215 = vmatpush1.msra.mxu0 0.0
  %1216 = vmatprep.subr.mxu0 0.0
  %1217 = vmatpush1.msra.mxu0 0.0
  %1218 = vmatprep.subr.mxu0 0.0
  %1219 = vmatpush1.msra.mxu0 0.0
  %1220 = vmatprep.mubr.f32.mxu0 0.0
  %1221 = vmatmul.mubr.f32.gmra.mrb[0].mxu0 %v1154
  %v1222 = vpop.f32.mrb[0].mxu0
  %v1223 = vadd.f32 0.0, %v1222
  %v1224 = vpop.f32.mrb[0].mxu0
  %1225 = vdwg.mxu0
  %1226 = vrot.lane.b32.xlu0 %v197, 112
  %v1227 = vpop.permute.xlu0 %1226
  %1228 = vrot.lane.b32.xlu0 %v197, 80
  %v1229 = vpop.permute.xlu0 %1228
  %v1230 = vsel %vm203, %v1227, 0
  %v1232 = vsel %vm203, %v1229, 0
  %1234 = vmatprep.subr.mxu0 0.0
  %1235 = vmatpush1.xpose.msra.mxu0 %v1232
  %1236 = vmatprep.subr.mxu0 0.0
  %1237 = vmatpush1.xpose.msra.mxu0 0.0
  %1238 = vmatprep.subr.mxu0 0.0
  %1239 = vmatpush1.xpose.msra.mxu0 0.0
  %1240 = vmatprep.subr.mxu0 0.0
  %1241 = vmatpush1.xpose.msra.mxu0 0.0
  %1242 = vmatprep.subr.mxu0 0.0
  %1243 = vmatpush1.xpose.msra.mxu0 0.0
  %1244 = vmatprep.subr.mxu0 0.0
  %1245 = vmatpush1.xpose.msra.mxu0 0.0
  %1246 = vmatprep.subr.mxu0 0.0
  %1247 = vmatpush1.xpose.msra.mxu0 0.0
  %1248 = vmatprep.subr.mxu0 0.0
  %1249 = vmatpush1.xpose.msra.mxu0 0.0
  %1250 = vmatprep.subr.mxu0 0.0
  %1251 = vmatpush1.xpose.msra.mxu0 0.0
  %1252 = vmatprep.subr.mxu0 0.0
  %1253 = vmatpush1.xpose.msra.mxu0 0.0
  %1254 = vmatprep.subr.mxu0 0.0
  %1255 = vmatpush1.xpose.msra.mxu0 0.0
  %1256 = vmatprep.subr.mxu0 0.0
  %1257 = vmatpush1.xpose.msra.mxu0 0.0
  %1258 = vmatprep.subr.mxu0 0.0
  %1259 = vmatpush1.xpose.msra.mxu0 0.0
  %1260 = vmatprep.subr.mxu0 0.0
  %1261 = vmatpush1.xpose.msra.mxu0 0.0
  %1262 = vmatprep.subr.mxu0 0.0
  %1263 = vmatpush1.xpose.msra.mxu0 0.0
  %1264 = vmatprep.subr.mxu0 0.0
  %1265 = vmatpush1.xpose.msra.mxu0 0.0
  %1266 = vmatprep.subr.mxu0 0.0
  %1267 = vmatpush1.xpose.msra.mxu0 0.0
  %1268 = vmatprep.subr.mxu0 0.0
  %1269 = vmatpush1.xpose.msra.mxu0 0.0
  %1270 = vmatprep.subr.mxu0 0.0
  %1271 = vmatpush1.xpose.msra.mxu0 0.0
  %1272 = vmatprep.subr.mxu0 0.0
  %1273 = vmatpush1.xpose.msra.mxu0 0.0
  %1274 = vmatprep.subr.mxu0 0.0
  %1275 = vmatpush1.xpose.msra.mxu0 0.0
  %1276 = vmatprep.subr.mxu0 0.0
  %1277 = vmatpush1.xpose.msra.mxu0 0.0
  %1278 = vmatprep.subr.mxu0 0.0
  %1279 = vmatpush1.xpose.msra.mxu0 0.0
  %1280 = vmatprep.subr.mxu0 0.0
  %1281 = vmatpush1.xpose.msra.mxu0 0.0
  %1282 = vmatprep.subr.mxu0 0.0
  %1283 = vmatpush1.xpose.msra.mxu0 0.0
  %1284 = vmatprep.subr.mxu0 0.0
  %1285 = vmatpush1.xpose.msra.mxu0 0.0
  %1286 = vmatprep.subr.mxu0 0.0
  %1287 = vmatpush1.xpose.msra.mxu0 0.0
  %1288 = vmatprep.subr.mxu0 0.0
  %1289 = vmatpush1.xpose.msra.mxu0 0.0
  %1290 = vmatprep.subr.mxu0 0.0
  %1291 = vmatpush1.xpose.msra.mxu0 0.0
  %1292 = vmatprep.subr.mxu0 0.0
  %1293 = vmatpush1.xpose.msra.mxu0 0.0
  %1294 = vmatprep.subr.mxu0 0.0
  %1295 = vmatpush1.xpose.msra.mxu0 0.0
  %1296 = vmatprep.subr.mxu0 0.0
  %1297 = vmatpush1.xpose.msra.mxu0 0.0
  %1298 = vmatprep.mubr.f32.mxu0 0.0
  %1299 = vmatmul.mubr.f32.gmra.mrb[0].mxu0 %v1230
  %v1300 = vpop.f32.mrb[0].mxu0
  %v1301 = vadd.f32 0.0, %v1300
  %v1302 = vpop.f32.mrb[0].mxu0
  %1303 = vdwg.mxu0
  %v1304 = vmul.f32 %v1301, 0.35355338
  %v1305 = vadd.f32 %v1304, %v970
  %v1306 = vsel %vm203, %v1305, -inf
  %1307 = vmax.xlane.f32.xlu0 %v1306
  %v1308 = vpop.xlane.xlu0 %1307
  %v1309 = vsub.f32 %v1305, %v1308
  %v1310 = vmul.f32 %v1309, 1.442695
  %v1311 = vpow.pop %v1310
  %v1312 = vsel %vm203, %v1311, 0.0
  %1313 = vadd.xlane.f32.xlu0 %v1312
  %v1314 = vpop.xlane.xlu0 %1313
  %v1315 = vrcp.pop %v1314
  %v1316 = vmul.f32 %v1311, %v1315
  %1317 = vrot.lane.b32.xlu0 %v197, 48
  %v1318 = vpop.permute.xlu0 %1317
  %v1321 = vsel %vm203, %v1316, 0
  %1323 = vmatprep.subr.mxu0 0.0
  %1324 = vmatpush1.msra.mxu0 %v1318
  %1325 = vmatprep.subr.mxu0 0.0
  %1326 = vmatpush1.msra.mxu0 0.0
  %1327 = vmatprep.subr.mxu0 0.0
  %1328 = vmatpush1.msra.mxu0 0.0
  %1329 = vmatprep.subr.mxu0 0.0
  %1330 = vmatpush1.msra.mxu0 0.0
  %1331 = vmatprep.subr.mxu0 0.0
  %1332 = vmatpush1.msra.mxu0 0.0
  %1333 = vmatprep.subr.mxu0 0.0
  %1334 = vmatpush1.msra.mxu0 0.0
  %1335 = vmatprep.subr.mxu0 0.0
  %1336 = vmatpush1.msra.mxu0 0.0
  %1337 = vmatprep.subr.mxu0 0.0
  %1338 = vmatpush1.msra.mxu0 0.0
  %1339 = vmatprep.subr.mxu0 0.0
  %1340 = vmatpush1.msra.mxu0 0.0
  %1341 = vmatprep.subr.mxu0 0.0
  %1342 = vmatpush1.msra.mxu0 0.0
  %1343 = vmatprep.subr.mxu0 0.0
  %1344 = vmatpush1.msra.mxu0 0.0
  %1345 = vmatprep.subr.mxu0 0.0
  %1346 = vmatpush1.msra.mxu0 0.0
  %1347 = vmatprep.subr.mxu0 0.0
  %1348 = vmatpush1.msra.mxu0 0.0
  %1349 = vmatprep.subr.mxu0 0.0
  %1350 = vmatpush1.msra.mxu0 0.0
  %1351 = vmatprep.subr.mxu0 0.0
  %1352 = vmatpush1.msra.mxu0 0.0
  %1353 = vmatprep.subr.mxu0 0.0
  %1354 = vmatpush1.msra.mxu0 0.0
  %1355 = vmatprep.subr.mxu0 0.0
  %1356 = vmatpush1.msra.mxu0 0.0
  %1357 = vmatprep.subr.mxu0 0.0
  %1358 = vmatpush1.msra.mxu0 0.0
  %1359 = vmatprep.subr.mxu0 0.0
  %1360 = vmatpush1.msra.mxu0 0.0
  %1361 = vmatprep.subr.mxu0 0.0
  %1362 = vmatpush1.msra.mxu0 0.0
  %1363 = vmatprep.subr.mxu0 0.0
  %1364 = vmatpush1.msra.mxu0 0.0
  %1365 = vmatprep.subr.mxu0 0.0
  %1366 = vmatpush1.msra.mxu0 0.0
  %1367 = vmatprep.subr.mxu0 0.0
  %1368 = vmatpush1.msra.mxu0 0.0
  %1369 = vmatprep.subr.mxu0 0.0
  %1370 = vmatpush1.msra.mxu0 0.0
  %1371 = vmatprep.subr.mxu0 0.0
  %1372 = vmatpush1.msra.mxu0 0.0
  %1373 = vmatprep.subr.mxu0 0.0
  %1374 = vmatpush1.msra.mxu0 0.0
  %1375 = vmatprep.subr.mxu0 0.0
  %1376 = vmatpush1.msra.mxu0 0.0
  %1377 = vmatprep.subr.mxu0 0.0
  %1378 = vmatpush1.msra.mxu0 0.0
  %1379 = vmatprep.subr.mxu0 0.0
  %1380 = vmatpush1.msra.mxu0 0.0
  %1381 = vmatprep.subr.mxu0 0.0
  %1382 = vmatpush1.msra.mxu0 0.0
  %1383 = vmatprep.subr.mxu0 0.0
  %1384 = vmatpush1.msra.mxu0 0.0
  %1385 = vmatprep.subr.mxu0 0.0
  %1386 = vmatpush1.msra.mxu0 0.0
  %1387 = vmatprep.mubr.f32.mxu0 0.0
  %1388 = vmatmul.mubr.f32.gmra.mrb[0].mxu0 %v1321
  %v1389 = vpop.f32.mrb[0].mxu0
  %v1390 = vadd.f32 0.0, %v1389
  %v1391 = vpop.f32.mrb[0].mxu0
  %1392 = vdwg.mxu0
  %1393 = vrot.lane.b32.xlu0 %v197, 104
  %v1394 = vpop.permute.xlu0 %1393
  %1395 = vrot.lane.b32.xlu0 %v197, 72
  %v1396 = vpop.permute.xlu0 %1395
  %v1397 = vsel %vm203, %v1394, 0
  %v1399 = vsel %vm203, %v1396, 0
  %1401 = vmatprep.subr.mxu0 0.0
  %1402 = vmatpush1.xpose.msra.mxu0 %v1399
  %1403 = vmatprep.subr.mxu0 0.0
  %1404 = vmatpush1.xpose.msra.mxu0 0.0
  %1405 = vmatprep.subr.mxu0 0.0
  %1406 = vmatpush1.xpose.msra.mxu0 0.0
  %1407 = vmatprep.subr.mxu0 0.0
  %1408 = vmatpush1.xpose.msra.mxu0 0.0
  %1409 = vmatprep.subr.mxu0 0.0
  %1410 = vmatpush1.xpose.msra.mxu0 0.0
  %1411 = vmatprep.subr.mxu0 0.0
  %1412 = vmatpush1.xpose.msra.mxu0 0.0
  %1413 = vmatprep.subr.mxu0 0.0
  %1414 = vmatpush1.xpose.msra.mxu0 0.0
  %1415 = vmatprep.subr.mxu0 0.0
  %1416 = vmatpush1.xpose.msra.mxu0 0.0
  %1417 = vmatprep.subr.mxu0 0.0
  %1418 = vmatpush1.xpose.msra.mxu0 0.0
  %1419 = vmatprep.subr.mxu0 0.0
  %1420 = vmatpush1.xpose.msra.mxu0 0.0
  %1421 = vmatprep.subr.mxu0 0.0
  %1422 = vmatpush1.xpose.msra.mxu0 0.0
  %1423 = vmatprep.subr.mxu0 0.0
  %1424 = vmatpush1.xpose.msra.mxu0 0.0
  %1425 = vmatprep.subr.mxu0 0.0
  %1426 = vmatpush1.xpose.msra.mxu0 0.0
  %1427 = vmatprep.subr.mxu0 0.0
  %1428 = vmatpush1.xpose.msra.mxu0 0.0
  %1429 = vmatprep.subr.mxu0 0.0
  %1430 = vmatpush1.xpose.msra.mxu0 0.0
  %1431 = vmatprep.subr.mxu0 0.0
  %1432 = vmatpush1.xpose.msra.mxu0 0.0
  %1433 = vmatprep.subr.mxu0 0.0
  %1434 = vmatpush1.xpose.msra.mxu0 0.0
  %1435 = vmatprep.subr.mxu0 0.0
  %1436 = vmatpush1.xpose.msra.mxu0 0.0
  %1437 = vmatprep.subr.mxu0 0.0
  %1438 = vmatpush1.xpose.msra.mxu0 0.0
  %1439 = vmatprep.subr.mxu0 0.0
  %1440 = vmatpush1.xpose.msra.mxu0 0.0
  %1441 = vmatprep.subr.mxu0 0.0
  %1442 = vmatpush1.xpose.msra.mxu0 0.0
  %1443 = vmatprep.subr.mxu0 0.0
  %1444 = vmatpush1.xpose.msra.mxu0 0.0
  %1445 = vmatprep.subr.mxu0 0.0
  %1446 = vmatpush1.xpose.msra.mxu0 0.0
  %1447 = vmatprep.subr.mxu0 0.0
  %1448 = vmatpush1.xpose.msra.mxu0 0.0
  %1449 = vmatprep.subr.mxu0 0.0
  %1450 = vmatpush1.xpose.msra.mxu0 0.0
  %1451 = vmatprep.subr.mxu0 0.0
  %1452 = vmatpush1.xpose.msra.mxu0 0.0
  %1453 = vmatprep.subr.mxu0 0.0
  %1454 = vmatpush1.xpose.msra.mxu0 0.0
  %1455 = vmatprep.subr.mxu0 0.0
  %1456 = vmatpush1.xpose.msra.mxu0 0.0
  %1457 = vmatprep.subr.mxu0 0.0
  %1458 = vmatpush1.xpose.msra.mxu0 0.0
  %1459 = vmatprep.subr.mxu0 0.0
  %1460 = vmatpush1.xpose.msra.mxu0 0.0
  %1461 = vmatprep.subr.mxu0 0.0
  %1462 = vmatpush1.xpose.msra.mxu0 0.0
  %1463 = vmatprep.subr.mxu0 0.0
  %1464 = vmatpush1.xpose.msra.mxu0 0.0
  %1465 = vmatprep.mubr.f32.mxu0 0.0
  %1466 = vmatmul.mubr.f32.gmra.mrb[0].mxu0 %v1397
  %v1467 = vpop.f32.mrb[0].mxu0
  %v1468 = vadd.f32 0.0, %v1467
  %v1469 = vpop.f32.mrb[0].mxu0
  %1470 = vdwg.mxu0
  %v1471 = vmul.f32 %v1468, 0.35355338
  %v1472 = vadd.f32 %v1471, %v970
  %v1473 = vsel %vm203, %v1472, -inf
  %1474 = vmax.xlane.f32.xlu0 %v1473
  %v1475 = vpop.xlane.xlu0 %1474
  %v1476 = vsub.f32 %v1472, %v1475
  %v1477 = vmul.f32 %v1476, 1.442695
  %v1478 = vpow.pop %v1477
  %v1479 = vsel %vm203, %v1478, 0.0
  %1480 = vadd.xlane.f32.xlu0 %v1479
  %v1481 = vpop.xlane.xlu0 %1480
  %v1482 = vrcp.pop %v1481
  %v1483 = vmul.f32 %v1478, %v1482
  %1484 = vrot.lane.b32.xlu0 %v197, 40
  %v1485 = vpop.permute.xlu0 %1484
  %v1488 = vsel %vm203, %v1483, 0
  %1490 = vmatprep.subr.mxu0 0.0
  %1491 = vmatpush1.msra.mxu0 %v1485
  %1492 = vmatprep.subr.mxu0 0.0
  %1493 = vmatpush1.msra.mxu0 0.0
  %1494 = vmatprep.subr.mxu0 0.0
  %1495 = vmatpush1.msra.mxu0 0.0
  %1496 = vmatprep.subr.mxu0 0.0
  %1497 = vmatpush1.msra.mxu0 0.0
  %1498 = vmatprep.subr.mxu0 0.0
  %1499 = vmatpush1.msra.mxu0 0.0
  %1500 = vmatprep.subr.mxu0 0.0
  %1501 = vmatpush1.msra.mxu0 0.0
  %1502 = vmatprep.subr.mxu0 0.0
  %1503 = vmatpush1.msra.mxu0 0.0
  %1504 = vmatprep.subr.mxu0 0.0
  %1505 = vmatpush1.msra.mxu0 0.0
  %1506 = vmatprep.subr.mxu0 0.0
  %1507 = vmatpush1.msra.mxu0 0.0
  %1508 = vmatprep.subr.mxu0 0.0
  %1509 = vmatpush1.msra.mxu0 0.0
  %1510 = vmatprep.subr.mxu0 0.0
  %1511 = vmatpush1.msra.mxu0 0.0
  %1512 = vmatprep.subr.mxu0 0.0
  %1513 = vmatpush1.msra.mxu0 0.0
  %1514 = vmatprep.subr.mxu0 0.0
  %1515 = vmatpush1.msra.mxu0 0.0
  %1516 = vmatprep.subr.mxu0 0.0
  %1517 = vmatpush1.msra.mxu0 0.0
  %1518 = vmatprep.subr.mxu0 0.0
  %1519 = vmatpush1.msra.mxu0 0.0
  %1520 = vmatprep.subr.mxu0 0.0
  %1521 = vmatpush1.msra.mxu0 0.0
  %1522 = vmatprep.subr.mxu0 0.0
  %1523 = vmatpush1.msra.mxu0 0.0
  %1524 = vmatprep.subr.mxu0 0.0
  %1525 = vmatpush1.msra.mxu0 0.0
  %1526 = vmatprep.subr.mxu0 0.0
  %1527 = vmatpush1.msra.mxu0 0.0
  %1528 = vmatprep.subr.mxu0 0.0
  %1529 = vmatpush1.msra.mxu0 0.0
  %1530 = vmatprep.subr.mxu0 0.0
  %1531 = vmatpush1.msra.mxu0 0.0
  %1532 = vmatprep.subr.mxu0 0.0
  %1533 = vmatpush1.msra.mxu0 0.0
  %1534 = vmatprep.subr.mxu0 0.0
  %1535 = vmatpush1.msra.mxu0 0.0
  %1536 = vmatprep.subr.mxu0 0.0
  %1537 = vmatpush1.msra.mxu0 0.0
  %1538 = vmatprep.subr.mxu0 0.0
  %1539 = vmatpush1.msra.mxu0 0.0
  %1540 = vmatprep.subr.mxu0 0.0
  %1541 = vmatpush1.msra.mxu0 0.0
  %1542 = vmatprep.subr.mxu0 0.0
  %1543 = vmatpush1.msra.mxu0 0.0
  %1544 = vmatprep.subr.mxu0 0.0
  %1545 = vmatpush1.msra.mxu0 0.0
  %1546 = vmatprep.subr.mxu0 0.0
  %1547 = vmatpush1.msra.mxu0 0.0
  %1548 = vmatprep.subr.mxu0 0.0
  %1549 = vmatpush1.msra.mxu0 0.0
  %1550 = vmatprep.subr.mxu0 0.0
  %1551 = vmatpush1.msra.mxu0 0.0
  %1552 = vmatprep.subr.mxu0 0.0
  %1553 = vmatpush1.msra.mxu0 0.0
  %1554 = vmatprep.mubr.f32.mxu0 0.0
  %1555 = vmatmul.mubr.f32.gmra.mrb[0].mxu0 %v1488
  %v1556 = vpop.f32.mrb[0].mxu0
  %v1557 = vadd.f32 0.0, %v1556
  %v1558 = vpop.f32.mrb[0].mxu0
  %1559 = vdwg.mxu0
  %1561 = vrot.lane.b32.xlu0 %v1223, 8
  %v1562 = vpop.permute.xlu0 %1561
  %1565 = vrot.lane.b32.xlu0 %v1390, 16
  %v1566 = vpop.permute.xlu0 %1565
  %1569 = vrot.lane.b32.xlu0 %v1557, 24
  %v1570 = vpop.permute.xlu0 %1569
  %v1572 = vsel %vm203, %v1056, %v1562
  %v1573 = vsel %vm885, %v1572, %v1566
  %v1574 = vsel %vm887, %v1573, %v1570
  %v1575 = vld [vmem:[%s6] sm:$0xff]
  %v1576 = vld [vmem:[%s6 + $0x8] sm:$0xff]
  %v1577 = vld [vmem:[%s6 + $0x10] sm:$0xff]
  %v1578 = vld [vmem:[%s6 + $0x18] sm:$0xff]
  %v1579 = vld [vmem:[%s7] sm:$0x1]
  %v1581 = vlaneseq
  %v1582 = vshrl.u32 %v1581, 7
  %v1583 = vsub.s32 0, %v1582
  %v1584 = vrot.slane %v1579, %v1583
  %v1587 = vsel %vm63, %v888, 0
  %v1590 = vsel %vm63, %v1574, 0
  %1592 = vmatprep.subr.mxu0 0.0
  %1593 = vmatpush1.msra.mxu0 %v1575
  %1594 = vmatprep.subr.mxu0 0.0
  %1595 = vmatpush1.msra.mxu0 %v1576
  %1596 = vmatprep.subr.mxu0 0.0
  %1597 = vmatpush1.msra.mxu0 %v1577
  %1598 = vmatprep.subr.mxu0 0.0
  %1599 = vmatpush1.msra.mxu0 %v1578
  %1600 = vmatprep.subr.mxu0 0.0
  %1601 = vmatpush1.msra.mxu0 0.0
  %1602 = vmatprep.subr.mxu0 0.0
  %1603 = vmatpush1.msra.mxu0 0.0
  %1604 = vmatprep.subr.mxu0 0.0
  %1605 = vmatpush1.msra.mxu0 0.0
  %1606 = vmatprep.subr.mxu0 0.0
  %1607 = vmatpush1.msra.mxu0 0.0
  %1608 = vmatprep.subr.mxu0 0.0
  %1609 = vmatpush1.msra.mxu0 0.0
  %1610 = vmatprep.subr.mxu0 0.0
  %1611 = vmatpush1.msra.mxu0 0.0
  %1612 = vmatprep.subr.mxu0 0.0
  %1613 = vmatpush1.msra.mxu0 0.0
  %1614 = vmatprep.subr.mxu0 0.0
  %1615 = vmatpush1.msra.mxu0 0.0
  %1616 = vmatprep.subr.mxu0 0.0
  %1617 = vmatpush1.msra.mxu0 0.0
  %1618 = vmatprep.subr.mxu0 0.0
  %1619 = vmatpush1.msra.mxu0 0.0
  %1620 = vmatprep.subr.mxu0 0.0
  %1621 = vmatpush1.msra.mxu0 0.0
  %1622 = vmatprep.subr.mxu0 0.0
  %1623 = vmatpush1.msra.mxu0 0.0
  %1624 = vmatprep.subr.mxu0 0.0
  %1625 = vmatpush1.msra.mxu0 0.0
  %1626 = vmatprep.subr.mxu0 0.0
  %1627 = vmatpush1.msra.mxu0 0.0
  %1628 = vmatprep.subr.mxu0 0.0
  %1629 = vmatpush1.msra.mxu0 0.0
  %1630 = vmatprep.subr.mxu0 0.0
  %1631 = vmatpush1.msra.mxu0 0.0
  %1632 = vmatprep.subr.mxu0 0.0
  %1633 = vmatpush1.msra.mxu0 0.0
  %1634 = vmatprep.subr.mxu0 0.0
  %1635 = vmatpush1.msra.mxu0 0.0
  %1636 = vmatprep.subr.mxu0 0.0
  %1637 = vmatpush1.msra.mxu0 0.0
  %1638 = vmatprep.subr.mxu0 0.0
  %1639 = vmatpush1.msra.mxu0 0.0
  %1640 = vmatprep.subr.mxu0 0.0
  %1641 = vmatpush1.msra.mxu0 0.0
  %1642 = vmatprep.subr.mxu0 0.0
  %1643 = vmatpush1.msra.mxu0 0.0
  %1644 = vmatprep.subr.mxu0 0.0
  %1645 = vmatpush1.msra.mxu0 0.0
  %1646 = vmatprep.subr.mxu0 0.0
  %1647 = vmatpush1.msra.mxu0 0.0
  %1648 = vmatprep.subr.mxu0 0.0
  %1649 = vmatpush1.msra.mxu0 0.0
  %1650 = vmatprep.subr.mxu0 0.0
  %1651 = vmatpush1.msra.mxu0 0.0
  %1652 = vmatprep.subr.mxu0 0.0
  %1653 = vmatpush1.msra.mxu0 0.0
  %1654 = vmatprep.subr.mxu0 0.0
  %1655 = vmatpush1.msra.mxu0 0.0
  %1656 = vmatprep.mubr.f32.mxu0 0.0
  %1657 = vmatmul.mubr.f32.gmra.mrb[0].mxu0 %v1587
  %v1658 = vpop.f32.mrb[0].mxu0
  %v1659 = vadd.f32 %v1584, %v1658
  %v1660 = vpop.f32.mrb[0].mxu0
  %1661 = vmatprep.mubr.f32.mxu0 0.0
  %1662 = vmatmul.mubr.f32.gmra.mrb[0].mxu0 %v1590
  %v1663 = vpop.f32.mrb[0].mxu0
  %v1664 = vadd.f32 %v1584, %v1663
  %v1665 = vpop.f32.mrb[0].mxu0
  %1666 = vdwg.mxu0
  %v1667 = vadd.f32 %v1659, %v105
  %v1668 = vadd.f32 %v1664, %v106
  %v1669 = vld [vmem:[%s8] sm:$0x1]
  %v1670 = vld [vmem:[%s9] sm:$0x1]
  %v1671 = vsel %vm63, %v1667, 0.0
  %1672 = vadd.xlane.f32.xlu0 %v1671
  %v1673 = vpop.xlane.xlu0 %1672
  %v1674 = vsel %vm63, %v1668, 0.0
  %1675 = vadd.xlane.f32.xlu0 %v1674
  %v1676 = vpop.xlane.xlu0 %1675
  %v1677 = vmul.f32 %v1673, %v70
  %v1678 = vmul.f32 %v1676, %v70
  %v1679 = vsub.f32 %v1667, %v1677
  %v1680 = vsub.f32 %v1668, %v1678
  %v1681 = vmul.f32 %v1679, %v1679
  %v1682 = vmul.f32 %v1680, %v1680
  %v1683 = vsel %vm63, %v1681, 0.0
  %1684 = vadd.xlane.f32.xlu0 %v1683
  %v1685 = vpop.xlane.xlu0 %1684
  %v1686 = vsel %vm63, %v1682, 0.0
  %1687 = vadd.xlane.f32.xlu0 %v1686
  %v1688 = vpop.xlane.xlu0 %1687
  %v1689 = vmul.f32 %v1685, %v70
  %v1690 = vmul.f32 %v1688, %v70
  %v1691 = vadd.f32 %v1689, 1e-12
  %v1692 = vadd.f32 %v1690, 1e-12
  %v1693 = vrsqrt.pop %v1691
  %v1694 = vrsqrt.pop %v1692
  %v1695 = vmul.f32 %v1679, %v1693
  %v1696 = vmul.f32 %v1680, %v1694
  %v1698 = vlaneseq
  %v1699 = vshrl.u32 %v1698, 7
  %v1700 = vsub.s32 0, %v1699
  %v1701 = vrot.slane %v1669, %v1700
  %v1703 = vmul.f32 %v1695, %v1701
  %v1704 = vmul.f32 %v1696, %v1701
  %v1706 = vlaneseq
  %v1707 = vshrl.u32 %v1706, 7
  %v1708 = vsub.s32 0, %v1707
  %v1709 = vrot.slane %v1670, %v1708
  %v1711 = vadd.f32 %v1703, %v1709
  %v1712 = vadd.f32 %v1704, %v1709
  %v1713 = vld [vmem:[%s10] sm:$0xff]
  %v1714 = vld [vmem:[%s10 + $0x8] sm:$0xff]
  %v1715 = vld [vmem:[%s10 + $0x10] sm:$0xff]
  %v1716 = vld [vmem:[%s10 + $0x18] sm:$0xff]
  %v1717 = vld [vmem:[%s11] sm:$0x1]
  %v1719 = vlaneseq
  %v1720 = vshrl.u32 %v1719, 7
  %v1721 = vsub.s32 0, %v1720
  %v1722 = vrot.slane %v1717, %v1721
  %v1725 = vsel %vm63, %v1711, 0
  %v1728 = vsel %vm63, %v1712, 0
  %1730 = vmatprep.subr.mxu0 0.0
  %1731 = vmatpush1.msra.mxu0 %v1713
  %1732 = vmatprep.subr.mxu0 0.0
  %1733 = vmatpush1.msra.mxu0 %v1714
  %1734 = vmatprep.subr.mxu0 0.0
  %1735 = vmatpush1.msra.mxu0 %v1715
  %1736 = vmatprep.subr.mxu0 0.0
  %1737 = vmatpush1.msra.mxu0 %v1716
  %1738 = vmatprep.subr.mxu0 0.0
  %1739 = vmatpush1.msra.mxu0 0.0
  %1740 = vmatprep.subr.mxu0 0.0
  %1741 = vmatpush1.msra.mxu0 0.0
  %1742 = vmatprep.subr.mxu0 0.0
  %1743 = vmatpush1.msra.mxu0 0.0
  %1744 = vmatprep.subr.mxu0 0.0
  %1745 = vmatpush1.msra.mxu0 0.0
  %1746 = vmatprep.subr.mxu0 0.0
  %1747 = vmatpush1.msra.mxu0 0.0
  %1748 = vmatprep.subr.mxu0 0.0
  %1749 = vmatpush1.msra.mxu0 0.0
  %1750 = vmatprep.subr.mxu0 0.0
  %1751 = vmatpush1.msra.mxu0 0.0
  %1752 = vmatprep.subr.mxu0 0.0
  %1753 = vmatpush1.msra.mxu0 0.0
  %1754 = vmatprep.subr.mxu0 0.0
  %1755 = vmatpush1.msra.mxu0 0.0
  %1756 = vmatprep.subr.mxu0 0.0
  %1757 = vmatpush1.msra.mxu0 0.0
  %1758 = vmatprep.subr.mxu0 0.0
  %1759 = vmatpush1.msra.mxu0 0.0
  %1760 = vmatprep.subr.mxu0 0.0
  %1761 = vmatpush1.msra.mxu0 0.0
  %1762 = vmatprep.subr.mxu0 0.0
  %1763 = vmatpush1.msra.mxu0 0.0
  %1764 = vmatprep.subr.mxu0 0.0
  %1765 = vmatpush1.msra.mxu0 0.0
  %1766 = vmatprep.subr.mxu0 0.0
  %1767 = vmatpush1.msra.mxu0 0.0
  %1768 = vmatprep.subr.mxu0 0.0
  %1769 = vmatpush1.msra.mxu0 0.0
  %1770 = vmatprep.subr.mxu0 0.0
  %1771 = vmatpush1.msra.mxu0 0.0
  %1772 = vmatprep.subr.mxu0 0.0
  %1773 = vmatpush1.msra.mxu0 0.0
  %1774 = vmatprep.subr.mxu0 0.0
  %1775 = vmatpush1.msra.mxu0 0.0
  %1776 = vmatprep.subr.mxu0 0.0
  %1777 = vmatpush1.msra.mxu0 0.0
  %1778 = vmatprep.subr.mxu0 0.0
  %1779 = vmatpush1.msra.mxu0 0.0
  %1780 = vmatprep.subr.mxu0 0.0
  %1781 = vmatpush1.msra.mxu0 0.0
  %1782 = vmatprep.subr.mxu0 0.0
  %1783 = vmatpush1.msra.mxu0 0.0
  %1784 = vmatprep.subr.mxu0 0.0
  %1785 = vmatpush1.msra.mxu0 0.0
  %1786 = vmatprep.subr.mxu0 0.0
  %1787 = vmatpush1.msra.mxu0 0.0
  %1788 = vmatprep.subr.mxu0 0.0
  %1789 = vmatpush1.msra.mxu0 0.0
  %1790 = vmatprep.subr.mxu0 0.0
  %1791 = vmatpush1.msra.mxu0 0.0
  %1792 = vmatprep.subr.mxu0 0.0
  %1793 = vmatpush1.msra.mxu0 0.0
  %1794 = vmatprep.mubr.f32.mxu0 0.0
  %1795 = vmatmul.mubr.f32.gmra.mrb[0].mxu0 %v1725
  %v1796 = vpop.f32.mrb[0].mxu0
  %v1797 = vadd.f32 %v1722, %v1796
  %v1798 = vpop.f32.mrb[0].mxu0
  %1799 = vmatprep.mubr.f32.mxu0 0.0
  %1800 = vmatmul.mubr.f32.gmra.mrb[0].mxu0 %v1728
  %v1801 = vpop.f32.mrb[0].mxu0
  %v1802 = vadd.f32 %v1722, %v1801
  %v1803 = vpop.f32.mrb[0].mxu0
  %1804 = vdwg.mxu0
  %v1805 = vmul.f32 %v1797, 0.5
  %v1806 = vmul.f32 %v1802, 0.5
  %v1807 = vmul.f32 %v1797, 0.044715
  %v1808 = vmul.f32 %v1802, 0.044715
  %v1809 = vmul.f32 %v1807, %v1797
  %v1810 = vmul.f32 %v1808, %v1802
  %v1811 = vmul.f32 %v1809, %v1797
  %v1812 = vmul.f32 %v1810, %v1802
  %v1813 = vadd.f32 %v1797, %v1811
  %v1814 = vadd.f32 %v1802, %v1812
  %v1815 = vmul.f32 %v1813, 0.7978846
  %v1816 = vmul.f32 %v1814, 0.7978846
  %v1817 = vtanh.pop %v1815
  %v1818 = vtanh.pop %v1816
  %v1819 = vadd.f32 %v1817, 1.0
  %v1820 = vadd.f32 %v1818, 1.0
  %v1821 = vmul.f32 %v1805, %v1819
  %v1822 = vmul.f32 %v1806, %v1820
  %v1823 = vld [vmem:[%s12] sm:$0xff]
  %v1824 = vld [vmem:[%s12 + $0x8] sm:$0xff]
  %v1825 = vld [vmem:[%s12 + $0x10] sm:$0xff]
  %v1826 = vld [vmem:[%s12 + $0x18] sm:$0xff]
  %v1827 = vld [vmem:[%s12 + $0x20] sm:$0xff]
  %v1828 = vld [vmem:[%s12 + $0x28] sm:$0xff]
  %v1829 = vld [vmem:[%s12 + $0x30] sm:$0xff]
  %v1830 = vld [vmem:[%s12 + $0x38] sm:$0xff]
  %v1831 = vld [vmem:[%s13] sm:$0x1]
  %v1833 = vlaneseq
  %v1834 = vshrl.u32 %v1833, 7
  %v1835 = vsub.s32 0, %v1834
  %v1836 = vrot.slane %v1831, %v1835
  %vm1838 = vcmask 523264
  %v1840 = vsel %vm1838, %v1821, 0
  %v1843 = vsel %vm1838, %v1822, 0
  %1845 = vmatprep.subr.mxu0 0.0
  %1846 = vmatpush1.msra.mxu0 %v1823
  %1847 = vmatprep.subr.mxu0 0.0
  %1848 = vmatpush1.msra.mxu0 %v1824
  %1849 = vmatprep.subr.mxu0 0.0
  %1850 = vmatpush1.msra.mxu0 %v1825
  %1851 = vmatprep.subr.mxu0 0.0
  %1852 = vmatpush1.msra.mxu0 %v1826
  %1853 = vmatprep.subr.mxu0 0.0
  %1854 = vmatpush1.msra.mxu0 %v1827
  %1855 = vmatprep.subr.mxu0 0.0
  %1856 = vmatpush1.msra.mxu0 %v1828
  %1857 = vmatprep.subr.mxu0 0.0
  %1858 = vmatpush1.msra.mxu0 %v1829
  %1859 = vmatprep.subr.mxu0 0.0
  %1860 = vmatpush1.msra.mxu0 %v1830
  %1861 = vmatprep.subr.mxu0 0.0
  %1862 = vmatpush1.msra.mxu0 0.0
  %1863 = vmatprep.subr.mxu0 0.0
  %1864 = vmatpush1.msra.mxu0 0.0
  %1865 = vmatprep.subr.mxu0 0.0
  %1866 = vmatpush1.msra.mxu0 0.0
  %1867 = vmatprep.subr.mxu0 0.0
  %1868 = vmatpush1.msra.mxu0 0.0
  %1869 = vmatprep.subr.mxu0 0.0
  %1870 = vmatpush1.msra.mxu0 0.0
  %1871 = vmatprep.subr.mxu0 0.0
  %1872 = vmatpush1.msra.mxu0 0.0
  %1873 = vmatprep.subr.mxu0 0.0
  %1874 = vmatpush1.msra.mxu0 0.0
  %1875 = vmatprep.subr.mxu0 0.0
  %1876 = vmatpush1.msra.mxu0 0.0
  %1877 = vmatprep.subr.mxu0 0.0
  %1878 = vmatpush1.msra.mxu0 0.0
  %1879 = vmatprep.subr.mxu0 0.0
  %1880 = vmatpush1.msra.mxu0 0.0
  %1881 = vmatprep.subr.mxu0 0.0
  %1882 = vmatpush1.msra.mxu0 0.0
  %1883 = vmatprep.subr.mxu0 0.0
  %1884 = vmatpush1.msra.mxu0 0.0
  %1885 = vmatprep.subr.mxu0 0.0
  %1886 = vmatpush1.msra.mxu0 0.0
  %1887 = vmatprep.subr.mxu0 0.0
  %1888 = vmatpush1.msra.mxu0 0.0
  %1889 = vmatprep.subr.mxu0 0.0
  %1890 = vmatpush1.msra.mxu0 0.0
  %1891 = vmatprep.subr.mxu0 0.0
  %1892 = vmatpush1.msra.mxu0 0.0
  %1893 = vmatprep.subr.mxu0 0.0
  %1894 = vmatpush1.msra.mxu0 0.0
  %1895 = vmatprep.subr.mxu0 0.0
  %1896 = vmatpush1.msra.mxu0 0.0
  %1897 = vmatprep.subr.mxu0 0.0
  %1898 = vmatpush1.msra.mxu0 0.0
  %1899 = vmatprep.subr.mxu0 0.0
  %1900 = vmatpush1.msra.mxu0 0.0
  %1901 = vmatprep.subr.mxu0 0.0
  %1902 = vmatpush1.msra.mxu0 0.0
  %1903 = vmatprep.subr.mxu0 0.0
  %1904 = vmatpush1.msra.mxu0 0.0
  %1905 = vmatprep.subr.mxu0 0.0
  %1906 = vmatpush1.msra.mxu0 0.0
  %1907 = vmatprep.subr.mxu0 0.0
  %1908 = vmatpush1.msra.mxu0 0.0
  %1909 = vmatprep.mubr.f32.mxu0 0.0
  %1910 = vmatmul.mubr.f32.gmra.mrb[0].mxu0 %v1840
  %v1911 = vpop.f32.mrb[0].mxu0
  %v1912 = vadd.f32 %v1836, %v1911
  %v1913 = vpop.f32.mrb[0].mxu0
  %1914 = vmatprep.mubr.f32.mxu0 0.0
  %1915 = vmatmul.mubr.f32.gmra.mrb[0].mxu0 %v1843
  %v1916 = vpop.f32.mrb[0].mxu0
  %v1917 = vadd.f32 %v1836, %v1916
  %v1918 = vpop.f32.mrb[0].mxu0
  %1919 = vdwg.mxu0
  %v1920 = vadd.f32 %v1912, %v1711
  %v1921 = vadd.f32 %v1917, %v1712
  %v1922 = vld [vmem:[%s14] sm:$0x1]
  %v1923 = vld [vmem:[%s15] sm:$0x1]
  %v1924 = vsel %vm63, %v1920, 0.0
  %1925 = vadd.xlane.f32.xlu0 %v1924
  %v1926 = vpop.xlane.xlu0 %1925
  %v1927 = vsel %vm63, %v1921, 0.0
  %1928 = vadd.xlane.f32.xlu0 %v1927
  %v1929 = vpop.xlane.xlu0 %1928
  %v1930 = vmul.f32 %v1926, %v70
  %v1931 = vmul.f32 %v1929, %v70
  %v1932 = vsub.f32 %v1920, %v1930
  %v1933 = vsub.f32 %v1921, %v1931
  %v1934 = vmul.f32 %v1932, %v1932
  %v1935 = vmul.f32 %v1933, %v1933
  %v1936 = vsel %vm63, %v1934, 0.0
  %1937 = vadd.xlane.f32.xlu0 %v1936
  %v1938 = vpop.xlane.xlu0 %1937
  %v1939 = vsel %vm63, %v1935, 0.0
  %1940 = vadd.xlane.f32.xlu0 %v1939
  %v1941 = vpop.xlane.xlu0 %1940
  %v1942 = vmul.f32 %v1938, %v70
  %v1943 = vmul.f32 %v1941, %v70
  %v1944 = vadd.f32 %v1942, 1e-12
  %v1945 = vadd.f32 %v1943, 1e-12
  %v1946 = vrsqrt.pop %v1944
  %v1947 = vrsqrt.pop %v1945
  %v1948 = vmul.f32 %v1932, %v1946
  %v1949 = vmul.f32 %v1933, %v1947
  %v1951 = vlaneseq
  %v1952 = vshrl.u32 %v1951, 7
  %v1953 = vsub.s32 0, %v1952
  %v1954 = vrot.slane %v1922, %v1953
  %v1956 = vmul.f32 %v1948, %v1954
  %v1957 = vmul.f32 %v1949, %v1954
  %v1959 = vlaneseq
  %v1960 = vshrl.u32 %v1959, 7
  %v1961 = vsub.s32 0, %v1960
  %v1962 = vrot.slane %v1923, %v1961
  %v1964 = vadd.f32 %v1956, %v1962
  %v1965 = vadd.f32 %v1957, %v1962
  %s1966 = scalar_lea.vmem %s4, 32
  %v1967 = vld [vmem:[%s1966] sm:$0xff]
  %v1968 = vld [vmem:[%s1966 + $0x8] sm:$0xff]
  %v1969 = vld [vmem:[%s1966 + $0x10] sm:$0xff]
  %v1970 = vld [vmem:[%s1966 + $0x18] sm:$0xff]
  %s1971 = scalar_lea.vmem %s5, 1
  %v1972 = vld [vmem:[%s1971] sm:$0x1]
  %v1974 = vlaneseq
  %v1975 = vshrl.u32 %v1974, 7
  %v1976 = vsub.s32 0, %v1975
  %v1977 = vrot.slane %v1972, %v1976
  %v1980 = vsel %vm63, %v1964, 0
  %v1983 = vsel %vm63, %v1965, 0
  %1985 = vmatprep.subr.mxu0 0.0
  %1986 = vmatpush1.msra.mxu0 %v1967
  %1987 = vmatprep.subr.mxu0 0.0
  %1988 = vmatpush1.msra.mxu0 %v1968
  %1989 = vmatprep.subr.mxu0 0.0
  %1990 = vmatpush1.msra.mxu0 %v1969
  %1991 = vmatprep.subr.mxu0 0.0
  %1992 = vmatpush1.msra.mxu0 %v1970
  %1993 = vmatprep.subr.mxu0 0.0
  %1994 = vmatpush1.msra.mxu0 0.0
  %1995 = vmatprep.subr.mxu0 0.0
  %1996 = vmatpush1.msra.mxu0 0.0
  %1997 = vmatprep.subr.mxu0 0.0
  %1998 = vmatpush1.msra.mxu0 0.0
  %1999 = vmatprep.subr.mxu0 0.0
  %2000 = vmatpush1.msra.mxu0 0.0
  %2001 = vmatprep.subr.mxu0 0.0
  %2002 = vmatpush1.msra.mxu0 0.0
  %2003 = vmatprep.subr.mxu0 0.0
  %2004 = vmatpush1.msra.mxu0 0.0
  %2005 = vmatprep.subr.mxu0 0.0
  %2006 = vmatpush1.msra.mxu0 0.0
  %2007 = vmatprep.subr.mxu0 0.0
  %2008 = vmatpush1.msra.mxu0 0.0
  %2009 = vmatprep.subr.mxu0 0.0
  %2010 = vmatpush1.msra.mxu0 0.0
  %2011 = vmatprep.subr.mxu0 0.0
  %2012 = vmatpush1.msra.mxu0 0.0
  %2013 = vmatprep.subr.mxu0 0.0
  %2014 = vmatpush1.msra.mxu0 0.0
  %2015 = vmatprep.subr.mxu0 0.0
  %2016 = vmatpush1.msra.mxu0 0.0
  %2017 = vmatprep.subr.mxu0 0.0
  %2018 = vmatpush1.msra.mxu0 0.0
  %2019 = vmatprep.subr.mxu0 0.0
  %2020 = vmatpush1.msra.mxu0 0.0
  %2021 = vmatprep.subr.mxu0 0.0
  %2022 = vmatpush1.msra.mxu0 0.0
  %2023 = vmatprep.subr.mxu0 0.0
  %2024 = vmatpush1.msra.mxu0 0.0
  %2025 = vmatprep.subr.mxu0 0.0
  %2026 = vmatpush1.msra.mxu0 0.0
  %2027 = vmatprep.subr.mxu0 0.0
  %2028 = vmatpush1.msra.mxu0 0.0
  %2029 = vmatprep.subr.mxu0 0.0
  %2030 = vmatpush1.msra.mxu0 0.0
  %2031 = vmatprep.subr.mxu0 0.0
  %2032 = vmatpush1.msra.mxu0 0.0
  %2033 = vmatprep.subr.mxu0 0.0
  %2034 = vmatpush1.msra.mxu0 0.0
  %2035 = vmatprep.subr.mxu0 0.0
  %2036 = vmatpush1.msra.mxu0 0.0
  %2037 = vmatprep.subr.mxu0 0.0
  %2038 = vmatpush1.msra.mxu0 0.0
  %2039 = vmatprep.subr.mxu0 0.0
  %2040 = vmatpush1.msra.mxu0 0.0
  %2041 = vmatprep.subr.mxu0 0.0
  %2042 = vmatpush1.msra.mxu0 0.0
  %2043 = vmatprep.subr.mxu0 0.0
  %2044 = vmatpush1.msra.mxu0 0.0
  %2045 = vmatprep.subr.mxu0 0.0
  %2046 = vmatpush1.msra.mxu0 0.0
  %2047 = vmatprep.subr.mxu0 0.0
  %2048 = vmatpush1.msra.mxu0 0.0
  %2049 = vmatprep.mubr.f32.mxu0 0.0
  %2050 = vmatmul.mubr.f32.gmra.mrb[0].mxu0 %v1980
  %v2051 = vpop.f32.mrb[0].mxu0
  %v2052 = vadd.f32 %v1977, %v2051
  %v2053 = vpop.f32.mrb[0].mxu0
  %2054 = vmatprep.mubr.f32.mxu0 0.0
  %2055 = vmatmul.mubr.f32.gmra.mrb[0].mxu0 %v1983
  %v2056 = vpop.f32.mrb[0].mxu0
  %v2057 = vadd.f32 %v1977, %v2056
  %v2058 = vpop.f32.mrb[0].mxu0
  %2059 = vdwg.mxu0
  %2061 = vrot.lane.b32.xlu0 %v2052, 96
  %v2062 = vpop.permute.xlu0 %2061
  %v2063 = vsel %vm203, %v2052, 0
  %v2065 = vsel %vm203, %v2062, 0
  %2067 = vmatprep.subr.mxu0 0.0
  %2068 = vmatpush1.xpose.msra.mxu0 %v2065
  %2069 = vmatprep.subr.mxu0 0.0
  %2070 = vmatpush1.xpose.msra.mxu0 0.0
  %2071 = vmatprep.subr.mxu0 0.0
  %2072 = vmatpush1.xpose.msra.mxu0 0.0
  %2073 = vmatprep.subr.mxu0 0.0
  %2074 = vmatpush1.xpose.msra.mxu0 0.0
  %2075 = vmatprep.subr.mxu0 0.0
  %2076 = vmatpush1.xpose.msra.mxu0 0.0
  %2077 = vmatprep.subr.mxu0 0.0
  %2078 = vmatpush1.xpose.msra.mxu0 0.0
  %2079 = vmatprep.subr.mxu0 0.0
  %2080 = vmatpush1.xpose.msra.mxu0 0.0
  %2081 = vmatprep.subr.mxu0 0.0
  %2082 = vmatpush1.xpose.msra.mxu0 0.0
  %2083 = vmatprep.subr.mxu0 0.0
  %2084 = vmatpush1.xpose.msra.mxu0 0.0
  %2085 = vmatprep.subr.mxu0 0.0
  %2086 = vmatpush1.xpose.msra.mxu0 0.0
  %2087 = vmatprep.subr.mxu0 0.0
  %2088 = vmatpush1.xpose.msra.mxu0 0.0
  %2089 = vmatprep.subr.mxu0 0.0
  %2090 = vmatpush1.xpose.msra.mxu0 0.0
  %2091 = vmatprep.subr.mxu0 0.0
  %2092 = vmatpush1.xpose.msra.mxu0 0.0
  %2093 = vmatprep.subr.mxu0 0.0
  %2094 = vmatpush1.xpose.msra.mxu0 0.0
  %2095 = vmatprep.subr.mxu0 0.0
  %2096 = vmatpush1.xpose.msra.mxu0 0.0
  %2097 = vmatprep.subr.mxu0 0.0
  %2098 = vmatpush1.xpose.msra.mxu0 0.0
  %2099 = vmatprep.subr.mxu0 0.0
  %2100 = vmatpush1.xpose.msra.mxu0 0.0
  %2101 = vmatprep.subr.mxu0 0.0
  %2102 = vmatpush1.xpose.msra.mxu0 0.0
  %2103 = vmatprep.subr.mxu0 0.0
  %2104 = vmatpush1.xpose.msra.mxu0 0.0
  %2105 = vmatprep.subr.mxu0 0.0
  %2106 = vmatpush1.xpose.msra.mxu0 0.0
  %2107 = vmatprep.subr.mxu0 0.0
  %2108 = vmatpush1.xpose.msra.mxu0 0.0
  %2109 = vmatprep.subr.mxu0 0.0
  %2110 = vmatpush1.xpose.msra.mxu0 0.0
  %2111 = vmatprep.subr.mxu0 0.0
  %2112 = vmatpush1.xpose.msra.mxu0 0.0
  %2113 = vmatprep.subr.mxu0 0.0
  %2114 = vmatpush1.xpose.msra.mxu0 0.0
  %2115 = vmatprep.subr.mxu0 0.0
  %2116 = vmatpush1.xpose.msra.mxu0 0.0
  %2117 = vmatprep.subr.mxu0 0.0
  %2118 = vmatpush1.xpose.msra.mxu0 0.0
  %2119 = vmatprep.subr.mxu0 0.0
  %2120 = vmatpush1.xpose.msra.mxu0 0.0
  %2121 = vmatprep.subr.mxu0 0.0
  %2122 = vmatpush1.xpose.msra.mxu0 0.0
  %2123 = vmatprep.subr.mxu0 0.0
  %2124 = vmatpush1.xpose.msra.mxu0 0.0
  %2125 = vmatprep.subr.mxu0 0.0
  %2126 = vmatpush1.xpose.msra.mxu0 0.0
  %2127 = vmatprep.subr.mxu0 0.0
  %2128 = vmatpush1.xpose.msra.mxu0 0.0
  %2129 = vmatprep.subr.mxu0 0.0
  %2130 = vmatpush1.xpose.msra.mxu0 0.0
  %2131 = vmatprep.mubr.f32.mxu0 0.0
  %2132 = vmatmul.mubr.f32.gmra.mrb[0].mxu0 %v2063
  %v2133 = vpop.f32.mrb[0].mxu0
  %v2134 = vadd.f32 0.0, %v2133
  %v2135 = vpop.f32.mrb[0].mxu0
  %2136 = vdwg.mxu0
  %v2137 = vmul.f32 %v2134, 0.35355338
  %v2138 = vadd.f32 %v2137, %v282
  %v2139 = vsel %vm203, %v2138, -inf
  %2140 = vmax.xlane.f32.xlu0 %v2139
  %v2141 = vpop.xlane.xlu0 %2140
  %v2142 = vsub.f32 %v2138, %v2141
  %v2143 = vmul.f32 %v2142, 1.442695
  %v2144 = vpow.pop %v2143
  %v2145 = vsel %vm203, %v2144, 0.0
  %2146 = vadd.xlane.f32.xlu0 %v2145
  %v2147 = vpop.xlane.xlu0 %2146
  %v2148 = vrcp.pop %v2147
  %v2149 = vmul.f32 %v2144, %v2148
  %2150 = vrot.lane.b32.xlu0 %v2052, 64
  %v2151 = vpop.permute.xlu0 %2150
  %v2154 = vsel %vm203, %v2149, 0
  %2156 = vmatprep.subr.mxu0 0.0
  %2157 = vmatpush1.msra.mxu0 %v2151
  %2158 = vmatprep.subr.mxu0 0.0
  %2159 = vmatpush1.msra.mxu0 0.0
  %2160 = vmatprep.subr.mxu0 0.0
  %2161 = vmatpush1.msra.mxu0 0.0
  %2162 = vmatprep.subr.mxu0 0.0
  %2163 = vmatpush1.msra.mxu0 0.0
  %2164 = vmatprep.subr.mxu0 0.0
  %2165 = vmatpush1.msra.mxu0 0.0
  %2166 = vmatprep.subr.mxu0 0.0
  %2167 = vmatpush1.msra.mxu0 0.0
  %2168 = vmatprep.subr.mxu0 0.0
  %2169 = vmatpush1.msra.mxu0 0.0
  %2170 = vmatprep.subr.mxu0 0.0
  %2171 = vmatpush1.msra.mxu0 0.0
  %2172 = vmatprep.subr.mxu0 0.0
  %2173 = vmatpush1.msra.mxu0 0.0
  %2174 = vmatprep.subr.mxu0 0.0
  %2175 = vmatpush1.msra.mxu0 0.0
  %2176 = vmatprep.subr.mxu0 0.0
  %2177 = vmatpush1.msra.mxu0 0.0
  %2178 = vmatprep.subr.mxu0 0.0
  %2179 = vmatpush1.msra.mxu0 0.0
  %2180 = vmatprep.subr.mxu0 0.0
  %2181 = vmatpush1.msra.mxu0 0.0
  %2182 = vmatprep.subr.mxu0 0.0
  %2183 = vmatpush1.msra.mxu0 0.0
  %2184 = vmatprep.subr.mxu0 0.0
  %2185 = vmatpush1.msra.mxu0 0.0
  %2186 = vmatprep.subr.mxu0 0.0
  %2187 = vmatpush1.msra.mxu0 0.0
  %2188 = vmatprep.subr.mxu0 0.0
  %2189 = vmatpush1.msra.mxu0 0.0
  %2190 = vmatprep.subr.mxu0 0.0
  %2191 = vmatpush1.msra.mxu0 0.0
  %2192 = vmatprep.subr.mxu0 0.0
  %2193 = vmatpush1.msra.mxu0 0.0
  %2194 = vmatprep.subr.mxu0 0.0
  %2195 = vmatpush1.msra.mxu0 0.0
  %2196 = vmatprep.subr.mxu0 0.0
  %2197 = vmatpush1.msra.mxu0 0.0
  %2198 = vmatprep.subr.mxu0 0.0
  %2199 = vmatpush1.msra.mxu0 0.0
  %2200 = vmatprep.subr.mxu0 0.0
  %2201 = vmatpush1.msra.mxu0 0.0
  %2202 = vmatprep.subr.mxu0 0.0
  %2203 = vmatpush1.msra.mxu0 0.0
  %2204 = vmatprep.subr.mxu0 0.0
  %2205 = vmatpush1.msra.mxu0 0.0
  %2206 = vmatprep.subr.mxu0 0.0
  %2207 = vmatpush1.msra.mxu0 0.0
  %2208 = vmatprep.subr.mxu0 0.0
  %2209 = vmatpush1.msra.mxu0 0.0
  %2210 = vmatprep.subr.mxu0 0.0
  %2211 = vmatpush1.msra.mxu0 0.0
  %2212 = vmatprep.subr.mxu0 0.0
  %2213 = vmatpush1.msra.mxu0 0.0
  %2214 = vmatprep.subr.mxu0 0.0
  %2215 = vmatpush1.msra.mxu0 0.0
  %2216 = vmatprep.subr.mxu0 0.0
  %2217 = vmatpush1.msra.mxu0 0.0
  %2218 = vmatprep.subr.mxu0 0.0
  %2219 = vmatpush1.msra.mxu0 0.0
  %2220 = vmatprep.mubr.f32.mxu0 0.0
  %2221 = vmatmul.mubr.f32.gmra.mrb[0].mxu0 %v2154
  %v2222 = vpop.f32.mrb[0].mxu0
  %v2223 = vadd.f32 0.0, %v2222
  %v2224 = vpop.f32.mrb[0].mxu0
  %2225 = vdwg.mxu0
  %2226 = vrot.lane.b32.xlu0 %v2052, 120
  %v2227 = vpop.permute.xlu0 %2226
  %2228 = vrot.lane.b32.xlu0 %v2052, 88
  %v2229 = vpop.permute.xlu0 %2228
  %v2230 = vsel %vm203, %v2227, 0
  %v2232 = vsel %vm203, %v2229, 0
  %2234 = vmatprep.subr.mxu0 0.0
  %2235 = vmatpush1.xpose.msra.mxu0 %v2232
  %2236 = vmatprep.subr.mxu0 0.0
  %2237 = vmatpush1.xpose.msra.mxu0 0.0
  %2238 = vmatprep.subr.mxu0 0.0
  %2239 = vmatpush1.xpose.msra.mxu0 0.0
  %2240 = vmatprep.subr.mxu0 0.0
  %2241 = vmatpush1.xpose.msra.mxu0 0.0
  %2242 = vmatprep.subr.mxu0 0.0
  %2243 = vmatpush1.xpose.msra.mxu0 0.0
  %2244 = vmatprep.subr.mxu0 0.0
  %2245 = vmatpush1.xpose.msra.mxu0 0.0
  %2246 = vmatprep.subr.mxu0 0.0
  %2247 = vmatpush1.xpose.msra.mxu0 0.0
  %2248 = vmatprep.subr.mxu0 0.0
  %2249 = vmatpush1.xpose.msra.mxu0 0.0
  %2250 = vmatprep.subr.mxu0 0.0
  %2251 = vmatpush1.xpose.msra.mxu0 0.0
  %2252 = vmatprep.subr.mxu0 0.0
  %2253 = vmatpush1.xpose.msra.mxu0 0.0
  %2254 = vmatprep.subr.mxu0 0.0
  %2255 = vmatpush1.xpose.msra.mxu0 0.0
  %2256 = vmatprep.subr.mxu0 0.0
  %2257 = vmatpush1.xpose.msra.mxu0 0.0
  %2258 = vmatprep.subr.mxu0 0.0
  %2259 = vmatpush1.xpose.msra.mxu0 0.0
  %2260 = vmatprep.subr.mxu0 0.0
  %2261 = vmatpush1.xpose.msra.mxu0 0.0
  %2262 = vmatprep.subr.mxu0 0.0
  %2263 = vmatpush1.xpose.msra.mxu0 0.0
  %2264 = vmatprep.subr.mxu0 0.0
  %2265 = vmatpush1.xpose.msra.mxu0 0.0
  %2266 = vmatprep.subr.mxu0 0.0
  %2267 = vmatpush1.xpose.msra.mxu0 0.0
  %2268 = vmatprep.subr.mxu0 0.0
  %2269 = vmatpush1.xpose.msra.mxu0 0.0
  %2270 = vmatprep.subr.mxu0 0.0
  %2271 = vmatpush1.xpose.msra.mxu0 0.0
  %2272 = vmatprep.subr.mxu0 0.0
  %2273 = vmatpush1.xpose.msra.mxu0 0.0
  %2274 = vmatprep.subr.mxu0 0.0
  %2275 = vmatpush1.xpose.msra.mxu0 0.0
  %2276 = vmatprep.subr.mxu0 0.0
  %2277 = vmatpush1.xpose.msra.mxu0 0.0
  %2278 = vmatprep.subr.mxu0 0.0
  %2279 = vmatpush1.xpose.msra.mxu0 0.0
  %2280 = vmatprep.subr.mxu0 0.0
  %2281 = vmatpush1.xpose.msra.mxu0 0.0
  %2282 = vmatprep.subr.mxu0 0.0
  %2283 = vmatpush1.xpose.msra.mxu0 0.0
  %2284 = vmatprep.subr.mxu0 0.0
  %2285 = vmatpush1.xpose.msra.mxu0 0.0
  %2286 = vmatprep.subr.mxu0 0.0
  %2287 = vmatpush1.xpose.msra.mxu0 0.0
  %2288 = vmatprep.subr.mxu0 0.0
  %2289 = vmatpush1.xpose.msra.mxu0 0.0
  %2290 = vmatprep.subr.mxu0 0.0
  %2291 = vmatpush1.xpose.msra.mxu0 0.0
  %2292 = vmatprep.subr.mxu0 0.0
  %2293 = vmatpush1.xpose.msra.mxu0 0.0
  %2294 = vmatprep.subr.mxu0 0.0
  %2295 = vmatpush1.xpose.msra.mxu0 0.0
  %2296 = vmatprep.subr.mxu0 0.0
  %2297 = vmatpush1.xpose.msra.mxu0 0.0
  %2298 = vmatprep.mubr.f32.mxu0 0.0
  %2299 = vmatmul.mubr.f32.gmra.mrb[0].mxu0 %v2230
  %v2300 = vpop.f32.mrb[0].mxu0
  %v2301 = vadd.f32 0.0, %v2300
  %v2302 = vpop.f32.mrb[0].mxu0
  %2303 = vdwg.mxu0
  %v2304 = vmul.f32 %v2301, 0.35355338
  %v2305 = vadd.f32 %v2304, %v282
  %v2306 = vsel %vm203, %v2305, -inf
  %2307 = vmax.xlane.f32.xlu0 %v2306
  %v2308 = vpop.xlane.xlu0 %2307
  %v2309 = vsub.f32 %v2305, %v2308
  %v2310 = vmul.f32 %v2309, 1.442695
  %v2311 = vpow.pop %v2310
  %v2312 = vsel %vm203, %v2311, 0.0
  %2313 = vadd.xlane.f32.xlu0 %v2312
  %v2314 = vpop.xlane.xlu0 %2313
  %v2315 = vrcp.pop %v2314
  %v2316 = vmul.f32 %v2311, %v2315
  %2317 = vrot.lane.b32.xlu0 %v2052, 56
  %v2318 = vpop.permute.xlu0 %2317
  %v2321 = vsel %vm203, %v2316, 0
  %2323 = vmatprep.subr.mxu0 0.0
  %2324 = vmatpush1.msra.mxu0 %v2318
  %2325 = vmatprep.subr.mxu0 0.0
  %2326 = vmatpush1.msra.mxu0 0.0
  %2327 = vmatprep.subr.mxu0 0.0
  %2328 = vmatpush1.msra.mxu0 0.0
  %2329 = vmatprep.subr.mxu0 0.0
  %2330 = vmatpush1.msra.mxu0 0.0
  %2331 = vmatprep.subr.mxu0 0.0
  %2332 = vmatpush1.msra.mxu0 0.0
  %2333 = vmatprep.subr.mxu0 0.0
  %2334 = vmatpush1.msra.mxu0 0.0
  %2335 = vmatprep.subr.mxu0 0.0
  %2336 = vmatpush1.msra.mxu0 0.0
  %2337 = vmatprep.subr.mxu0 0.0
  %2338 = vmatpush1.msra.mxu0 0.0
  %2339 = vmatprep.subr.mxu0 0.0
  %2340 = vmatpush1.msra.mxu0 0.0
  %2341 = vmatprep.subr.mxu0 0.0
  %2342 = vmatpush1.msra.mxu0 0.0
  %2343 = vmatprep.subr.mxu0 0.0
  %2344 = vmatpush1.msra.mxu0 0.0
  %2345 = vmatprep.subr.mxu0 0.0
  %2346 = vmatpush1.msra.mxu0 0.0
  %2347 = vmatprep.subr.mxu0 0.0
  %2348 = vmatpush1.msra.mxu0 0.0
  %2349 = vmatprep.subr.mxu0 0.0
  %2350 = vmatpush1.msra.mxu0 0.0
  %2351 = vmatprep.subr.mxu0 0.0
  %2352 = vmatpush1.msra.mxu0 0.0
  %2353 = vmatprep.subr.mxu0 0.0
  %2354 = vmatpush1.msra.mxu0 0.0
  %2355 = vmatprep.subr.mxu0 0.0
  %2356 = vmatpush1.msra.mxu0 0.0
  %2357 = vmatprep.subr.mxu0 0.0
  %2358 = vmatpush1.msra.mxu0 0.0
  %2359 = vmatprep.subr.mxu0 0.0
  %2360 = vmatpush1.msra.mxu0 0.0
  %2361 = vmatprep.subr.mxu0 0.0
  %2362 = vmatpush1.msra.mxu0 0.0
  %2363 = vmatprep.subr.mxu0 0.0
  %2364 = vmatpush1.msra.mxu0 0.0
  %2365 = vmatprep.subr.mxu0 0.0
  %2366 = vmatpush1.msra.mxu0 0.0
  %2367 = vmatprep.subr.mxu0 0.0
  %2368 = vmatpush1.msra.mxu0 0.0
  %2369 = vmatprep.subr.mxu0 0.0
  %2370 = vmatpush1.msra.mxu0 0.0
  %2371 = vmatprep.subr.mxu0 0.0
  %2372 = vmatpush1.msra.mxu0 0.0
  %2373 = vmatprep.subr.mxu0 0.0
  %2374 = vmatpush1.msra.mxu0 0.0
  %2375 = vmatprep.subr.mxu0 0.0
  %2376 = vmatpush1.msra.mxu0 0.0
  %2377 = vmatprep.subr.mxu0 0.0
  %2378 = vmatpush1.msra.mxu0 0.0
  %2379 = vmatprep.subr.mxu0 0.0
  %2380 = vmatpush1.msra.mxu0 0.0
  %2381 = vmatprep.subr.mxu0 0.0
  %2382 = vmatpush1.msra.mxu0 0.0
  %2383 = vmatprep.subr.mxu0 0.0
  %2384 = vmatpush1.msra.mxu0 0.0
  %2385 = vmatprep.subr.mxu0 0.0
  %2386 = vmatpush1.msra.mxu0 0.0
  %2387 = vmatprep.mubr.f32.mxu0 0.0
  %2388 = vmatmul.mubr.f32.gmra.mrb[0].mxu0 %v2321
  %v2389 = vpop.f32.mrb[0].mxu0
  %v2390 = vadd.f32 0.0, %v2389
  %v2391 = vpop.f32.mrb[0].mxu0
  %2392 = vdwg.mxu0
  %2393 = vrot.lane.b32.xlu0 %v2052, 112
  %v2394 = vpop.permute.xlu0 %2393
  %2395 = vrot.lane.b32.xlu0 %v2052, 80
  %v2396 = vpop.permute.xlu0 %2395
  %v2397 = vsel %vm203, %v2394, 0
  %v2399 = vsel %vm203, %v2396, 0
  %2401 = vmatprep.subr.mxu0 0.0
  %2402 = vmatpush1.xpose.msra.mxu0 %v2399
  %2403 = vmatprep.subr.mxu0 0.0
  %2404 = vmatpush1.xpose.msra.mxu0 0.0
  %2405 = vmatprep.subr.mxu0 0.0
  %2406 = vmatpush1.xpose.msra.mxu0 0.0
  %2407 = vmatprep.subr.mxu0 0.0
  %2408 = vmatpush1.xpose.msra.mxu0 0.0
  %2409 = vmatprep.subr.mxu0 0.0
  %2410 = vmatpush1.xpose.msra.mxu0 0.0
  %2411 = vmatprep.subr.mxu0 0.0
  %2412 = vmatpush1.xpose.msra.mxu0 0.0
  %2413 = vmatprep.subr.mxu0 0.0
  %2414 = vmatpush1.xpose.msra.mxu0 0.0
  %2415 = vmatprep.subr.mxu0 0.0
  %2416 = vmatpush1.xpose.msra.mxu0 0.0
  %2417 = vmatprep.subr.mxu0 0.0
  %2418 = vmatpush1.xpose.msra.mxu0 0.0
  %2419 = vmatprep.subr.mxu0 0.0
  %2420 = vmatpush1.xpose.msra.mxu0 0.0
  %2421 = vmatprep.subr.mxu0 0.0
  %2422 = vmatpush1.xpose.msra.mxu0 0.0
  %2423 = vmatprep.subr.mxu0 0.0
  %2424 = vmatpush1.xpose.msra.mxu0 0.0
  %2425 = vmatprep.subr.mxu0 0.0
  %2426 = vmatpush1.xpose.msra.mxu0 0.0
  %2427 = vmatprep.subr.mxu0 0.0
  %2428 = vmatpush1.xpose.msra.mxu0 0.0
  %2429 = vmatprep.subr.mxu0 0.0
  %2430 = vmatpush1.xpose.msra.mxu0 0.0
  %2431 = vmatprep.subr.mxu0 0.0
  %2432 = vmatpush1.xpose.msra.mxu0 0.0
  %2433 = vmatprep.subr.mxu0 0.0
  %2434 = vmatpush1.xpose.msra.mxu0 0.0
  %2435 = vmatprep.subr.mxu0 0.0
  %2436 = vmatpush1.xpose.msra.mxu0 0.0
  %2437 = vmatprep.subr.mxu0 0.0
  %2438 = vmatpush1.xpose.msra.mxu0 0.0
  %2439 = vmatprep.subr.mxu0 0.0
  %2440 = vmatpush1.xpose.msra.mxu0 0.0
  %2441 = vmatprep.subr.mxu0 0.0
  %2442 = vmatpush1.xpose.msra.mxu0 0.0
  %2443 = vmatprep.subr.mxu0 0.0
  %2444 = vmatpush1.xpose.msra.mxu0 0.0
  %2445 = vmatprep.subr.mxu0 0.0
  %2446 = vmatpush1.xpose.msra.mxu0 0.0
  %2447 = vmatprep.subr.mxu0 0.0
  %2448 = vmatpush1.xpose.msra.mxu0 0.0
  %2449 = vmatprep.subr.mxu0 0.0
  %2450 = vmatpush1.xpose.msra.mxu0 0.0
  %2451 = vmatprep.subr.mxu0 0.0
  %2452 = vmatpush1.xpose.msra.mxu0 0.0
  %2453 = vmatprep.subr.mxu0 0.0
  %2454 = vmatpush1.xpose.msra.mxu0 0.0
  %2455 = vmatprep.subr.mxu0 0.0
  %2456 = vmatpush1.xpose.msra.mxu0 0.0
  %2457 = vmatprep.subr.mxu0 0.0
  %2458 = vmatpush1.xpose.msra.mxu0 0.0
  %2459 = vmatprep.subr.mxu0 0.0
  %2460 = vmatpush1.xpose.msra.mxu0 0.0
  %2461 = vmatprep.subr.mxu0 0.0
  %2462 = vmatpush1.xpose.msra.mxu0 0.0
  %2463 = vmatprep.subr.mxu0 0.0
  %2464 = vmatpush1.xpose.msra.mxu0 0.0
  %2465 = vmatprep.mubr.f32.mxu0 0.0
  %2466 = vmatmul.mubr.f32.gmra.mrb[0].mxu0 %v2397
  %v2467 = vpop.f32.mrb[0].mxu0
  %v2468 = vadd.f32 0.0, %v2467
  %v2469 = vpop.f32.mrb[0].mxu0
  %2470 = vdwg.mxu0
  %v2471 = vmul.f32 %v2468, 0.35355338
  %v2472 = vadd.f32 %v2471, %v282
  %v2473 = vsel %vm203, %v2472, -inf
  %2474 = vmax.xlane.f32.xlu0 %v2473
  %v2475 = vpop.xlane.xlu0 %2474
  %v2476 = vsub.f32 %v2472, %v2475
  %v2477 = vmul.f32 %v2476, 1.442695
  %v2478 = vpow.pop %v2477
  %v2479 = vsel %vm203, %v2478, 0.0
  %2480 = vadd.xlane.f32.xlu0 %v2479
  %v2481 = vpop.xlane.xlu0 %2480
  %v2482 = vrcp.pop %v2481
  %v2483 = vmul.f32 %v2478, %v2482
  %2484 = vrot.lane.b32.xlu0 %v2052, 48
  %v2485 = vpop.permute.xlu0 %2484
  %v2488 = vsel %vm203, %v2483, 0
  %2490 = vmatprep.subr.mxu0 0.0
  %2491 = vmatpush1.msra.mxu0 %v2485
  %2492 = vmatprep.subr.mxu0 0.0
  %2493 = vmatpush1.msra.mxu0 0.0
  %2494 = vmatprep.subr.mxu0 0.0
  %2495 = vmatpush1.msra.mxu0 0.0
  %2496 = vmatprep.subr.mxu0 0.0
  %2497 = vmatpush1.msra.mxu0 0.0
  %2498 = vmatprep.subr.mxu0 0.0
  %2499 = vmatpush1.msra.mxu0 0.0
  %2500 = vmatprep.subr.mxu0 0.0
  %2501 = vmatpush1.msra.mxu0 0.0
  %2502 = vmatprep.subr.mxu0 0.0
  %2503 = vmatpush1.msra.mxu0 0.0
  %2504 = vmatprep.subr.mxu0 0.0
  %2505 = vmatpush1.msra.mxu0 0.0
  %2506 = vmatprep.subr.mxu0 0.0
  %2507 = vmatpush1.msra.mxu0 0.0
  %2508 = vmatprep.subr.mxu0 0.0
  %2509 = vmatpush1.msra.mxu0 0.0
  %2510 = vmatprep.subr.mxu0 0.0
  %2511 = vmatpush1.msra.mxu0 0.0
  %2512 = vmatprep.subr.mxu0 0.0
  %2513 = vmatpush1.msra.mxu0 0.0
  %2514 = vmatprep.subr.mxu0 0.0
  %2515 = vmatpush1.msra.mxu0 0.0
  %2516 = vmatprep.subr.mxu0 0.0
  %2517 = vmatpush1.msra.mxu0 0.0
  %2518 = vmatprep.subr.mxu0 0.0
  %2519 = vmatpush1.msra.mxu0 0.0
  %2520 = vmatprep.subr.mxu0 0.0
  %2521 = vmatpush1.msra.mxu0 0.0
  %2522 = vmatprep.subr.mxu0 0.0
  %2523 = vmatpush1.msra.mxu0 0.0
  %2524 = vmatprep.subr.mxu0 0.0
  %2525 = vmatpush1.msra.mxu0 0.0
  %2526 = vmatprep.subr.mxu0 0.0
  %2527 = vmatpush1.msra.mxu0 0.0
  %2528 = vmatprep.subr.mxu0 0.0
  %2529 = vmatpush1.msra.mxu0 0.0
  %2530 = vmatprep.subr.mxu0 0.0
  %2531 = vmatpush1.msra.mxu0 0.0
  %2532 = vmatprep.subr.mxu0 0.0
  %2533 = vmatpush1.msra.mxu0 0.0
  %2534 = vmatprep.subr.mxu0 0.0
  %2535 = vmatpush1.msra.mxu0 0.0
  %2536 = vmatprep.subr.mxu0 0.0
  %2537 = vmatpush1.msra.mxu0 0.0
  %2538 = vmatprep.subr.mxu0 0.0
  %2539 = vmatpush1.msra.mxu0 0.0
  %2540 = vmatprep.subr.mxu0 0.0
  %2541 = vmatpush1.msra.mxu0 0.0
  %2542 = vmatprep.subr.mxu0 0.0
  %2543 = vmatpush1.msra.mxu0 0.0
  %2544 = vmatprep.subr.mxu0 0.0
  %2545 = vmatpush1.msra.mxu0 0.0
  %2546 = vmatprep.subr.mxu0 0.0
  %2547 = vmatpush1.msra.mxu0 0.0
  %2548 = vmatprep.subr.mxu0 0.0
  %2549 = vmatpush1.msra.mxu0 0.0
  %2550 = vmatprep.subr.mxu0 0.0
  %2551 = vmatpush1.msra.mxu0 0.0
  %2552 = vmatprep.subr.mxu0 0.0
  %2553 = vmatpush1.msra.mxu0 0.0
  %2554 = vmatprep.mubr.f32.mxu0 0.0
  %2555 = vmatmul.mubr.f32.gmra.mrb[0].mxu0 %v2488
  %v2556 = vpop.f32.mrb[0].mxu0
  %v2557 = vadd.f32 0.0, %v2556
  %v2558 = vpop.f32.mrb[0].mxu0
  %2559 = vdwg.mxu0
  %2560 = vrot.lane.b32.xlu0 %v2052, 104
  %v2561 = vpop.permute.xlu0 %2560
  %2562 = vrot.lane.b32.xlu0 %v2052, 72
  %v2563 = vpop.permute.xlu0 %2562
  %v2564 = vsel %vm203, %v2561, 0
  %v2566 = vsel %vm203, %v2563, 0
  %2568 = vmatprep.subr.mxu0 0.0
  %2569 = vmatpush1.xpose.msra.mxu0 %v2566
  %2570 = vmatprep.subr.mxu0 0.0
  %2571 = vmatpush1.xpose.msra.mxu0 0.0
  %2572 = vmatprep.subr.mxu0 0.0
  %2573 = vmatpush1.xpose.msra.mxu0 0.0
  %2574 = vmatprep.subr.mxu0 0.0
  %2575 = vmatpush1.xpose.msra.mxu0 0.0
  %2576 = vmatprep.subr.mxu0 0.0
  %2577 = vmatpush1.xpose.msra.mxu0 0.0
  %2578 = vmatprep.subr.mxu0 0.0
  %2579 = vmatpush1.xpose.msra.mxu0 0.0
  %2580 = vmatprep.subr.mxu0 0.0
  %2581 = vmatpush1.xpose.msra.mxu0 0.0
  %2582 = vmatprep.subr.mxu0 0.0
  %2583 = vmatpush1.xpose.msra.mxu0 0.0
  %2584 = vmatprep.subr.mxu0 0.0
  %2585 = vmatpush1.xpose.msra.mxu0 0.0
  %2586 = vmatprep.subr.mxu0 0.0
  %2587 = vmatpush1.xpose.msra.mxu0 0.0
  %2588 = vmatprep.subr.mxu0 0.0
  %2589 = vmatpush1.xpose.msra.mxu0 0.0
  %2590 = vmatprep.subr.mxu0 0.0
  %2591 = vmatpush1.xpose.msra.mxu0 0.0
  %2592 = vmatprep.subr.mxu0 0.0
  %2593 = vmatpush1.xpose.msra.mxu0 0.0
  %2594 = vmatprep.subr.mxu0 0.0
  %2595 = vmatpush1.xpose.msra.mxu0 0.0
  %2596 = vmatprep.subr.mxu0 0.0
  %2597 = vmatpush1.xpose.msra.mxu0 0.0
  %2598 = vmatprep.subr.mxu0 0.0
  %2599 = vmatpush1.xpose.msra.mxu0 0.0
  %2600 = vmatprep.subr.mxu0 0.0
  %2601 = vmatpush1.xpose.msra.mxu0 0.0
  %2602 = vmatprep.subr.mxu0 0.0
  %2603 = vmatpush1.xpose.msra.mxu0 0.0
  %2604 = vmatprep.subr.mxu0 0.0
  %2605 = vmatpush1.xpose.msra.mxu0 0.0
  %2606 = vmatprep.subr.mxu0 0.0
  %2607 = vmatpush1.xpose.msra.mxu0 0.0
  %2608 = vmatprep.subr.mxu0 0.0
  %2609 = vmatpush1.xpose.msra.mxu0 0.0
  %2610 = vmatprep.subr.mxu0 0.0
  %2611 = vmatpush1.xpose.msra.mxu0 0.0
  %2612 = vmatprep.subr.mxu0 0.0
  %2613 = vmatpush1.xpose.msra.mxu0 0.0
  %2614 = vmatprep.subr.mxu0 0.0
  %2615 = vmatpush1.xpose.msra.mxu0 0.0
  %2616 = vmatprep.subr.mxu0 0.0
  %2617 = vmatpush1.xpose.msra.mxu0 0.0
  %2618 = vmatprep.subr.mxu0 0.0
  %2619 = vmatpush1.xpose.msra.mxu0 0.0
  %2620 = vmatprep.subr.mxu0 0.0
  %2621 = vmatpush1.xpose.msra.mxu0 0.0
  %2622 = vmatprep.subr.mxu0 0.0
  %2623 = vmatpush1.xpose.msra.mxu0 0.0
  %2624 = vmatprep.subr.mxu0 0.0
  %2625 = vmatpush1.xpose.msra.mxu0 0.0
  %2626 = vmatprep.subr.mxu0 0.0
  %2627 = vmatpush1.xpose.msra.mxu0 0.0
  %2628 = vmatprep.subr.mxu0 0.0
  %2629 = vmatpush1.xpose.msra.mxu0 0.0
  %2630 = vmatprep.subr.mxu0 0.0
  %2631 = vmatpush1.xpose.msra.mxu0 0.0
  %2632 = vmatprep.mubr.f32.mxu0 0.0
  %2633 = vmatmul.mubr.f32.gmra.mrb[0].mxu0 %v2564
  %v2634 = vpop.f32.mrb[0].mxu0
  %v2635 = vadd.f32 0.0, %v2634
  %v2636 = vpop.f32.mrb[0].mxu0
  %2637 = vdwg.mxu0
  %v2638 = vmul.f32 %v2635, 0.35355338
  %v2639 = vadd.f32 %v2638, %v282
  %v2640 = vsel %vm203, %v2639, -inf
  %2641 = vmax.xlane.f32.xlu0 %v2640
  %v2642 = vpop.xlane.xlu0 %2641
  %v2643 = vsub.f32 %v2639, %v2642
  %v2644 = vmul.f32 %v2643, 1.442695
  %v2645 = vpow.pop %v2644
  %v2646 = vsel %vm203, %v2645, 0.0
  %2647 = vadd.xlane.f32.xlu0 %v2646
  %v2648 = vpop.xlane.xlu0 %2647
  %v2649 = vrcp.pop %v2648
  %v2650 = vmul.f32 %v2645, %v2649
  %2651 = vrot.lane.b32.xlu0 %v2052, 40
  %v2652 = vpop.permute.xlu0 %2651
  %v2655 = vsel %vm203, %v2650, 0
  %2657 = vmatprep.subr.mxu0 0.0
  %2658 = vmatpush1.msra.mxu0 %v2652
  %2659 = vmatprep.subr.mxu0 0.0
  %2660 = vmatpush1.msra.mxu0 0.0
  %2661 = vmatprep.subr.mxu0 0.0
  %2662 = vmatpush1.msra.mxu0 0.0
  %2663 = vmatprep.subr.mxu0 0.0
  %2664 = vmatpush1.msra.mxu0 0.0
  %2665 = vmatprep.subr.mxu0 0.0
  %2666 = vmatpush1.msra.mxu0 0.0
  %2667 = vmatprep.subr.mxu0 0.0
  %2668 = vmatpush1.msra.mxu0 0.0
  %2669 = vmatprep.subr.mxu0 0.0
  %2670 = vmatpush1.msra.mxu0 0.0
  %2671 = vmatprep.subr.mxu0 0.0
  %2672 = vmatpush1.msra.mxu0 0.0
  %2673 = vmatprep.subr.mxu0 0.0
  %2674 = vmatpush1.msra.mxu0 0.0
  %2675 = vmatprep.subr.mxu0 0.0
  %2676 = vmatpush1.msra.mxu0 0.0
  %2677 = vmatprep.subr.mxu0 0.0
  %2678 = vmatpush1.msra.mxu0 0.0
  %2679 = vmatprep.subr.mxu0 0.0
  %2680 = vmatpush1.msra.mxu0 0.0
  %2681 = vmatprep.subr.mxu0 0.0
  %2682 = vmatpush1.msra.mxu0 0.0
  %2683 = vmatprep.subr.mxu0 0.0
  %2684 = vmatpush1.msra.mxu0 0.0
  %2685 = vmatprep.subr.mxu0 0.0
  %2686 = vmatpush1.msra.mxu0 0.0
  %2687 = vmatprep.subr.mxu0 0.0
  %2688 = vmatpush1.msra.mxu0 0.0
  %2689 = vmatprep.subr.mxu0 0.0
  %2690 = vmatpush1.msra.mxu0 0.0
  %2691 = vmatprep.subr.mxu0 0.0
  %2692 = vmatpush1.msra.mxu0 0.0
  %2693 = vmatprep.subr.mxu0 0.0
  %2694 = vmatpush1.msra.mxu0 0.0
  %2695 = vmatprep.subr.mxu0 0.0
  %2696 = vmatpush1.msra.mxu0 0.0
  %2697 = vmatprep.subr.mxu0 0.0
  %2698 = vmatpush1.msra.mxu0 0.0
  %2699 = vmatprep.subr.mxu0 0.0
  %2700 = vmatpush1.msra.mxu0 0.0
  %2701 = vmatprep.subr.mxu0 0.0
  %2702 = vmatpush1.msra.mxu0 0.0
  %2703 = vmatprep.subr.mxu0 0.0
  %2704 = vmatpush1.msra.mxu0 0.0
  %2705 = vmatprep.subr.mxu0 0.0
  %2706 = vmatpush1.msra.mxu0 0.0
  %2707 = vmatprep.subr.mxu0 0.0
  %2708 = vmatpush1.msra.mxu0 0.0
  %2709 = vmatprep.subr.mxu0 0.0
  %2710 = vmatpush1.msra.mxu0 0.0
  %2711 = vmatprep.subr.mxu0 0.0
  %2712 = vmatpush1.msra.mxu0 0.0
  %2713 = vmatprep.subr.mxu0 0.0
  %2714 = vmatpush1.msra.mxu0 0.0
  %2715 = vmatprep.subr.mxu0 0.0
  %2716 = vmatpush1.msra.mxu0 0.0
  %2717 = vmatprep.subr.mxu0 0.0
  %2718 = vmatpush1.msra.mxu0 0.0
  %2719 = vmatprep.subr.mxu0 0.0
  %2720 = vmatpush1.msra.mxu0 0.0
  %2721 = vmatprep.mubr.f32.mxu0 0.0
  %2722 = vmatmul.mubr.f32.gmra.mrb[0].mxu0 %v2655
  %v2723 = vpop.f32.mrb[0].mxu0
  %v2724 = vadd.f32 0.0, %v2723
  %v2725 = vpop.f32.mrb[0].mxu0
  %2726 = vdwg.mxu0
  %2728 = vrot.lane.b32.xlu0 %v2390, 8
  %v2729 = vpop.permute.xlu0 %2728
  %2732 = vrot.lane.b32.xlu0 %v2557, 16
  %v2733 = vpop.permute.xlu0 %2732
  %2736 = vrot.lane.b32.xlu0 %v2724, 24
  %v2737 = vpop.permute.xlu0 %2736
  %v2739 = vsel %vm203, %v2223, %v2729
  %v2740 = vsel %vm885, %v2739, %v2733
  %v2741 = vsel %vm887, %v2740, %v2737
  %2743 = vrot.lane.b32.xlu0 %v2057, 96
  %v2744 = vpop.permute.xlu0 %2743
  %v2745 = vsel %vm203, %v2057, 0
  %v2747 = vsel %vm203, %v2744, 0
  %2749 = vmatprep.subr.mxu0 0.0
  %2750 = vmatpush1.xpose.msra.mxu0 %v2747
  %2751 = vmatprep.subr.mxu0 0.0
  %2752 = vmatpush1.xpose.msra.mxu0 0.0
  %2753 = vmatprep.subr.mxu0 0.0
  %2754 = vmatpush1.xpose.msra.mxu0 0.0
  %2755 = vmatprep.subr.mxu0 0.0
  %2756 = vmatpush1.xpose.msra.mxu0 0.0
  %2757 = vmatprep.subr.mxu0 0.0
  %2758 = vmatpush1.xpose.msra.mxu0 0.0
  %2759 = vmatprep.subr.mxu0 0.0
  %2760 = vmatpush1.xpose.msra.mxu0 0.0
  %2761 = vmatprep.subr.mxu0 0.0
  %2762 = vmatpush1.xpose.msra.mxu0 0.0
  %2763 = vmatprep.subr.mxu0 0.0
  %2764 = vmatpush1.xpose.msra.mxu0 0.0
  %2765 = vmatprep.subr.mxu0 0.0
  %2766 = vmatpush1.xpose.msra.mxu0 0.0
  %2767 = vmatprep.subr.mxu0 0.0
  %2768 = vmatpush1.xpose.msra.mxu0 0.0
  %2769 = vmatprep.subr.mxu0 0.0
  %2770 = vmatpush1.xpose.msra.mxu0 0.0
  %2771 = vmatprep.subr.mxu0 0.0
  %2772 = vmatpush1.xpose.msra.mxu0 0.0
  %2773 = vmatprep.subr.mxu0 0.0
  %2774 = vmatpush1.xpose.msra.mxu0 0.0
  %2775 = vmatprep.subr.mxu0 0.0
  %2776 = vmatpush1.xpose.msra.mxu0 0.0
  %2777 = vmatprep.subr.mxu0 0.0
  %2778 = vmatpush1.xpose.msra.mxu0 0.0
  %2779 = vmatprep.subr.mxu0 0.0
  %2780 = vmatpush1.xpose.msra.mxu0 0.0
  %2781 = vmatprep.subr.mxu0 0.0
  %2782 = vmatpush1.xpose.msra.mxu0 0.0
  %2783 = vmatprep.subr.mxu0 0.0
  %2784 = vmatpush1.xpose.msra.mxu0 0.0
  %2785 = vmatprep.subr.mxu0 0.0
  %2786 = vmatpush1.xpose.msra.mxu0 0.0
  %2787 = vmatprep.subr.mxu0 0.0
  %2788 = vmatpush1.xpose.msra.mxu0 0.0
  %2789 = vmatprep.subr.mxu0 0.0
  %2790 = vmatpush1.xpose.msra.mxu0 0.0
  %2791 = vmatprep.subr.mxu0 0.0
  %2792 = vmatpush1.xpose.msra.mxu0 0.0
  %2793 = vmatprep.subr.mxu0 0.0
  %2794 = vmatpush1.xpose.msra.mxu0 0.0
  %2795 = vmatprep.subr.mxu0 0.0
  %2796 = vmatpush1.xpose.msra.mxu0 0.0
  %2797 = vmatprep.subr.mxu0 0.0
  %2798 = vmatpush1.xpose.msra.mxu0 0.0
  %2799 = vmatprep.subr.mxu0 0.0
  %2800 = vmatpush1.xpose.msra.mxu0 0.0
  %2801 = vmatprep.subr.mxu0 0.0
  %2802 = vmatpush1.xpose.msra.mxu0 0.0
  %2803 = vmatprep.subr.mxu0 0.0
  %2804 = vmatpush1.xpose.msra.mxu0 0.0
  %2805 = vmatprep.subr.mxu0 0.0
  %2806 = vmatpush1.xpose.msra.mxu0 0.0
  %2807 = vmatprep.subr.mxu0 0.0
  %2808 = vmatpush1.xpose.msra.mxu0 0.0
  %2809 = vmatprep.subr.mxu0 0.0
  %2810 = vmatpush1.xpose.msra.mxu0 0.0
  %2811 = vmatprep.subr.mxu0 0.0
  %2812 = vmatpush1.xpose.msra.mxu0 0.0
  %2813 = vmatprep.mubr.f32.mxu0 0.0
  %2814 = vmatmul.mubr.f32.gmra.mrb[0].mxu0 %v2745
  %v2815 = vpop.f32.mrb[0].mxu0
  %v2816 = vadd.f32 0.0, %v2815
  %v2817 = vpop.f32.mrb[0].mxu0
  %2818 = vdwg.mxu0
  %v2819 = vmul.f32 %v2816, 0.35355338
  %v2820 = vadd.f32 %v2819, %v970
  %v2821 = vsel %vm203, %v2820, -inf
  %2822 = vmax.xlane.f32.xlu0 %v2821
  %v2823 = vpop.xlane.xlu0 %2822
  %v2824 = vsub.f32 %v2820, %v2823
  %v2825 = vmul.f32 %v2824, 1.442695
  %v2826 = vpow.pop %v2825
  %v2827 = vsel %vm203, %v2826, 0.0
  %2828 = vadd.xlane.f32.xlu0 %v2827
  %v2829 = vpop.xlane.xlu0 %2828
  %v2830 = vrcp.pop %v2829
  %v2831 = vmul.f32 %v2826, %v2830
  %2832 = vrot.lane.b32.xlu0 %v2057, 64
  %v2833 = vpop.permute.xlu0 %2832
  %v2836 = vsel %vm203, %v2831, 0
  %2838 = vmatprep.subr.mxu0 0.0
  %2839 = vmatpush1.msra.mxu0 %v2833
  %2840 = vmatprep.subr.mxu0 0.0
  %2841 = vmatpush1.msra.mxu0 0.0
  %2842 = vmatprep.subr.mxu0 0.0
  %2843 = vmatpush1.msra.mxu0 0.0
  %2844 = vmatprep.subr.mxu0 0.0
  %2845 = vmatpush1.msra.mxu0 0.0
  %2846 = vmatprep.subr.mxu0 0.0
  %2847 = vmatpush1.msra.mxu0 0.0
  %2848 = vmatprep.subr.mxu0 0.0
  %2849 = vmatpush1.msra.mxu0 0.0
  %2850 = vmatprep.subr.mxu0 0.0
  %2851 = vmatpush1.msra.mxu0 0.0
  %2852 = vmatprep.subr.mxu0 0.0
  %2853 = vmatpush1.msra.mxu0 0.0
  %2854 = vmatprep.subr.mxu0 0.0
  %2855 = vmatpush1.msra.mxu0 0.0
  %2856 = vmatprep.subr.mxu0 0.0
  %2857 = vmatpush1.msra.mxu0 0.0
  %2858 = vmatprep.subr.mxu0 0.0
  %2859 = vmatpush1.msra.mxu0 0.0
  %2860 = vmatprep.subr.mxu0 0.0
  %2861 = vmatpush1.msra.mxu0 0.0
  %2862 = vmatprep.subr.mxu0 0.0
  %2863 = vmatpush1.msra.mxu0 0.0
  %2864 = vmatprep.subr.mxu0 0.0
  %2865 = vmatpush1.msra.mxu0 0.0
  %2866 = vmatprep.subr.mxu0 0.0
  %2867 = vmatpush1.msra.mxu0 0.0
  %2868 = vmatprep.subr.mxu0 0.0
  %2869 = vmatpush1.msra.mxu0 0.0
  %2870 = vmatprep.subr.mxu0 0.0
  %2871 = vmatpush1.msra.mxu0 0.0
  %2872 = vmatprep.subr.mxu0 0.0
  %2873 = vmatpush1.msra.mxu0 0.0
  %2874 = vmatprep.subr.mxu0 0.0
  %2875 = vmatpush1.msra.mxu0 0.0
  %2876 = vmatprep.subr.mxu0 0.0
  %2877 = vmatpush1.msra.mxu0 0.0
  %2878 = vmatprep.subr.mxu0 0.0
  %2879 = vmatpush1.msra.mxu0 0.0
  %2880 = vmatprep.subr.mxu0 0.0
  %2881 = vmatpush1.msra.mxu0 0.0
  %2882 = vmatprep.subr.mxu0 0.0
  %2883 = vmatpush1.msra.mxu0 0.0
  %2884 = vmatprep.subr.mxu0 0.0
  %2885 = vmatpush1.msra.mxu0 0.0
  %2886 = vmatprep.subr.mxu0 0.0
  %2887 = vmatpush1.msra.mxu0 0.0
  %2888 = vmatprep.subr.mxu0 0.0
  %2889 = vmatpush1.msra.mxu0 0.0
  %2890 = vmatprep.subr.mxu0 0.0
  %2891 = vmatpush1.msra.mxu0 0.0
  %2892 = vmatprep.subr.mxu0 0.0
  %2893 = vmatpush1.msra.mxu0 0.0
  %2894 = vmatprep.subr.mxu0 0.0
  %2895 = vmatpush1.msra.mxu0 0.0
  %2896 = vmatprep.subr.mxu0 0.0
  %2897 = vmatpush1.msra.mxu0 0.0
  %2898 = vmatprep.subr.mxu0 0.0
  %2899 = vmatpush1.msra.mxu0 0.0
  %2900 = vmatprep.subr.mxu0 0.0
  %2901 = vmatpush1.msra.mxu0 0.0
  %2902 = vmatprep.mubr.f32.mxu0 0.0
  %2903 = vmatmul.mubr.f32.gmra.mrb[0].mxu0 %v2836
  %v2904 = vpop.f32.mrb[0].mxu0
  %v2905 = vadd.f32 0.0, %v2904
  %v2906 = vpop.f32.mrb[0].mxu0
  %2907 = vdwg.mxu0
  %2908 = vrot.lane.b32.xlu0 %v2057, 120
  %v2909 = vpop.permute.xlu0 %2908
  %2910 = vrot.lane.b32.xlu0 %v2057, 88
  %v2911 = vpop.permute.xlu0 %2910
  %v2912 = vsel %vm203, %v2909, 0
  %v2914 = vsel %vm203, %v2911, 0
  %2916 = vmatprep.subr.mxu0 0.0
  %2917 = vmatpush1.xpose.msra.mxu0 %v2914
  %2918 = vmatprep.subr.mxu0 0.0
  %2919 = vmatpush1.xpose.msra.mxu0 0.0
  %2920 = vmatprep.subr.mxu0 0.0
  %2921 = vmatpush1.xpose.msra.mxu0 0.0
  %2922 = vmatprep.subr.mxu0 0.0
  %2923 = vmatpush1.xpose.msra.mxu0 0.0
  %2924 = vmatprep.subr.mxu0 0.0
  %2925 = vmatpush1.xpose.msra.mxu0 0.0
  %2926 = vmatprep.subr.mxu0 0.0
  %2927 = vmatpush1.xpose.msra.mxu0 0.0
  %2928 = vmatprep.subr.mxu0 0.0
  %2929 = vmatpush1.xpose.msra.mxu0 0.0
  %2930 = vmatprep.subr.mxu0 0.0
  %2931 = vmatpush1.xpose.msra.mxu0 0.0
  %2932 = vmatprep.subr.mxu0 0.0
  %2933 = vmatpush1.xpose.msra.mxu0 0.0
  %2934 = vmatprep.subr.mxu0 0.0
  %2935 = vmatpush1.xpose.msra.mxu0 0.0
  %2936 = vmatprep.subr.mxu0 0.0
  %2937 = vmatpush1.xpose.msra.mxu0 0.0
  %2938 = vmatprep.subr.mxu0 0.0
  %2939 = vmatpush1.xpose.msra.mxu0 0.0
  %2940 = vmatprep.subr.mxu0 0.0
  %2941 = vmatpush1.xpose.msra.mxu0 0.0
  %2942 = vmatprep.subr.mxu0 0.0
  %2943 = vmatpush1.xpose.msra.mxu0 0.0
  %2944 = vmatprep.subr.mxu0 0.0
  %2945 = vmatpush1.xpose.msra.mxu0 0.0
  %2946 = vmatprep.subr.mxu0 0.0
  %2947 = vmatpush1.xpose.msra.mxu0 0.0
  %2948 = vmatprep.subr.mxu0 0.0
  %2949 = vmatpush1.xpose.msra.mxu0 0.0
  %2950 = vmatprep.subr.mxu0 0.0
  %2951 = vmatpush1.xpose.msra.mxu0 0.0
  %2952 = vmatprep.subr.mxu0 0.0
  %2953 = vmatpush1.xpose.msra.mxu0 0.0
  %2954 = vmatprep.subr.mxu0 0.0
  %2955 = vmatpush1.xpose.msra.mxu0 0.0
  %2956 = vmatprep.subr.mxu0 0.0
  %2957 = vmatpush1.xpose.msra.mxu0 0.0
  %2958 = vmatprep.subr.mxu0 0.0
  %2959 = vmatpush1.xpose.msra.mxu0 0.0
  %2960 = vmatprep.subr.mxu0 0.0
  %2961 = vmatpush1.xpose.msra.mxu0 0.0
  %2962 = vmatprep.subr.mxu0 0.0
  %2963 = vmatpush1.xpose.msra.mxu0 0.0
  %2964 = vmatprep.subr.mxu0 0.0
  %2965 = vmatpush1.xpose.msra.mxu0 0.0
  %2966 = vmatprep.subr.mxu0 0.0
  %2967 = vmatpush1.xpose.msra.mxu0 0.0
  %2968 = vmatprep.subr.mxu0 0.0
  %2969 = vmatpush1.xpose.msra.mxu0 0.0
  %2970 = vmatprep.subr.mxu0 0.0
  %2971 = vmatpush1.xpose.msra.mxu0 0.0
  %2972 = vmatprep.subr.mxu0 0.0
  %2973 = vmatpush1.xpose.msra.mxu0 0.0
  %2974 = vmatprep.subr.mxu0 0.0
  %2975 = vmatpush1.xpose.msra.mxu0 0.0
  %2976 = vmatprep.subr.mxu0 0.0
  %2977 = vmatpush1.xpose.msra.mxu0 0.0
  %2978 = vmatprep.subr.mxu0 0.0
  %2979 = vmatpush1.xpose.msra.mxu0 0.0
  %2980 = vmatprep.mubr.f32.mxu0 0.0
  %2981 = vmatmul.mubr.f32.gmra.mrb[0].mxu0 %v2912
  %v2982 = vpop.f32.mrb[0].mxu0
  %v2983 = vadd.f32 0.0, %v2982
  %v2984 = vpop.f32.mrb[0].mxu0
  %2985 = vdwg.mxu0
  %v2986 = vmul.f32 %v2983, 0.35355338
  %v2987 = vadd.f32 %v2986, %v970
  %v2988 = vsel %vm203, %v2987, -inf
  %2989 = vmax.xlane.f32.xlu0 %v2988
  %v2990 = vpop.xlane.xlu0 %2989
  %v2991 = vsub.f32 %v2987, %v2990
  %v2992 = vmul.f32 %v2991, 1.442695
  %v2993 = vpow.pop %v2992
  %v2994 = vsel %vm203, %v2993, 0.0
  %2995 = vadd.xlane.f32.xlu0 %v2994
  %v2996 = vpop.xlane.xlu0 %2995
  %v2997 = vrcp.pop %v2996
  %v2998 = vmul.f32 %v2993, %v2997
  %2999 = vrot.lane.b32.xlu0 %v2057, 56
  %v3000 = vpop.permute.xlu0 %2999
  %v3003 = vsel %vm203, %v2998, 0
  %3005 = vmatprep.subr.mxu0 0.0
  %3006 = vmatpush1.msra.mxu0 %v3000
  %3007 = vmatprep.subr.mxu0 0.0
  %3008 = vmatpush1.msra.mxu0 0.0
  %3009 = vmatprep.subr.mxu0 0.0
  %3010 = vmatpush1.msra.mxu0 0.0
  %3011 = vmatprep.subr.mxu0 0.0
  %3012 = vmatpush1.msra.mxu0 0.0
  %3013 = vmatprep.subr.mxu0 0.0
  %3014 = vmatpush1.msra.mxu0 0.0
  %3015 = vmatprep.subr.mxu0 0.0
  %3016 = vmatpush1.msra.mxu0 0.0
  %3017 = vmatprep.subr.mxu0 0.0
  %3018 = vmatpush1.msra.mxu0 0.0
  %3019 = vmatprep.subr.mxu0 0.0
  %3020 = vmatpush1.msra.mxu0 0.0
  %3021 = vmatprep.subr.mxu0 0.0
  %3022 = vmatpush1.msra.mxu0 0.0
  %3023 = vmatprep.subr.mxu0 0.0
  %3024 = vmatpush1.msra.mxu0 0.0
  %3025 = vmatprep.subr.mxu0 0.0
  %3026 = vmatpush1.msra.mxu0 0.0
  %3027 = vmatprep.subr.mxu0 0.0
  %3028 = vmatpush1.msra.mxu0 0.0
  %3029 = vmatprep.subr.mxu0 0.0
  %3030 = vmatpush1.msra.mxu0 0.0
  %3031 = vmatprep.subr.mxu0 0.0
  %3032 = vmatpush1.msra.mxu0 0.0
  %3033 = vmatprep.subr.mxu0 0.0
  %3034 = vmatpush1.msra.mxu0 0.0
  %3035 = vmatprep.subr.mxu0 0.0
  %3036 = vmatpush1.msra.mxu0 0.0
  %3037 = vmatprep.subr.mxu0 0.0
  %3038 = vmatpush1.msra.mxu0 0.0
  %3039 = vmatprep.subr.mxu0 0.0
  %3040 = vmatpush1.msra.mxu0 0.0
  %3041 = vmatprep.subr.mxu0 0.0
  %3042 = vmatpush1.msra.mxu0 0.0
  %3043 = vmatprep.subr.mxu0 0.0
  %3044 = vmatpush1.msra.mxu0 0.0
  %3045 = vmatprep.subr.mxu0 0.0
  %3046 = vmatpush1.msra.mxu0 0.0
  %3047 = vmatprep.subr.mxu0 0.0
  %3048 = vmatpush1.msra.mxu0 0.0
  %3049 = vmatprep.subr.mxu0 0.0
  %3050 = vmatpush1.msra.mxu0 0.0
  %3051 = vmatprep.subr.mxu0 0.0
  %3052 = vmatpush1.msra.mxu0 0.0
  %3053 = vmatprep.subr.mxu0 0.0
  %3054 = vmatpush1.msra.mxu0 0.0
  %3055 = vmatprep.subr.mxu0 0.0
  %3056 = vmatpush1.msra.mxu0 0.0
  %3057 = vmatprep.subr.mxu0 0.0
  %3058 = vmatpush1.msra.mxu0 0.0
  %3059 = vmatprep.subr.mxu0 0.0
  %3060 = vmatpush1.msra.mxu0 0.0
  %3061 = vmatprep.subr.mxu0 0.0
  %3062 = vmatpush1.msra.mxu0 0.0
  %3063 = vmatprep.subr.mxu0 0.0
  %3064 = vmatpush1.msra.mxu0 0.0
  %3065 = vmatprep.subr.mxu0 0.0
  %3066 = vmatpush1.msra.mxu0 0.0
  %3067 = vmatprep.subr.mxu0 0.0
  %3068 = vmatpush1.msra.mxu0 0.0
  %3069 = vmatprep.mubr.f32.mxu0 0.0
  %3070 = vmatmul.mubr.f32.gmra.mrb[0].mxu0 %v3003
  %v3071 = vpop.f32.mrb[0].mxu0
  %v3072 = vadd.f32 0.0, %v3071
  %v3073 = vpop.f32.mrb[0].mxu0
  %3074 = vdwg.mxu0
  %3075 = vrot.lane.b32.xlu0 %v2057, 112
  %v3076 = vpop.permute.xlu0 %3075
  %3077 = vrot.lane.b32.xlu0 %v2057, 80
  %v3078 = vpop.permute.xlu0 %3077
  %v3079 = vsel %vm203, %v3076, 0
  %v3081 = vsel %vm203, %v3078, 0
  %3083 = vmatprep.subr.mxu0 0.0
  %3084 = vmatpush1.xpose.msra.mxu0 %v3081
  %3085 = vmatprep.subr.mxu0 0.0
  %3086 = vmatpush1.xpose.msra.mxu0 0.0
  %3087 = vmatprep.subr.mxu0 0.0
  %3088 = vmatpush1.xpose.msra.mxu0 0.0
  %3089 = vmatprep.subr.mxu0 0.0
  %3090 = vmatpush1.xpose.msra.mxu0 0.0
  %3091 = vmatprep.subr.mxu0 0.0
  %3092 = vmatpush1.xpose.msra.mxu0 0.0
  %3093 = vmatprep.subr.mxu0 0.0
  %3094 = vmatpush1.xpose.msra.mxu0 0.0
  %3095 = vmatprep.subr.mxu0 0.0
  %3096 = vmatpush1.xpose.msra.mxu0 0.0
  %3097 = vmatprep.subr.mxu0 0.0
  %3098 = vmatpush1.xpose.msra.mxu0 0.0
  %3099 = vmatprep.subr.mxu0 0.0
  %3100 = vmatpush1.xpose.msra.mxu0 0.0
  %3101 = vmatprep.subr.mxu0 0.0
  %3102 = vmatpush1.xpose.msra.mxu0 0.0
  %3103 = vmatprep.subr.mxu0 0.0
  %3104 = vmatpush1.xpose.msra.mxu0 0.0
  %3105 = vmatprep.subr.mxu0 0.0
  %3106 = vmatpush1.xpose.msra.mxu0 0.0
  %3107 = vmatprep.subr.mxu0 0.0
  %3108 = vmatpush1.xpose.msra.mxu0 0.0
  %3109 = vmatprep.subr.mxu0 0.0
  %3110 = vmatpush1.xpose.msra.mxu0 0.0
  %3111 = vmatprep.subr.mxu0 0.0
  %3112 = vmatpush1.xpose.msra.mxu0 0.0
  %3113 = vmatprep.subr.mxu0 0.0
  %3114 = vmatpush1.xpose.msra.mxu0 0.0
  %3115 = vmatprep.subr.mxu0 0.0
  %3116 = vmatpush1.xpose.msra.mxu0 0.0
  %3117 = vmatprep.subr.mxu0 0.0
  %3118 = vmatpush1.xpose.msra.mxu0 0.0
  %3119 = vmatprep.subr.mxu0 0.0
  %3120 = vmatpush1.xpose.msra.mxu0 0.0
  %3121 = vmatprep.subr.mxu0 0.0
  %3122 = vmatpush1.xpose.msra.mxu0 0.0
  %3123 = vmatprep.subr.mxu0 0.0
  %3124 = vmatpush1.xpose.msra.mxu0 0.0
  %3125 = vmatprep.subr.mxu0 0.0
  %3126 = vmatpush1.xpose.msra.mxu0 0.0
  %3127 = vmatprep.subr.mxu0 0.0
  %3128 = vmatpush1.xpose.msra.mxu0 0.0
  %3129 = vmatprep.subr.mxu0 0.0
  %3130 = vmatpush1.xpose.msra.mxu0 0.0
  %3131 = vmatprep.subr.mxu0 0.0
  %3132 = vmatpush1.xpose.msra.mxu0 0.0
  %3133 = vmatprep.subr.mxu0 0.0
  %3134 = vmatpush1.xpose.msra.mxu0 0.0
  %3135 = vmatprep.subr.mxu0 0.0
  %3136 = vmatpush1.xpose.msra.mxu0 0.0
  %3137 = vmatprep.subr.mxu0 0.0
  %3138 = vmatpush1.xpose.msra.mxu0 0.0
  %3139 = vmatprep.subr.mxu0 0.0
  %3140 = vmatpush1.xpose.msra.mxu0 0.0
  %3141 = vmatprep.subr.mxu0 0.0
  %3142 = vmatpush1.xpose.msra.mxu0 0.0
  %3143 = vmatprep.subr.mxu0 0.0
  %3144 = vmatpush1.xpose.msra.mxu0 0.0
  %3145 = vmatprep.subr.mxu0 0.0
  %3146 = vmatpush1.xpose.msra.mxu0 0.0
  %3147 = vmatprep.mubr.f32.mxu0 0.0
  %3148 = vmatmul.mubr.f32.gmra.mrb[0].mxu0 %v3079
  %v3149 = vpop.f32.mrb[0].mxu0
  %v3150 = vadd.f32 0.0, %v3149
  %v3151 = vpop.f32.mrb[0].mxu0
  %3152 = vdwg.mxu0
  %v3153 = vmul.f32 %v3150, 0.35355338
  %v3154 = vadd.f32 %v3153, %v970
  %v3155 = vsel %vm203, %v3154, -inf
  %3156 = vmax.xlane.f32.xlu0 %v3155
  %v3157 = vpop.xlane.xlu0 %3156
  %v3158 = vsub.f32 %v3154, %v3157
  %v3159 = vmul.f32 %v3158, 1.442695
  %v3160 = vpow.pop %v3159
  %v3161 = vsel %vm203, %v3160, 0.0
  %3162 = vadd.xlane.f32.xlu0 %v3161
  %v3163 = vpop.xlane.xlu0 %3162
  %v3164 = vrcp.pop %v3163
  %v3165 = vmul.f32 %v3160, %v3164
  %3166 = vrot.lane.b32.xlu0 %v2057, 48
  %v3167 = vpop.permute.xlu0 %3166
  %v3170 = vsel %vm203, %v3165, 0
  %3172 = vmatprep.subr.mxu0 0.0
  %3173 = vmatpush1.msra.mxu0 %v3167
  %3174 = vmatprep.subr.mxu0 0.0
  %3175 = vmatpush1.msra.mxu0 0.0
  %3176 = vmatprep.subr.mxu0 0.0
  %3177 = vmatpush1.msra.mxu0 0.0
  %3178 = vmatprep.subr.mxu0 0.0
  %3179 = vmatpush1.msra.mxu0 0.0
  %3180 = vmatprep.subr.mxu0 0.0
  %3181 = vmatpush1.msra.mxu0 0.0
  %3182 = vmatprep.subr.mxu0 0.0
  %3183 = vmatpush1.msra.mxu0 0.0
  %3184 = vmatprep.subr.mxu0 0.0
  %3185 = vmatpush1.msra.mxu0 0.0
  %3186 = vmatprep.subr.mxu0 0.0
  %3187 = vmatpush1.msra.mxu0 0.0
  %3188 = vmatprep.subr.mxu0 0.0
  %3189 = vmatpush1.msra.mxu0 0.0
  %3190 = vmatprep.subr.mxu0 0.0
  %3191 = vmatpush1.msra.mxu0 0.0
  %3192 = vmatprep.subr.mxu0 0.0
  %3193 = vmatpush1.msra.mxu0 0.0
  %3194 = vmatprep.subr.mxu0 0.0
  %3195 = vmatpush1.msra.mxu0 0.0
  %3196 = vmatprep.subr.mxu0 0.0
  %3197 = vmatpush1.msra.mxu0 0.0
  %3198 = vmatprep.subr.mxu0 0.0
  %3199 = vmatpush1.msra.mxu0 0.0
  %3200 = vmatprep.subr.mxu0 0.0
  %3201 = vmatpush1.msra.mxu0 0.0
  %3202 = vmatprep.subr.mxu0 0.0
  %3203 = vmatpush1.msra.mxu0 0.0
  %3204 = vmatprep.subr.mxu0 0.0
  %3205 = vmatpush1.msra.mxu0 0.0
  %3206 = vmatprep.subr.mxu0 0.0
  %3207 = vmatpush1.msra.mxu0 0.0
  %3208 = vmatprep.subr.mxu0 0.0
  %3209 = vmatpush1.msra.mxu0 0.0
  %3210 = vmatprep.subr.mxu0 0.0
  %3211 = vmatpush1.msra.mxu0 0.0
  %3212 = vmatprep.subr.mxu0 0.0
  %3213 = vmatpush1.msra.mxu0 0.0
  %3214 = vmatprep.subr.mxu0 0.0
  %3215 = vmatpush1.msra.mxu0 0.0
  %3216 = vmatprep.subr.mxu0 0.0
  %3217 = vmatpush1.msra.mxu0 0.0
  %3218 = vmatprep.subr.mxu0 0.0
  %3219 = vmatpush1.msra.mxu0 0.0
  %3220 = vmatprep.subr.mxu0 0.0
  %3221 = vmatpush1.msra.mxu0 0.0
  %3222 = vmatprep.subr.mxu0 0.0
  %3223 = vmatpush1.msra.mxu0 0.0
  %3224 = vmatprep.subr.mxu0 0.0
  %3225 = vmatpush1.msra.mxu0 0.0
  %3226 = vmatprep.subr.mxu0 0.0
  %3227 = vmatpush1.msra.mxu0 0.0
  %3228 = vmatprep.subr.mxu0 0.0
  %3229 = vmatpush1.msra.mxu0 0.0
  %3230 = vmatprep.subr.mxu0 0.0
  %3231 = vmatpush1.msra.mxu0 0.0
  %3232 = vmatprep.subr.mxu0 0.0
  %3233 = vmatpush1.msra.mxu0 0.0
  %3234 = vmatprep.subr.mxu0 0.0
  %3235 = vmatpush1.msra.mxu0 0.0
  %3236 = vmatprep.mubr.f32.mxu0 0.0
  %3237 = vmatmul.mubr.f32.gmra.mrb[0].mxu0 %v3170
  %v3238 = vpop.f32.mrb[0].mxu0
  %v3239 = vadd.f32 0.0, %v3238
  %v3240 = vpop.f32.mrb[0].mxu0
  %3241 = vdwg.mxu0
  %3242 = vrot.lane.b32.xlu0 %v2057, 104
  %v3243 = vpop.permute.xlu0 %3242
  %3244 = vrot.lane.b32.xlu0 %v2057, 72
  %v3245 = vpop.permute.xlu0 %3244
  %v3246 = vsel %vm203, %v3243, 0
  %v3248 = vsel %vm203, %v3245, 0
  %3250 = vmatprep.subr.mxu0 0.0
  %3251 = vmatpush1.xpose.msra.mxu0 %v3248
  %3252 = vmatprep.subr.mxu0 0.0
  %3253 = vmatpush1.xpose.msra.mxu0 0.0
  %3254 = vmatprep.subr.mxu0 0.0
  %3255 = vmatpush1.xpose.msra.mxu0 0.0
  %3256 = vmatprep.subr.mxu0 0.0
  %3257 = vmatpush1.xpose.msra.mxu0 0.0
  %3258 = vmatprep.subr.mxu0 0.0
  %3259 = vmatpush1.xpose.msra.mxu0 0.0
  %3260 = vmatprep.subr.mxu0 0.0
  %3261 = vmatpush1.xpose.msra.mxu0 0.0
  %3262 = vmatprep.subr.mxu0 0.0
  %3263 = vmatpush1.xpose.msra.mxu0 0.0
  %3264 = vmatprep.subr.mxu0 0.0
  %3265 = vmatpush1.xpose.msra.mxu0 0.0
  %3266 = vmatprep.subr.mxu0 0.0
  %3267 = vmatpush1.xpose.msra.mxu0 0.0
  %3268 = vmatprep.subr.mxu0 0.0
  %3269 = vmatpush1.xpose.msra.mxu0 0.0
  %3270 = vmatprep.subr.mxu0 0.0
  %3271 = vmatpush1.xpose.msra.mxu0 0.0
  %3272 = vmatprep.subr.mxu0 0.0
  %3273 = vmatpush1.xpose.msra.mxu0 0.0
  %3274 = vmatprep.subr.mxu0 0.0
  %3275 = vmatpush1.xpose.msra.mxu0 0.0
  %3276 = vmatprep.subr.mxu0 0.0
  %3277 = vmatpush1.xpose.msra.mxu0 0.0
  %3278 = vmatprep.subr.mxu0 0.0
  %3279 = vmatpush1.xpose.msra.mxu0 0.0
  %3280 = vmatprep.subr.mxu0 0.0
  %3281 = vmatpush1.xpose.msra.mxu0 0.0
  %3282 = vmatprep.subr.mxu0 0.0
  %3283 = vmatpush1.xpose.msra.mxu0 0.0
  %3284 = vmatprep.subr.mxu0 0.0
  %3285 = vmatpush1.xpose.msra.mxu0 0.0
  %3286 = vmatprep.subr.mxu0 0.0
  %3287 = vmatpush1.xpose.msra.mxu0 0.0
  %3288 = vmatprep.subr.mxu0 0.0
  %3289 = vmatpush1.xpose.msra.mxu0 0.0
  %3290 = vmatprep.subr.mxu0 0.0
  %3291 = vmatpush1.xpose.msra.mxu0 0.0
  %3292 = vmatprep.subr.mxu0 0.0
  %3293 = vmatpush1.xpose.msra.mxu0 0.0
  %3294 = vmatprep.subr.mxu0 0.0
  %3295 = vmatpush1.xpose.msra.mxu0 0.0
  %3296 = vmatprep.subr.mxu0 0.0
  %3297 = vmatpush1.xpose.msra.mxu0 0.0
  %3298 = vmatprep.subr.mxu0 0.0
  %3299 = vmatpush1.xpose.msra.mxu0 0.0
  %3300 = vmatprep.subr.mxu0 0.0
  %3301 = vmatpush1.xpose.msra.mxu0 0.0
  %3302 = vmatprep.subr.mxu0 0.0
  %3303 = vmatpush1.xpose.msra.mxu0 0.0
  %3304 = vmatprep.subr.mxu0 0.0
  %3305 = vmatpush1.xpose.msra.mxu0 0.0
  %3306 = vmatprep.subr.mxu0 0.0
  %3307 = vmatpush1.xpose.msra.mxu0 0.0
  %3308 = vmatprep.subr.mxu0 0.0
  %3309 = vmatpush1.xpose.msra.mxu0 0.0
  %3310 = vmatprep.subr.mxu0 0.0
  %3311 = vmatpush1.xpose.msra.mxu0 0.0
  %3312 = vmatprep.subr.mxu0 0.0
  %3313 = vmatpush1.xpose.msra.mxu0 0.0
  %3314 = vmatprep.mubr.f32.mxu0 0.0
  %3315 = vmatmul.mubr.f32.gmra.mrb[0].mxu0 %v3246
  %v3316 = vpop.f32.mrb[0].mxu0
  %v3317 = vadd.f32 0.0, %v3316
  %v3318 = vpop.f32.mrb[0].mxu0
  %3319 = vdwg.mxu0
  %v3320 = vmul.f32 %v3317, 0.35355338
  %v3321 = vadd.f32 %v3320, %v970
  %v3322 = vsel %vm203, %v3321, -inf
  %3323 = vmax.xlane.f32.xlu0 %v3322
  %v3324 = vpop.xlane.xlu0 %3323
  %v3325 = vsub.f32 %v3321, %v3324
  %v3326 = vmul.f32 %v3325, 1.442695
  %v3327 = vpow.pop %v3326
  %v3328 = vsel %vm203, %v3327, 0.0
  %3329 = vadd.xlane.f32.xlu0 %v3328
  %v3330 = vpop.xlane.xlu0 %3329
  %v3331 = vrcp.pop %v3330
  %v3332 = vmul.f32 %v3327, %v3331
  %3333 = vrot.lane.b32.xlu0 %v2057, 40
  %v3334 = vpop.permute.xlu0 %3333
  %v3337 = vsel %vm203, %v3332, 0
  %3339 = vmatprep.subr.mxu0 0.0
  %3340 = vmatpush1.msra.mxu0 %v3334
  %3341 = vmatprep.subr.mxu0 0.0
  %3342 = vmatpush1.msra.mxu0 0.0
  %3343 = vmatprep.subr.mxu0 0.0
  %3344 = vmatpush1.msra.mxu0 0.0
  %3345 = vmatprep.subr.mxu0 0.0
  %3346 = vmatpush1.msra.mxu0 0.0
  %3347 = vmatprep.subr.mxu0 0.0
  %3348 = vmatpush1.msra.mxu0 0.0
  %3349 = vmatprep.subr.mxu0 0.0
  %3350 = vmatpush1.msra.mxu0 0.0
  %3351 = vmatprep.subr.mxu0 0.0
  %3352 = vmatpush1.msra.mxu0 0.0
  %3353 = vmatprep.subr.mxu0 0.0
  %3354 = vmatpush1.msra.mxu0 0.0
  %3355 = vmatprep.subr.mxu0 0.0
  %3356 = vmatpush1.msra.mxu0 0.0
  %3357 = vmatprep.subr.mxu0 0.0
  %3358 = vmatpush1.msra.mxu0 0.0
  %3359 = vmatprep.subr.mxu0 0.0
  %3360 = vmatpush1.msra.mxu0 0.0
  %3361 = vmatprep.subr.mxu0 0.0
  %3362 = vmatpush1.msra.mxu0 0.0
  %3363 = vmatprep.subr.mxu0 0.0
  %3364 = vmatpush1.msra.mxu0 0.0
  %3365 = vmatprep.subr.mxu0 0.0
  %3366 = vmatpush1.msra.mxu0 0.0
  %3367 = vmatprep.subr.mxu0 0.0
  %3368 = vmatpush1.msra.mxu0 0.0
  %3369 = vmatprep.subr.mxu0 0.0
  %3370 = vmatpush1.msra.mxu0 0.0
  %3371 = vmatprep.subr.mxu0 0.0
  %3372 = vmatpush1.msra.mxu0 0.0
  %3373 = vmatprep.subr.mxu0 0.0
  %3374 = vmatpush1.msra.mxu0 0.0
  %3375 = vmatprep.subr.mxu0 0.0
  %3376 = vmatpush1.msra.mxu0 0.0
  %3377 = vmatprep.subr.mxu0 0.0
  %3378 = vmatpush1.msra.mxu0 0.0
  %3379 = vmatprep.subr.mxu0 0.0
  %3380 = vmatpush1.msra.mxu0 0.0
  %3381 = vmatprep.subr.mxu0 0.0
  %3382 = vmatpush1.msra.mxu0 0.0
  %3383 = vmatprep.subr.mxu0 0.0
  %3384 = vmatpush1.msra.mxu0 0.0
  %3385 = vmatprep.subr.mxu0 0.0
  %3386 = vmatpush1.msra.mxu0 0.0
  %3387 = vmatprep.subr.mxu0 0.0
  %3388 = vmatpush1.msra.mxu0 0.0
  %3389 = vmatprep.subr.mxu0 0.0
  %3390 = vmatpush1.msra.mxu0 0.0
  %3391 = vmatprep.subr.mxu0 0.0
  %3392 = vmatpush1.msra.mxu0 0.0
  %3393 = vmatprep.subr.mxu0 0.0
  %3394 = vmatpush1.msra.mxu0 0.0
  %3395 = vmatprep.subr.mxu0 0.0
  %3396 = vmatpush1.msra.mxu0 0.0
  %3397 = vmatprep.subr.mxu0 0.0
  %3398 = vmatpush1.msra.mxu0 0.0
  %3399 = vmatprep.subr.mxu0 0.0
  %3400 = vmatpush1.msra.mxu0 0.0
  %3401 = vmatprep.subr.mxu0 0.0
  %3402 = vmatpush1.msra.mxu0 0.0
  %3403 = vmatprep.mubr.f32.mxu0 0.0
  %3404 = vmatmul.mubr.f32.gmra.mrb[0].mxu0 %v3337
  %v3405 = vpop.f32.mrb[0].mxu0
  %v3406 = vadd.f32 0.0, %v3405
  %v3407 = vpop.f32.mrb[0].mxu0
  %3408 = vdwg.mxu0
  %3410 = vrot.lane.b32.xlu0 %v3072, 8
  %v3411 = vpop.permute.xlu0 %3410
  %3414 = vrot.lane.b32.xlu0 %v3239, 16
  %v3415 = vpop.permute.xlu0 %3414
  %3418 = vrot.lane.b32.xlu0 %v3406, 24
  %v3419 = vpop.permute.xlu0 %3418
  %v3421 = vsel %vm203, %v2905, %v3411
  %v3422 = vsel %vm885, %v3421, %v3415
  %v3423 = vsel %vm887, %v3422, %v3419
  %s3424 = scalar_lea.vmem %s6, 32
  %v3425 = vld [vmem:[%s3424] sm:$0xff]
  %v3426 = vld [vmem:[%s3424 + $0x8] sm:$0xff]
  %v3427 = vld [vmem:[%s3424 + $0x10] sm:$0xff]
  %v3428 = vld [vmem:[%s3424 + $0x18] sm:$0xff]
  %s3429 = scalar_lea.vmem %s7, 1
  %v3430 = vld [vmem:[%s3429] sm:$0x1]
  %v3432 = vlaneseq
  %v3433 = vshrl.u32 %v3432, 7
  %v3434 = vsub.s32 0, %v3433
  %v3435 = vrot.slane %v3430, %v3434
  %v3438 = vsel %vm63, %v2741, 0
  %v3441 = vsel %vm63, %v3423, 0
  %3443 = vmatprep.subr.mxu0 0.0
  %3444 = vmatpush1.msra.mxu0 %v3425
  %3445 = vmatprep.subr.mxu0 0.0
  %3446 = vmatpush1.msra.mxu0 %v3426
  %3447 = vmatprep.subr.mxu0 0.0
  %3448 = vmatpush1.msra.mxu0 %v3427
  %3449 = vmatprep.subr.mxu0 0.0
  %3450 = vmatpush1.msra.mxu0 %v3428
  %3451 = vmatprep.subr.mxu0 0.0
  %3452 = vmatpush1.msra.mxu0 0.0
  %3453 = vmatprep.subr.mxu0 0.0
  %3454 = vmatpush1.msra.mxu0 0.0
  %3455 = vmatprep.subr.mxu0 0.0
  %3456 = vmatpush1.msra.mxu0 0.0
  %3457 = vmatprep.subr.mxu0 0.0
  %3458 = vmatpush1.msra.mxu0 0.0
  %3459 = vmatprep.subr.mxu0 0.0
  %3460 = vmatpush1.msra.mxu0 0.0
  %3461 = vmatprep.subr.mxu0 0.0
  %3462 = vmatpush1.msra.mxu0 0.0
  %3463 = vmatprep.subr.mxu0 0.0
  %3464 = vmatpush1.msra.mxu0 0.0
  %3465 = vmatprep.subr.mxu0 0.0
  %3466 = vmatpush1.msra.mxu0 0.0
  %3467 = vmatprep.subr.mxu0 0.0
  %3468 = vmatpush1.msra.mxu0 0.0
  %3469 = vmatprep.subr.mxu0 0.0
  %3470 = vmatpush1.msra.mxu0 0.0
  %3471 = vmatprep.subr.mxu0 0.0
  %3472 = vmatpush1.msra.mxu0 0.0
  %3473 = vmatprep.subr.mxu0 0.0
  %3474 = vmatpush1.msra.mxu0 0.0
  %3475 = vmatprep.subr.mxu0 0.0
  %3476 = vmatpush1.msra.mxu0 0.0
  %3477 = vmatprep.subr.mxu0 0.0
  %3478 = vmatpush1.msra.mxu0 0.0
  %3479 = vmatprep.subr.mxu0 0.0
  %3480 = vmatpush1.msra.mxu0 0.0
  %3481 = vmatprep.subr.mxu0 0.0
  %3482 = vmatpush1.msra.mxu0 0.0
  %3483 = vmatprep.subr.mxu0 0.0
  %3484 = vmatpush1.msra.mxu0 0.0
  %3485 = vmatprep.subr.mxu0 0.0
  %3486 = vmatpush1.msra.mxu0 0.0
  %3487 = vmatprep.subr.mxu0 0.0
  %3488 = vmatpush1.msra.mxu0 0.0
  %3489 = vmatprep.subr.mxu0 0.0
  %3490 = vmatpush1.msra.mxu0 0.0
  %3491 = vmatprep.subr.mxu0 0.0
  %3492 = vmatpush1.msra.mxu0 0.0
  %3493 = vmatprep.subr.mxu0 0.0
  %3494 = vmatpush1.msra.mxu0 0.0
  %3495 = vmatprep.subr.mxu0 0.0
  %3496 = vmatpush1.msra.mxu0 0.0
  %3497 = vmatprep.subr.mxu0 0.0
  %3498 = vmatpush1.msra.mxu0 0.0
  %3499 = vmatprep.subr.mxu0 0.0
  %3500 = vmatpush1.msra.mxu0 0.0
  %3501 = vmatprep.subr.mxu0 0.0
  %3502 = vmatpush1.msra.mxu0 0.0
  %3503 = vmatprep.subr.mxu0 0.0
  %3504 = vmatpush1.msra.mxu0 0.0
  %3505 = vmatprep.subr.mxu0 0.0
  %3506 = vmatpush1.msra.mxu0 0.0
  %3507 = vmatprep.mubr.f32.mxu0 0.0
  %3508 = vmatmul.mubr.f32.gmra.mrb[0].mxu0 %v3438
  %v3509 = vpop.f32.mrb[0].mxu0
  %v3510 = vadd.f32 %v3435, %v3509
  %v3511 = vpop.f32.mrb[0].mxu0
  %3512 = vmatprep.mubr.f32.mxu0 0.0
  %3513 = vmatmul.mubr.f32.gmra.mrb[0].mxu0 %v3441
  %v3514 = vpop.f32.mrb[0].mxu0
  %v3515 = vadd.f32 %v3435, %v3514
  %v3516 = vpop.f32.mrb[0].mxu0
  %3517 = vdwg.mxu0
  %v3518 = vadd.f32 %v3510, %v1964
  %v3519 = vadd.f32 %v3515, %v1965
  %s3520 = scalar_lea.vmem %s8, 1
  %v3521 = vld [vmem:[%s3520] sm:$0x1]
  %s3522 = scalar_lea.vmem %s9, 1
  %v3523 = vld [vmem:[%s3522] sm:$0x1]
  %v3524 = vsel %vm63, %v3518, 0.0
  %3525 = vadd.xlane.f32.xlu0 %v3524
  %v3526 = vpop.xlane.xlu0 %3525
  %v3527 = vsel %vm63, %v3519, 0.0
  %3528 = vadd.xlane.f32.xlu0 %v3527
  %v3529 = vpop.xlane.xlu0 %3528
  %v3530 = vmul.f32 %v3526, %v70
  %v3531 = vmul.f32 %v3529, %v70
  %v3532 = vsub.f32 %v3518, %v3530
  %v3533 = vsub.f32 %v3519, %v3531
  %v3534 = vmul.f32 %v3532, %v3532
  %v3535 = vmul.f32 %v3533, %v3533
  %v3536 = vsel %vm63, %v3534, 0.0
  %3537 = vadd.xlane.f32.xlu0 %v3536
  %v3538 = vpop.xlane.xlu0 %3537
  %v3539 = vsel %vm63, %v3535, 0.0
  %3540 = vadd.xlane.f32.xlu0 %v3539
  %v3541 = vpop.xlane.xlu0 %3540
  %v3542 = vmul.f32 %v3538, %v70
  %v3543 = vmul.f32 %v3541, %v70
  %v3544 = vadd.f32 %v3542, 1e-12
  %v3545 = vadd.f32 %v3543, 1e-12
  %v3546 = vrsqrt.pop %v3544
  %v3547 = vrsqrt.pop %v3545
  %v3548 = vmul.f32 %v3532, %v3546
  %v3549 = vmul.f32 %v3533, %v3547
  %v3551 = vlaneseq
  %v3552 = vshrl.u32 %v3551, 7
  %v3553 = vsub.s32 0, %v3552
  %v3554 = vrot.slane %v3521, %v3553
  %v3556 = vmul.f32 %v3548, %v3554
  %v3557 = vmul.f32 %v3549, %v3554
  %v3559 = vlaneseq
  %v3560 = vshrl.u32 %v3559, 7
  %v3561 = vsub.s32 0, %v3560
  %v3562 = vrot.slane %v3523, %v3561
  %v3564 = vadd.f32 %v3556, %v3562
  %v3565 = vadd.f32 %v3557, %v3562
  %s3566 = scalar_lea.vmem %s10, 32
  %v3567 = vld [vmem:[%s3566] sm:$0xff]
  %v3568 = vld [vmem:[%s3566 + $0x8] sm:$0xff]
  %v3569 = vld [vmem:[%s3566 + $0x10] sm:$0xff]
  %v3570 = vld [vmem:[%s3566 + $0x18] sm:$0xff]
  %s3571 = scalar_lea.vmem %s11, 1
  %v3572 = vld [vmem:[%s3571] sm:$0x1]
  %v3574 = vlaneseq
  %v3575 = vshrl.u32 %v3574, 7
  %v3576 = vsub.s32 0, %v3575
  %v3577 = vrot.slane %v3572, %v3576
  %v3580 = vsel %vm63, %v3564, 0
  %v3583 = vsel %vm63, %v3565, 0
  %3585 = vmatprep.subr.mxu0 0.0
  %3586 = vmatpush1.msra.mxu0 %v3567
  %3587 = vmatprep.subr.mxu0 0.0
  %3588 = vmatpush1.msra.mxu0 %v3568
  %3589 = vmatprep.subr.mxu0 0.0
  %3590 = vmatpush1.msra.mxu0 %v3569
  %3591 = vmatprep.subr.mxu0 0.0
  %3592 = vmatpush1.msra.mxu0 %v3570
  %3593 = vmatprep.subr.mxu0 0.0
  %3594 = vmatpush1.msra.mxu0 0.0
  %3595 = vmatprep.subr.mxu0 0.0
  %3596 = vmatpush1.msra.mxu0 0.0
  %3597 = vmatprep.subr.mxu0 0.0
  %3598 = vmatpush1.msra.mxu0 0.0
  %3599 = vmatprep.subr.mxu0 0.0
  %3600 = vmatpush1.msra.mxu0 0.0
  %3601 = vmatprep.subr.mxu0 0.0
  %3602 = vmatpush1.msra.mxu0 0.0
  %3603 = vmatprep.subr.mxu0 0.0
  %3604 = vmatpush1.msra.mxu0 0.0
  %3605 = vmatprep.subr.mxu0 0.0
  %3606 = vmatpush1.msra.mxu0 0.0
  %3607 = vmatprep.subr.mxu0 0.0
  %3608 = vmatpush1.msra.mxu0 0.0
  %3609 = vmatprep.subr.mxu0 0.0
  %3610 = vmatpush1.msra.mxu0 0.0
  %3611 = vmatprep.subr.mxu0 0.0
  %3612 = vmatpush1.msra.mxu0 0.0
  %3613 = vmatprep.subr.mxu0 0.0
  %3614 = vmatpush1.msra.mxu0 0.0
  %3615 = vmatprep.subr.mxu0 0.0
  %3616 = vmatpush1.msra.mxu0 0.0
  %3617 = vmatprep.subr.mxu0 0.0
  %3618 = vmatpush1.msra.mxu0 0.0
  %3619 = vmatprep.subr.mxu0 0.0
  %3620 = vmatpush1.msra.mxu0 0.0
  %3621 = vmatprep.subr.mxu0 0.0
  %3622 = vmatpush1.msra.mxu0 0.0
  %3623 = vmatprep.subr.mxu0 0.0
  %3624 = vmatpush1.msra.mxu0 0.0
  %3625 = vmatprep.subr.mxu0 0.0
  %3626 = vmatpush1.msra.mxu0 0.0
  %3627 = vmatprep.subr.mxu0 0.0
  %3628 = vmatpush1.msra.mxu0 0.0
  %3629 = vmatprep.subr.mxu0 0.0
  %3630 = vmatpush1.msra.mxu0 0.0
  %3631 = vmatprep.subr.mxu0 0.0
  %3632 = vmatpush1.msra.mxu0 0.0
  %3633 = vmatprep.subr.mxu0 0.0
  %3634 = vmatpush1.msra.mxu0 0.0
  %3635 = vmatprep.subr.mxu0 0.0
  %3636 = vmatpush1.msra.mxu0 0.0
  %3637 = vmatprep.subr.mxu0 0.0
  %3638 = vmatpush1.msra.mxu0 0.0
  %3639 = vmatprep.subr.mxu0 0.0
  %3640 = vmatpush1.msra.mxu0 0.0
  %3641 = vmatprep.subr.mxu0 0.0
  %3642 = vmatpush1.msra.mxu0 0.0
  %3643 = vmatprep.subr.mxu0 0.0
  %3644 = vmatpush1.msra.mxu0 0.0
  %3645 = vmatprep.subr.mxu0 0.0
  %3646 = vmatpush1.msra.mxu0 0.0
  %3647 = vmatprep.subr.mxu0 0.0
  %3648 = vmatpush1.msra.mxu0 0.0
  %3649 = vmatprep.mubr.f32.mxu0 0.0
  %3650 = vmatmul.mubr.f32.gmra.mrb[0].mxu0 %v3580
  %v3651 = vpop.f32.mrb[0].mxu0
  %v3652 = vadd.f32 %v3577, %v3651
  %v3653 = vpop.f32.mrb[0].mxu0
  %3654 = vmatprep.mubr.f32.mxu0 0.0
  %3655 = vmatmul.mubr.f32.gmra.mrb[0].mxu0 %v3583
  %v3656 = vpop.f32.mrb[0].mxu0
  %v3657 = vadd.f32 %v3577, %v3656
  %v3658 = vpop.f32.mrb[0].mxu0
  %3659 = vdwg.mxu0
  %v3660 = vmul.f32 %v3652, 0.5
  %v3661 = vmul.f32 %v3657, 0.5
  %v3662 = vmul.f32 %v3652, 0.044715
  %v3663 = vmul.f32 %v3657, 0.044715
  %v3664 = vmul.f32 %v3662, %v3652
  %v3665 = vmul.f32 %v3663, %v3657
  %v3666 = vmul.f32 %v3664, %v3652
  %v3667 = vmul.f32 %v3665, %v3657
  %v3668 = vadd.f32 %v3652, %v3666
  %v3669 = vadd.f32 %v3657, %v3667
  %v3670 = vmul.f32 %v3668, 0.7978846
  %v3671 = vmul.f32 %v3669, 0.7978846
  %v3672 = vtanh.pop %v3670
  %v3673 = vtanh.pop %v3671
  %v3674 = vadd.f32 %v3672, 1.0
  %v3675 = vadd.f32 %v3673, 1.0
  %v3676 = vmul.f32 %v3660, %v3674
  %v3677 = vmul.f32 %v3661, %v3675
  %s3678 = scalar_lea.vmem %s12, 64
  %v3679 = vld [vmem:[%s3678] sm:$0xff]
  %v3680 = vld [vmem:[%s3678 + $0x8] sm:$0xff]
  %v3681 = vld [vmem:[%s3678 + $0x10] sm:$0xff]
  %v3682 = vld [vmem:[%s3678 + $0x18] sm:$0xff]
  %v3683 = vld [vmem:[%s3678 + $0x20] sm:$0xff]
  %v3684 = vld [vmem:[%s3678 + $0x28] sm:$0xff]
  %v3685 = vld [vmem:[%s3678 + $0x30] sm:$0xff]
  %v3686 = vld [vmem:[%s3678 + $0x38] sm:$0xff]
  %s3687 = scalar_lea.vmem %s13, 1
  %v3688 = vld [vmem:[%s3687] sm:$0x1]
  %v3690 = vlaneseq
  %v3691 = vshrl.u32 %v3690, 7
  %v3692 = vsub.s32 0, %v3691
  %v3693 = vrot.slane %v3688, %v3692
  %v3696 = vsel %vm1838, %v3676, 0
  %v3699 = vsel %vm1838, %v3677, 0
  %3701 = vmatprep.subr.mxu0 0.0
  %3702 = vmatpush1.msra.mxu0 %v3679
  %3703 = vmatprep.subr.mxu0 0.0
  %3704 = vmatpush1.msra.mxu0 %v3680
  %3705 = vmatprep.subr.mxu0 0.0
  %3706 = vmatpush1.msra.mxu0 %v3681
  %3707 = vmatprep.subr.mxu0 0.0
  %3708 = vmatpush1.msra.mxu0 %v3682
  %3709 = vmatprep.subr.mxu0 0.0
  %3710 = vmatpush1.msra.mxu0 %v3683
  %3711 = vmatprep.subr.mxu0 0.0
  %3712 = vmatpush1.msra.mxu0 %v3684
  %3713 = vmatprep.subr.mxu0 0.0
  %3714 = vmatpush1.msra.mxu0 %v3685
  %3715 = vmatprep.subr.mxu0 0.0
  %3716 = vmatpush1.msra.mxu0 %v3686
  %3717 = vmatprep.subr.mxu0 0.0
  %3718 = vmatpush1.msra.mxu0 0.0
  %3719 = vmatprep.subr.mxu0 0.0
  %3720 = vmatpush1.msra.mxu0 0.0
  %3721 = vmatprep.subr.mxu0 0.0
  %3722 = vmatpush1.msra.mxu0 0.0
  %3723 = vmatprep.subr.mxu0 0.0
  %3724 = vmatpush1.msra.mxu0 0.0
  %3725 = vmatprep.subr.mxu0 0.0
  %3726 = vmatpush1.msra.mxu0 0.0
  %3727 = vmatprep.subr.mxu0 0.0
  %3728 = vmatpush1.msra.mxu0 0.0
  %3729 = vmatprep.subr.mxu0 0.0
  %3730 = vmatpush1.msra.mxu0 0.0
  %3731 = vmatprep.subr.mxu0 0.0
  %3732 = vmatpush1.msra.mxu0 0.0
  %3733 = vmatprep.subr.mxu0 0.0
  %3734 = vmatpush1.msra.mxu0 0.0
  %3735 = vmatprep.subr.mxu0 0.0
  %3736 = vmatpush1.msra.mxu0 0.0
  %3737 = vmatprep.subr.mxu0 0.0
  %3738 = vmatpush1.msra.mxu0 0.0
  %3739 = vmatprep.subr.mxu0 0.0
  %3740 = vmatpush1.msra.mxu0 0.0
  %3741 = vmatprep.subr.mxu0 0.0
  %3742 = vmatpush1.msra.mxu0 0.0
  %3743 = vmatprep.subr.mxu0 0.0
  %3744 = vmatpush1.msra.mxu0 0.0
  %3745 = vmatprep.subr.mxu0 0.0
  %3746 = vmatpush1.msra.mxu0 0.0
  %3747 = vmatprep.subr.mxu0 0.0
  %3748 = vmatpush1.msra.mxu0 0.0
  %3749 = vmatprep.subr.mxu0 0.0
  %3750 = vmatpush1.msra.mxu0 0.0
  %3751 = vmatprep.subr.mxu0 0.0
  %3752 = vmatpush1.msra.mxu0 0.0
  %3753 = vmatprep.subr.mxu0 0.0
  %3754 = vmatpush1.msra.mxu0 0.0
  %3755 = vmatprep.subr.mxu0 0.0
  %3756 = vmatpush1.msra.mxu0 0.0
  %3757 = vmatprep.subr.mxu0 0.0
  %3758 = vmatpush1.msra.mxu0 0.0
  %3759 = vmatprep.subr.mxu0 0.0
  %3760 = vmatpush1.msra.mxu0 0.0
  %3761 = vmatprep.subr.mxu0 0.0
  %3762 = vmatpush1.msra.mxu0 0.0
  %3763 = vmatprep.subr.mxu0 0.0
  %3764 = vmatpush1.msra.mxu0 0.0
  %3765 = vmatprep.mubr.f32.mxu0 0.0
  %3766 = vmatmul.mubr.f32.gmra.mrb[0].mxu0 %v3696
  %v3767 = vpop.f32.mrb[0].mxu0
  %v3768 = vadd.f32 %v3693, %v3767
  %v3769 = vpop.f32.mrb[0].mxu0
  %3770 = vmatprep.mubr.f32.mxu0 0.0
  %3771 = vmatmul.mubr.f32.gmra.mrb[0].mxu0 %v3699
  %v3772 = vpop.f32.mrb[0].mxu0
  %v3773 = vadd.f32 %v3693, %v3772
  %v3774 = vpop.f32.mrb[0].mxu0
  %3775 = vdwg.mxu0
  %v3776 = vadd.f32 %v3768, %v3564
  %v3777 = vadd.f32 %v3773, %v3565
  %s3778 = scalar_lea.vmem %s14, 1
  %v3779 = vld [vmem:[%s3778] sm:$0x1]
  %s3780 = scalar_lea.vmem %s15, 1
  %v3781 = vld [vmem:[%s3780] sm:$0x1]
  %v3782 = vsel %vm63, %v3776, 0.0
  %3783 = vadd.xlane.f32.xlu0 %v3782
  %v3784 = vpop.xlane.xlu0 %3783
  %v3785 = vsel %vm63, %v3777, 0.0
  %3786 = vadd.xlane.f32.xlu0 %v3785
  %v3787 = vpop.xlane.xlu0 %3786
  %v3788 = vmul.f32 %v3784, %v70
  %v3789 = vmul.f32 %v3787, %v70
  %v3790 = vsub.f32 %v3776, %v3788
  %v3791 = vsub.f32 %v3777, %v3789
  %v3792 = vmul.f32 %v3790, %v3790
  %v3793 = vmul.f32 %v3791, %v3791
  %v3794 = vsel %vm63, %v3792, 0.0
  %3795 = vadd.xlane.f32.xlu0 %v3794
  %v3796 = vpop.xlane.xlu0 %3795
  %v3797 = vsel %vm63, %v3793, 0.0
  %3798 = vadd.xlane.f32.xlu0 %v3797
  %v3799 = vpop.xlane.xlu0 %3798
  %v3800 = vmul.f32 %v3796, %v70
  %v3801 = vmul.f32 %v3799, %v70
  %v3802 = vadd.f32 %v3800, 1e-12
  %v3803 = vadd.f32 %v3801, 1e-12
  %v3804 = vrsqrt.pop %v3802
  %v3805 = vrsqrt.pop %v3803
  %v3806 = vmul.f32 %v3790, %v3804
  %v3807 = vmul.f32 %v3791, %v3805
  %v3809 = vlaneseq
  %v3810 = vshrl.u32 %v3809, 7
  %v3811 = vsub.s32 0, %v3810
  %v3812 = vrot.slane %v3779, %v3811
  %v3814 = vmul.f32 %v3806, %v3812
  %v3815 = vmul.f32 %v3807, %v3812
  %v3817 = vlaneseq
  %v3818 = vshrl.u32 %v3817, 7
  %v3819 = vsub.s32 0, %v3818
  %v3820 = vrot.slane %v3781, %v3819
  %v3822 = vadd.f32 %v3814, %v3820
  %v3823 = vadd.f32 %v3815, %v3820
  %v3824 = vld [vmem:[%s16] sm:$0xff]
  %v3825 = vld [vmem:[%s16 + $0x8] sm:$0xff]
  %v3826 = vld [vmem:[%s16 + $0x10] sm:$0xff]
  %v3827 = vld [vmem:[%s16 + $0x18] sm:$0xff]
  %v3828 = vld [vmem:[%s17] sm:$0x1]
  %v3830 = vlaneseq
  %v3831 = vshrl.u32 %v3830, 7
  %v3832 = vsub.s32 0, %v3831
  %v3833 = vrot.slane %v3828, %v3832
  %v3836 = vsel %vm63, %v3822, 0
  %v3839 = vsel %vm63, %v3823, 0
  %3841 = vmatprep.subr.mxu0 0.0
  %3842 = vmatpush1.msra.mxu0 %v3824
  %3843 = vmatprep.subr.mxu0 0.0
  %3844 = vmatpush1.msra.mxu0 %v3825
  %3845 = vmatprep.subr.mxu0 0.0
  %3846 = vmatpush1.msra.mxu0 %v3826
  %3847 = vmatprep.subr.mxu0 0.0
  %3848 = vmatpush1.msra.mxu0 %v3827
  %3849 = vmatprep.subr.mxu0 0.0
  %3850 = vmatpush1.msra.mxu0 0.0
  %3851 = vmatprep.subr.mxu0 0.0
  %3852 = vmatpush1.msra.mxu0 0.0
  %3853 = vmatprep.subr.mxu0 0.0
  %3854 = vmatpush1.msra.mxu0 0.0
  %3855 = vmatprep.subr.mxu0 0.0
  %3856 = vmatpush1.msra.mxu0 0.0
  %3857 = vmatprep.subr.mxu0 0.0
  %3858 = vmatpush1.msra.mxu0 0.0
  %3859 = vmatprep.subr.mxu0 0.0
  %3860 = vmatpush1.msra.mxu0 0.0
  %3861 = vmatprep.subr.mxu0 0.0
  %3862 = vmatpush1.msra.mxu0 0.0
  %3863 = vmatprep.subr.mxu0 0.0
  %3864 = vmatpush1.msra.mxu0 0.0
  %3865 = vmatprep.subr.mxu0 0.0
  %3866 = vmatpush1.msra.mxu0 0.0
  %3867 = vmatprep.subr.mxu0 0.0
  %3868 = vmatpush1.msra.mxu0 0.0
  %3869 = vmatprep.subr.mxu0 0.0
  %3870 = vmatpush1.msra.mxu0 0.0
  %3871 = vmatprep.subr.mxu0 0.0
  %3872 = vmatpush1.msra.mxu0 0.0
  %3873 = vmatprep.subr.mxu0 0.0
  %3874 = vmatpush1.msra.mxu0 0.0
  %3875 = vmatprep.subr.mxu0 0.0
  %3876 = vmatpush1.msra.mxu0 0.0
  %3877 = vmatprep.subr.mxu0 0.0
  %3878 = vmatpush1.msra.mxu0 0.0
  %3879 = vmatprep.subr.mxu0 0.0
  %3880 = vmatpush1.msra.mxu0 0.0
  %3881 = vmatprep.subr.mxu0 0.0
  %3882 = vmatpush1.msra.mxu0 0.0
  %3883 = vmatprep.subr.mxu0 0.0
  %3884 = vmatpush1.msra.mxu0 0.0
  %3885 = vmatprep.subr.mxu0 0.0
  %3886 = vmatpush1.msra.mxu0 0.0
  %3887 = vmatprep.subr.mxu0 0.0
  %3888 = vmatpush1.msra.mxu0 0.0
  %3889 = vmatprep.subr.mxu0 0.0
  %3890 = vmatpush1.msra.mxu0 0.0
  %3891 = vmatprep.subr.mxu0 0.0
  %3892 = vmatpush1.msra.mxu0 0.0
  %3893 = vmatprep.subr.mxu0 0.0
  %3894 = vmatpush1.msra.mxu0 0.0
  %3895 = vmatprep.subr.mxu0 0.0
  %3896 = vmatpush1.msra.mxu0 0.0
  %3897 = vmatprep.subr.mxu0 0.0
  %3898 = vmatpush1.msra.mxu0 0.0
  %3899 = vmatprep.subr.mxu0 0.0
  %3900 = vmatpush1.msra.mxu0 0.0
  %3901 = vmatprep.subr.mxu0 0.0
  %3902 = vmatpush1.msra.mxu0 0.0
  %3903 = vmatprep.subr.mxu0 0.0
  %3904 = vmatpush1.msra.mxu0 0.0
  %3905 = vmatprep.mubr.f32.mxu0 0.0
  %3906 = vmatmul.mubr.f32.gmra.mrb[0].mxu0 %v3836
  %v3907 = vpop.f32.mrb[0].mxu0
  %v3908 = vadd.f32 %v3833, %v3907
  %v3909 = vpop.f32.mrb[0].mxu0
  %3910 = vmatprep.mubr.f32.mxu0 0.0
  %3911 = vmatmul.mubr.f32.gmra.mrb[0].mxu0 %v3839
  %v3912 = vpop.f32.mrb[0].mxu0
  %v3913 = vadd.f32 %v3833, %v3912
  %v3914 = vpop.f32.mrb[0].mxu0
  %3915 = vdwg.mxu0
  %3916 = vst [vmem:[%s18] sm:$0xff] %v3908
  %3917 = vst [vmem:[%s18 + $0x8] sm:$0xff] %v3913
  // Predicated region
  $region74: #{model_forward.1} parent=0 // pred_check
    _
  $region75: #{model_forward.1} parent=0 // pred_check_branch
    %3919 = sbr.rel (0) target = $region77
  $region76: #{model_forward.1} parent=0 // pred_region
    _
  $region77: #{model_forward.1} parent=0 // pred_fallthru
    _
  // Predicated region
  $region78: #{model_forward.1} parent=0 // pred_check
    _
  $region79: #{model_forward.1} parent=0 // pred_check_branch
    %3921 = sbr.rel (0) target = $region81
  $region80: #{model_forward.1} parent=0 // pred_region
    _
  $region81: #{model_forward.1} parent=0 // pred_fallthru
    _

</llo_original>
